<compile_context>
chip_gen: v5e
topology: v5e:2x2
jax: 0.10.0
libtpu: 0.0.40
codegen_flags: <defaults>
</compile_context>

<pallas_src>
import functools
import math

import jax
import jax.numpy as jnp
from jax import lax
from jax.experimental import pallas as pl
from jax.experimental.pallas import tpu as pltpu

LANE = 128
VMEM_LIMIT = 32 * 1024 * 1024


def _round_up(x, m):
    return (x + m - 1) // m * m


def _nbytes(a):
    return math.prod(a.shape) * a.dtype.itemsize


def _choose_row_tile(m, cap=1024):
    """Largest multiple-of-8 divisor of m that is <= cap (or m itself)."""
    if m <= cap:
        return m
    best = 0
    t = 8
    while t <= cap:
        if m % t == 0:
            best = t
        t += 8
    return best if best else m


# ----------------------------------------------------------------------------
# Kernel bodies
# ----------------------------------------------------------------------------
def _make_conv_kernel(kh, kw, stride, wo, n_inputs):
    """Fused ConvBNReLU over one (batch, output-row) tile.

    Grid = (N, Ho).  The KHxKW tap reduction is unrolled in the body; each tap
    is one MXU dot of an (Wo, Cin) input-row slice with a (Cin, Cout) weight
    slab.  Multiple (input, weight) pairs share one accumulator (used for the
    fuse stage, which replaces the channel concat).
    """
    n_phase = 2 if stride == 2 else 1

    def kernel(*args):
        nx = n_inputs * kh * n_phase
        x_refs = args[:nx]
        w_refs = args[nx:nx + n_inputs]
        s_ref, b_ref, o_ref = args[nx + n_inputs:]

        acc = None
        for p in range(n_inputs):
            for ki in range(kh):
                for kj in range(kw):
                    if stride == 2:
                        # even/odd W phase: stride-2 tap == contiguous slice.
                        xr = x_refs[(p * kh + ki) * 2 + (kj % 2)]
                    else:
                        xr = x_refs[p * kh + ki]
                    col0 = kj // 2 if stride == 2 else kj
                    row = xr[0, 0, pl.ds(col0, wo), :]        # (Wo, Cin) bf16
                    wt = w_refs[p][ki * kw + kj]              # (Cin, Cout) bf16
                    d = jnp.dot(row, wt, preferred_element_type=jnp.float32)
                    acc = d if acc is None else acc + d

        y = acc * s_ref[...] + b_ref[...]                     # folded BN
        o_ref[0, 0] = jnp.maximum(y, 0.0).astype(o_ref.dtype)

    return kernel


def _pointwise_kernel(x_ref, w_ref, s_ref, b_ref, o_ref):
    """1x1 ConvBNReLU as a flat matmul over a block of pixels."""
    y = jnp.dot(x_ref[...], w_ref[...], preferred_element_type=jnp.float32)
    y = y * s_ref[...] + b_ref[...]
    o_ref[...] = jnp.maximum(y, 0.0).astype(o_ref.dtype)


def _make_maxpool_kernel(kh, kw, wo):
    """MaxPool over one (batch, output-row) tile; taps unrolled in the body."""

    def kernel(*args):
        x_refs, o_ref = args[:-1], args[-1]
        cur = None
        for ki in range(kh):
            for kj in range(kw):
                xr = x_refs[ki * 2 + (kj % 2)]
                row = xr[0, 0, pl.ds(kj // 2, wo), :]
                cur = row if cur is None else jnp.maximum(cur, row)
        o_ref[0, 0] = cur

    return kernel


# ----------------------------------------------------------------------------
# Wrappers
# ----------------------------------------------------------------------------
def _split_w_phases(xp, pad_value):
    """Split a spatially padded NHWC tensor into even/odd W-column phases
    (same total bytes) so a stride-2 window tap becomes a contiguous slice."""
    if xp.shape[2] % 2:
        xp = jnp.pad(xp, ((0, 0), (0, 0), (0, 1), (0, 0)),
                     constant_values=pad_value)
    return xp[:, :, 0::2, :], xp[:, :, 1::2, :]


def _pointwise_conv_bn_relu(x, w, scale, bias):
    """1x1 stride-1 ConvBNReLU: one matmul over all pixels (big MXU M-tile)."""
    n, h, w0, cin = x.shape
    cout = w.shape[-1]
    m = n * h * w0
    tm = _choose_row_tile(m)
    x2 = x.reshape(m, cin)
    w2 = w.reshape(cin, cout)

    extra = {}
    if hasattr(pl, "CostEstimate"):
        extra["cost_estimate"] = pl.CostEstimate(
            flops=2 * m * cin * cout, transcendentals=0,
            bytes_accessed=_nbytes(x2) + _nbytes(w2) + 8 * cout + m * cout * 2)

    out = pl.pallas_call(
        _pointwise_kernel,
        out_shape=jax.ShapeDtypeStruct((m, cout), jnp.bfloat16),
        grid=(m // tm,),
        in_specs=[pl.BlockSpec((tm, cin), lambda i: (i, 0)),
                  pl.BlockSpec((cin, cout), lambda i: (0, 0)),
                  pl.BlockSpec((1, cout), lambda i: (0, 0)),
                  pl.BlockSpec((1, cout), lambda i: (0, 0))],
        out_specs=pl.BlockSpec((tm, cout), lambda i: (i, 0)),
        compiler_params=pltpu.CompilerParams(
            dimension_semantics=("parallel",),
            vmem_limit_bytes=VMEM_LIMIT),
        **extra,
    )(x2, w2, scale.reshape(1, cout), bias.reshape(1, cout))
    return out.reshape(n, h, w0, cout)


def conv_bn_relu(inputs, weights, scale, bias, *, stride, padding):
    """Fused Conv2d(bias=False) + folded-BN + ReLU.

    inputs : list of NHWC bf16 activations (channel dim already padded).
    weights: matching list of (KH, KW, Cin_pad_i, Cout_pad) bf16 weights.
    scale, bias: (Cout_pad,) f32 folded-BN parameters.
    """
    kh, kw, _, cout = weights[0].shape

    if kh == 1 and kw == 1 and stride == 1 and padding == 0 and len(inputs) == 1:
        return _pointwise_conv_bn_relu(inputs[0], weights[0], scale, bias)

    n, h, w0, _ = inputs[0].shape
    ho = (h + 2 * padding - kh) // stride + 1
    wo = (w0 + 2 * padding - kw) // stride + 1

    x_args, x_specs = [], []
    for x in inputs:
        cin = x.shape[-1]
        xp = jnp.pad(x, ((0, 0), (padding, padding), (padding, padding), (0, 0)))
        phases = _split_w_phases(xp, 0.0) if stride == 2 else (xp,)
        for ki in range(kh):
            for ph in phases:
                wp = ph.shape[2]
                x_args.append(ph)
                x_specs.append(pl.BlockSpec(
                    (1, 1, wp, cin),
                    (lambda n_, h_, k=ki: (n_, 2 * h_ + k, 0, 0)) if stride == 2
                    else (lambda n_, h_, k=ki: (n_, h_ + k, 0, 0))))

    w_args, w_specs = [], []
    for wgt in weights:
        cin = wgt.shape[2]
        w_args.append(wgt.reshape(kh * kw, cin, cout))
        # Constant index_map -> weight stays VMEM-resident across the grid.
        w_specs.append(pl.BlockSpec((kh * kw, cin, cout),
                                    lambda n_, h_: (0, 0, 0)))

    sb_spec = pl.BlockSpec((1, cout), lambda n_, h_: (0, 0))

    extra = {}
    if hasattr(pl, "CostEstimate"):
        flops = 2 * n * ho * wo * cout * sum(kh * kw * w.shape[2]
                                             for w in weights)
        bytes_accessed = (sum(_nbytes(a) for a in x_args)
                          + sum(_nbytes(a) for a in w_args)
                          + 2 * 4 * cout + n * ho * wo * cout * 2)
        extra["cost_estimate"] = pl.CostEstimate(
            flops=flops, transcendentals=0, bytes_accessed=bytes_accessed)

    out = pl.pallas_call(
        _make_conv_kernel(kh, kw, stride, wo, len(inputs)),
        out_shape=jax.ShapeDtypeStruct((n, ho, wo, cout), jnp.bfloat16),
        grid=(n, ho),
        in_specs=x_specs + w_specs + [sb_spec, sb_spec],
        out_specs=pl.BlockSpec((1, 1, wo, cout), lambda n_, h_: (n_, h_, 0, 0)),
        compiler_params=pltpu.CompilerParams(
            dimension_semantics=("parallel", "parallel"),
            vmem_limit_bytes=VMEM_LIMIT),
        **extra,
    )(*x_args, *w_args, scale.reshape(1, cout), bias.reshape(1, cout))
    return out


def maxpool_3x3_s2_p1(x):
    # Input is post-ReLU (>= 0) so zero padding == -inf padding here.
    n, h, w0, c = x.shape
    kh = kw = 3
    ho = (h + 2 - kh) // 2 + 1
    wo = (w0 + 2 - kw) // 2 + 1
    xp = jnp.pad(x, ((0, 0), (1, 1), (1, 1), (0, 0)), constant_values=0.0)
    phases = _split_w_phases(xp, 0.0)

    x_args, x_specs = [], []
    for ki in range(kh):
        for ph in phases:
            x_args.append(ph)
            x_specs.append(pl.BlockSpec(
                (1, 1, ph.shape[2], c),
                lambda n_, h_, k=ki: (n_, 2 * h_ + k, 0, 0)))

    out = pl.pallas_call(
        _make_maxpool_kernel(kh, kw, wo),
        out_shape=jax.ShapeDtypeStruct((n, ho, wo, c), x.dtype),
        grid=(n, ho),
        in_specs=x_specs,
        out_specs=pl.BlockSpec((1, 1, wo, c), lambda n_, h_: (n_, h_, 0, 0)),
        compiler_params=pltpu.CompilerParams(
            dimension_semantics=("parallel", "parallel"),
            vmem_limit_bytes=VMEM_LIMIT),
    )(*x_args)
    return out


# ----------------------------------------------------------------------------
# Parameters (deterministic, synthetic); BN folded in inference mode.
# ----------------------------------------------------------------------------
def _fold_bn(gamma, beta, mean, var, eps=1e-5):
    scale = gamma / jnp.sqrt(var + eps)
    bias = beta - mean * scale
    return scale.astype(jnp.float32), bias.astype(jnp.float32)


def _pad_weight(w, cin_pad_to=LANE, cout_pad_to=LANE):
    kh, kw, cin, cout = w.shape
    cin_p, cout_p = _round_up(cin, cin_pad_to), _round_up(cout, cout_pad_to)
    wp = jnp.zeros((kh, kw, cin_p, cout_p), jnp.float32)
    wp = wp.at[:, :, :cin, :cout].set(w)
    return wp.astype(jnp.bfloat16)


def _pad_vec(v, pad_to=LANE):
    cp = _round_up(v.shape[0], pad_to)
    return jnp.zeros((cp,), jnp.float32).at[:v.shape[0]].set(v)


def make_conv_bn_params(key, kh, kw, cin, cout, *, cin_pad_to=LANE):
    kw_, kg, kb, km, kv = jax.random.split(key, 5)
    w = 0.1 * jax.random.normal(kw_, (kh, kw, cin, cout), jnp.float32)
    gamma = 1.0 + 0.1 * jax.random.normal(kg, (cout,), jnp.float32)
    beta = 0.1 * jax.random.normal(kb, (cout,), jnp.float32)
    mean = 0.1 * jax.random.normal(km, (cout,), jnp.float32)
    var = 0.5 + jnp.abs(jax.random.normal(kv, (cout,), jnp.float32))
    scale, bias = _fold_bn(gamma, beta, mean, var)
    ref = {"w": w, "scale": scale, "bias": bias}
    ker = {"w": _pad_weight(w, cin_pad_to, LANE),
           "scale": _pad_vec(scale), "bias": _pad_vec(bias)}
    return ker, ref


def init_stem_params(key, in_dim, out_dim):
    k1, k2, k3, k4 = jax.random.split(key, 4)
    conv_k, conv_r = make_conv_bn_params(k1, 3, 3, in_dim, out_dim, cin_pad_to=8)
    l1_k, l1_r = make_conv_bn_params(k2, 1, 1, out_dim, out_dim // 2)
    l2_k, l2_r = make_conv_bn_params(k3, 3, 3, out_dim // 2, out_dim)
    _, fuse_r = make_conv_bn_params(k4, 3, 3, 2 * out_dim, out_dim)
    # Split the fuse weight so the kernel consumes left/right directly
    # (channel concat == sum of two matmuls).
    wf = fuse_r["w"]
    fuse_k = {
        "w_left": _pad_weight(wf[:, :, :out_dim, :]),
        "w_right": _pad_weight(wf[:, :, out_dim:, :]),
        "scale": _pad_vec(fuse_r["scale"]),
        "bias": _pad_vec(fuse_r["bias"]),
    }
    kparams = {"conv": conv_k, "left1": l1_k, "left2": l2_k, "fuse": fuse_k}
    rparams = {"conv": conv_r, "left1": l1_r, "left2": l2_r, "fuse": fuse_r}
    return kparams, rparams


# ----------------------------------------------------------------------------
# StemBlock forward (Pallas) and pure-JAX reference
# ----------------------------------------------------------------------------
@functools.partial(jax.jit, static_argnames=("out_dim",))
def stem_block_forward(x_nchw, params, *, out_dim):
    # NCHW (PyTorch) -> NHWC; pad channels; bf16 for MXU/HBM.
    x = jnp.transpose(x_nchw, (0, 2, 3, 1))
    cin_p = params["conv"]["w"].shape[2]
    x = jnp.pad(x, ((0, 0), (0, 0), (0, 0), (0, cin_p - x.shape[-1])))
    x = x.astype(jnp.bfloat16)

    p = params["conv"]
    s = conv_bn_relu([x], [p["w"]], p["scale"], p["bias"], stride=2, padding=1)

    p = params["left1"]
    l1 = conv_bn_relu([s], [p["w"]], p["scale"], p["bias"], stride=1, padding=0)
    p = params["left2"]
    left = conv_bn_relu([l1], [p["w"]], p["scale"], p["bias"], stride=2, padding=1)

    right = maxpool_3x3_s2_p1(s)

    p = params["fuse"]
    out = conv_bn_relu([left, right], [p["w_left"], p["w_right"]],
                       p["scale"], p["bias"], stride=1, padding=1)

    out = out[..., :out_dim].astype(jnp.float32)
    return jnp.transpose(out, (0, 3, 1, 2))


def _conv_bn_relu_ref(x, w, scale, bias, stride, padding):
    y = lax.conv_general_dilated(
        x, w, window_strides=(stride, stride),
        padding=((padding, padding), (padding, padding)),
        dimension_numbers=("NHWC", "HWIO", "NHWC"))
    return jnp.maximum(y * scale + bias, 0.0)


def stem_block_ref(x_nchw, rp):
    q = lambda a: a.astype(jnp.bfloat16).astype(jnp.float32)  # match bf16 quant
    x = q(jnp.transpose(x_nchw, (0, 2, 3, 1)))
    s = _conv_bn_relu_ref(x, q(rp["conv"]["w"]), rp["conv"]["scale"],
                          rp["conv"]["bias"], 2, 1)
    l1 = _conv_bn_relu_ref(s, q(rp["left1"]["w"]), rp["left1"]["scale"],
                           rp["left1"]["bias"], 1, 0)
    left = _conv_bn_relu_ref(l1, q(rp["left2"]["w"]), rp["left2"]["scale"],
                             rp["left2"]["bias"], 2, 1)
    right = lax.reduce_window(s, -jnp.inf, lax.max, (1, 3, 3, 1),
                              (1, 2, 2, 1), ((0, 0), (1, 1), (1, 1), (0, 0)))
    concat = jnp.concatenate([left, right], axis=-1)
    out = _conv_bn_relu_ref(concat, q(rp["fuse"]["w"]), rp["fuse"]["scale"],
                            rp["fuse"]["bias"], 1, 1)
    return jnp.transpose(out, (0, 3, 1, 2))


# ----------------------------------------------------------------------------
if __name__ == "__main__":
    key = jax.random.PRNGKey(0)
    kx, kp = jax.random.split(key)

    N, IN_DIM, OUT_DIM, H, W = 2, 4, 16, 16, 16
    x = jax.random.normal(kx, (N, IN_DIM, H, W), jnp.float32)  # NCHW
    kparams, rparams = init_stem_params(kp, IN_DIM, OUT_DIM)

    y = stem_block_forward(x, kparams, out_dim=OUT_DIM)
    y = jax.block_until_ready(y)

    assert y.shape == (N, OUT_DIM, H // 4, W // 4), y.shape
    assert bool(jnp.all(jnp.isfinite(y)))

    y_ref = stem_block_ref(x, rparams)
    err = float(jnp.max(jnp.abs(y - y_ref)))
    tol = 5e-2 * (1.0 + float(jnp.max(jnp.abs(y_ref))))
    assert err < tol, f"max abs err {err} (tol {tol})"
    print("KERNEL_OK")
</pallas_src>

<mosaic_0001>
module attributes {stable_mosaic.version = 11 : i64} {
  func.func @kernel(%arg0: i32, %arg1: i32, %arg2: memref<1x1x9x8xbf16, #tpu.memory_space<vmem>>, %arg3: memref<1x1x9x8xbf16, #tpu.memory_space<vmem>>, %arg4: memref<1x1x9x8xbf16, #tpu.memory_space<vmem>>, %arg5: memref<1x1x9x8xbf16, #tpu.memory_space<vmem>>, %arg6: memref<1x1x9x8xbf16, #tpu.memory_space<vmem>>, %arg7: memref<1x1x9x8xbf16, #tpu.memory_space<vmem>>, %arg8: memref<9x8x128xbf16, #tpu.memory_space<vmem>>, %arg9: memref<1x128xf32, #tpu.memory_space<vmem>>, %arg10: memref<1x128xf32, #tpu.memory_space<vmem>>, %arg11: memref<1x1x8x128xbf16, #tpu.memory_space<vmem>>) attributes {dimension_semantics = [#tpu.dimension_semantics<parallel>, #tpu.dimension_semantics<parallel>], iteration_bounds = array<i64: 2, 8>, scalar_prefetch = 0 : i64, scratch_operands = 0 : i64, tpu.core_type = #tpu.core_type<tc>, window_params = [{transform_indices = @transform_0, window_bounds = array<i64: 1, 1, 9, 8>}, {transform_indices = @transform_1, window_bounds = array<i64: 1, 1, 9, 8>}, {transform_indices = @transform_2, window_bounds = array<i64: 1, 1, 9, 8>}, {transform_indices = @transform_3, window_bounds = array<i64: 1, 1, 9, 8>}, {transform_indices = @transform_4, window_bounds = array<i64: 1, 1, 9, 8>}, {transform_indices = @transform_5, window_bounds = array<i64: 1, 1, 9, 8>}, {pipeline_mode = #tpu.pipeline_mode<synchronous>, transform_indices = @transform_6, window_bounds = array<i64: 9, 8, 128>}, {pipeline_mode = #tpu.pipeline_mode<synchronous>, transform_indices = @transform_7, window_bounds = array<i64: 1, 128>}, {pipeline_mode = #tpu.pipeline_mode<synchronous>, transform_indices = @transform_8, window_bounds = array<i64: 1, 128>}, {transform_indices = @transform_9, window_bounds = array<i64: 1, 1, 8, 128>}]} {
    %c0 = arith.constant 0 : index
    %c0_0 = arith.constant 0 : index
    %c0_1 = arith.constant 0 : index
    %c0_2 = arith.constant 0 : index
    %0 = vector.load %arg2[%c0, %c0_0, %c0_1, %c0_2] : memref<1x1x9x8xbf16, #tpu.memory_space<vmem>>, vector<1x1x8x8xbf16>
    %1 = vector.shape_cast %0 : vector<1x1x8x8xbf16> to vector<8x8xbf16>
    %c0_3 = arith.constant 0 : index
    %c0_4 = arith.constant 0 : index
    %c0_5 = arith.constant 0 : index
    %2 = vector.load %arg8[%c0_3, %c0_4, %c0_5] : memref<9x8x128xbf16, #tpu.memory_space<vmem>>, vector<1x8x128xbf16>
    %3 = vector.shape_cast %2 : vector<1x8x128xbf16> to vector<8x128xbf16>
    %cst = arith.constant dense<0.000000e+00> : vector<8x128xf32>
    %4 = tpu.matmul %1, %3, %cst {dimension_numbers = #tpu.dot_dimension_numbers<[1], [0], [0], [1], [0, 0, 1, 1], [], []>} : vector<8x8xbf16>, vector<8x128xbf16>, vector<8x128xf32> -> vector<8x128xf32>
    %c0_6 = arith.constant 0 : index
    %c0_7 = arith.constant 0 : index
    %c0_8 = arith.constant 0 : index
    %c0_9 = arith.constant 0 : index
    %5 = vector.load %arg3[%c0_6, %c0_7, %c0_8, %c0_9] : memref<1x1x9x8xbf16, #tpu.memory_space<vmem>>, vector<1x1x8x8xbf16>
    %6 = vector.shape_cast %5 : vector<1x1x8x8xbf16> to vector<8x8xbf16>
    %c1 = arith.constant 1 : index
    %c0_10 = arith.constant 0 : index
    %c0_11 = arith.constant 0 : index
    %7 = vector.load %arg8[%c1, %c0_10, %c0_11] : memref<9x8x128xbf16, #tpu.memory_space<vmem>>, vector<1x8x128xbf16>
    %8 = vector.shape_cast %7 : vector<1x8x128xbf16> to vector<8x128xbf16>
    %cst_12 = arith.constant dense<0.000000e+00> : vector<8x128xf32>
    %9 = tpu.matmul %6, %8, %cst_12 {dimension_numbers = #tpu.dot_dimension_numbers<[1], [0], [0], [1], [0, 0, 1, 1], [], []>} : vector<8x8xbf16>, vector<8x128xbf16>, vector<8x128xf32> -> vector<8x128xf32>
    %10 = arith.addf %4, %9 : vector<8x128xf32>
    %c0_13 = arith.constant 0 : index
    %c0_14 = arith.constant 0 : index
    %c1_15 = arith.constant 1 : index
    %c0_16 = arith.constant 0 : index
    %11 = vector.load %arg2[%c0_13, %c0_14, %c1_15, %c0_16] : memref<1x1x9x8xbf16, #tpu.memory_space<vmem>>, vector<1x1x8x8xbf16>
    %12 = vector.shape_cast %11 : vector<1x1x8x8xbf16> to vector<8x8xbf16>
    %c2 = arith.constant 2 : index
    %c0_17 = arith.constant 0 : index
    %c0_18 = arith.constant 0 : index
    %13 = vector.load %arg8[%c2, %c0_17, %c0_18] : memref<9x8x128xbf16, #tpu.memory_space<vmem>>, vector<1x8x128xbf16>
    %14 = vector.shape_cast %13 : vector<1x8x128xbf16> to vector<8x128xbf16>
    %cst_19 = arith.constant dense<0.000000e+00> : vector<8x128xf32>
    %15 = tpu.matmul %12, %14, %cst_19 {dimension_numbers = #tpu.dot_dimension_numbers<[1], [0], [0], [1], [0, 0, 1, 1], [], []>} : vector<8x8xbf16>, vector<8x128xbf16>, vector<8x128xf32> -> vector<8x128xf32>
    %16 = arith.addf %10, %15 : vector<8x128xf32>
    %c0_20 = arith.constant 0 : index
    %c0_21 = arith.constant 0 : index
    %c0_22 = arith.constant 0 : index
    %c0_23 = arith.constant 0 : index
    %17 = vector.load %arg4[%c0_20, %c0_21, %c0_22, %c0_23] : memref<1x1x9x8xbf16, #tpu.memory_space<vmem>>, vector<1x1x8x8xbf16>
    %18 = vector.shape_cast %17 : vector<1x1x8x8xbf16> to vector<8x8xbf16>
    %c3 = arith.constant 3 : index
    %c0_24 = arith.constant 0 : index
    %c0_25 = arith.constant 0 : index
    %19 = vector.load %arg8[%c3, %c0_24, %c0_25] : memref<9x8x128xbf16, #tpu.memory_space<vmem>>, vector<1x8x128xbf16>
    %20 = vector.shape_cast %19 : vector<1x8x128xbf16> to vector<8x128xbf16>
    %cst_26 = arith.constant dense<0.000000e+00> : vector<8x128xf32>
    %21 = tpu.matmul %18, %20, %cst_26 {dimension_numbers = #tpu.dot_dimension_numbers<[1], [0], [0], [1], [0, 0, 1, 1], [], []>} : vector<8x8xbf16>, vector<8x128xbf16>, vector<8x128xf32> -> vector<8x128xf32>
    %22 = arith.addf %16, %21 : vector<8x128xf32>
    %c0_27 = arith.constant 0 : index
    %c0_28 = arith.constant 0 : index
    %c0_29 = arith.constant 0 : index
    %c0_30 = arith.constant 0 : index
    %23 = vector.load %arg5[%c0_27, %c0_28, %c0_29, %c0_30] : memref<1x1x9x8xbf16, #tpu.memory_space<vmem>>, vector<1x1x8x8xbf16>
    %24 = vector.shape_cast %23 : vector<1x1x8x8xbf16> to vector<8x8xbf16>
    %c4 = arith.constant 4 : index
    %c0_31 = arith.constant 0 : index
    %c0_32 = arith.constant 0 : index
    %25 = vector.load %arg8[%c4, %c0_31, %c0_32] : memref<9x8x128xbf16, #tpu.memory_space<vmem>>, vector<1x8x128xbf16>
    %26 = vector.shape_cast %25 : vector<1x8x128xbf16> to vector<8x128xbf16>
    %cst_33 = arith.constant dense<0.000000e+00> : vector<8x128xf32>
    %27 = tpu.matmul %24, %26, %cst_33 {dimension_numbers = #tpu.dot_dimension_numbers<[1], [0], [0], [1], [0, 0, 1, 1], [], []>} : vector<8x8xbf16>, vector<8x128xbf16>, vector<8x128xf32> -> vector<8x128xf32>
    %28 = arith.addf %22, %27 : vector<8x128xf32>
    %c0_34 = arith.constant 0 : index
    %c0_35 = arith.constant 0 : index
    %c1_36 = arith.constant 1 : index
    %c0_37 = arith.constant 0 : index
    %29 = vector.load %arg4[%c0_34, %c0_35, %c1_36, %c0_37] : memref<1x1x9x8xbf16, #tpu.memory_space<vmem>>, vector<1x1x8x8xbf16>
    %30 = vector.shape_cast %29 : vector<1x1x8x8xbf16> to vector<8x8xbf16>
    %c5 = arith.constant 5 : index
    %c0_38 = arith.constant 0 : index
    %c0_39 = arith.constant 0 : index
    %31 = vector.load %arg8[%c5, %c0_38, %c0_39] : memref<9x8x128xbf16, #tpu.memory_space<vmem>>, vector<1x8x128xbf16>
    %32 = vector.shape_cast %31 : vector<1x8x128xbf16> to vector<8x128xbf16>
    %cst_40 = arith.constant dense<0.000000e+00> : vector<8x128xf32>
    %33 = tpu.matmul %30, %32, %cst_40 {dimension_numbers = #tpu.dot_dimension_numbers<[1], [0], [0], [1], [0, 0, 1, 1], [], []>} : vector<8x8xbf16>, vector<8x128xbf16>, vector<8x128xf32> -> vector<8x128xf32>
    %34 = arith.addf %28, %33 : vector<8x128xf32>
    %c0_41 = arith.constant 0 : index
    %c0_42 = arith.constant 0 : index
    %c0_43 = arith.constant 0 : index
    %c0_44 = arith.constant 0 : index
    %35 = vector.load %arg6[%c0_41, %c0_42, %c0_43, %c0_44] : memref<1x1x9x8xbf16, #tpu.memory_space<vmem>>, vector<1x1x8x8xbf16>
    %36 = vector.shape_cast %35 : vector<1x1x8x8xbf16> to vector<8x8xbf16>
    %c6 = arith.constant 6 : index
    %c0_45 = arith.constant 0 : index
    %c0_46 = arith.constant 0 : index
    %37 = vector.load %arg8[%c6, %c0_45, %c0_46] : memref<9x8x128xbf16, #tpu.memory_space<vmem>>, vector<1x8x128xbf16>
    %38 = vector.shape_cast %37 : vector<1x8x128xbf16> to vector<8x128xbf16>
    %cst_47 = arith.constant dense<0.000000e+00> : vector<8x128xf32>
    %39 = tpu.matmul %36, %38, %cst_47 {dimension_numbers = #tpu.dot_dimension_numbers<[1], [0], [0], [1], [0, 0, 1, 1], [], []>} : vector<8x8xbf16>, vector<8x128xbf16>, vector<8x128xf32> -> vector<8x128xf32>
    %40 = arith.addf %34, %39 : vector<8x128xf32>
    %c0_48 = arith.constant 0 : index
    %c0_49 = arith.constant 0 : index
    %c0_50 = arith.constant 0 : index
    %c0_51 = arith.constant 0 : index
    %41 = vector.load %arg7[%c0_48, %c0_49, %c0_50, %c0_51] : memref<1x1x9x8xbf16, #tpu.memory_space<vmem>>, vector<1x1x8x8xbf16>
    %42 = vector.shape_cast %41 : vector<1x1x8x8xbf16> to vector<8x8xbf16>
    %c7 = arith.constant 7 : index
    %c0_52 = arith.constant 0 : index
    %c0_53 = arith.constant 0 : index
    %43 = vector.load %arg8[%c7, %c0_52, %c0_53] : memref<9x8x128xbf16, #tpu.memory_space<vmem>>, vector<1x8x128xbf16>
    %44 = vector.shape_cast %43 : vector<1x8x128xbf16> to vector<8x128xbf16>
    %cst_54 = arith.constant dense<0.000000e+00> : vector<8x128xf32>
    %45 = tpu.matmul %42, %44, %cst_54 {dimension_numbers = #tpu.dot_dimension_numbers<[1], [0], [0], [1], [0, 0, 1, 1], [], []>} : vector<8x8xbf16>, vector<8x128xbf16>, vector<8x128xf32> -> vector<8x128xf32>
    %46 = arith.addf %40, %45 : vector<8x128xf32>
    %c0_55 = arith.constant 0 : index
    %c0_56 = arith.constant 0 : index
    %c1_57 = arith.constant 1 : index
    %c0_58 = arith.constant 0 : index
    %47 = vector.load %arg6[%c0_55, %c0_56, %c1_57, %c0_58] : memref<1x1x9x8xbf16, #tpu.memory_space<vmem>>, vector<1x1x8x8xbf16>
    %48 = vector.shape_cast %47 : vector<1x1x8x8xbf16> to vector<8x8xbf16>
    %c8 = arith.constant 8 : index
    %c0_59 = arith.constant 0 : index
    %c0_60 = arith.constant 0 : index
    %49 = vector.load %arg8[%c8, %c0_59, %c0_60] : memref<9x8x128xbf16, #tpu.memory_space<vmem>>, vector<1x8x128xbf16>
    %50 = vector.shape_cast %49 : vector<1x8x128xbf16> to vector<8x128xbf16>
    %cst_61 = arith.constant dense<0.000000e+00> : vector<8x128xf32>
    %51 = tpu.matmul %48, %50, %cst_61 {dimension_numbers = #tpu.dot_dimension_numbers<[1], [0], [0], [1], [0, 0, 1, 1], [], []>} : vector<8x8xbf16>, vector<8x128xbf16>, vector<8x128xf32> -> vector<8x128xf32>
    %52 = arith.addf %46, %51 : vector<8x128xf32>
    %c0_62 = arith.constant 0 : index
    %c0_63 = arith.constant 0 : index
    %53 = vector.load %arg9[%c0_62, %c0_63] : memref<1x128xf32, #tpu.memory_space<vmem>>, vector<1x128xf32>
    %54 = vector.broadcast %53 : vector<1x128xf32> to vector<8x128xf32>
    %55 = arith.mulf %52, %54 : vector<8x128xf32>
    %c0_64 = arith.constant 0 : index
    %c0_65 = arith.constant 0 : index
    %56 = vector.load %arg10[%c0_64, %c0_65] : memref<1x128xf32, #tpu.memory_space<vmem>>, vector<1x128xf32>
    %57 = vector.broadcast %56 : vector<1x128xf32> to vector<8x128xf32>
    %58 = arith.addf %55, %57 : vector<8x128xf32>
    %cst_66 = arith.constant 0.000000e+00 : f32
    %59 = vector.broadcast %cst_66 : f32 to vector<8x128xf32>
    %60 = arith.maximumf %58, %59 : vector<8x128xf32>
    %61 = arith.truncf %60 : vector<8x128xf32> to vector<8x128xbf16>
    %c0_67 = arith.constant 0 : index
    %c0_68 = arith.constant 0 : index
    %c0_69 = arith.constant 0 : index
    %c0_70 = arith.constant 0 : index
    %62 = vector.load %arg11[%c0_67, %c0_68, %c0_69, %c0_70] : memref<1x1x8x128xbf16, #tpu.memory_space<vmem>>, vector<1x1x8x128xbf16>
    %63 = vector.shape_cast %62 : vector<1x1x8x128xbf16> to vector<8x128xbf16>
    %64 = vector.shape_cast %61 : vector<8x128xbf16> to vector<1x1x8x128xbf16>
    tpu.vector_store %arg11[%c0_67, %c0_68, %c0_69, %c0_70], %64 {strides = array<i32>} : memref<1x1x8x128xbf16, #tpu.memory_space<vmem>>, vector<1x1x8x128xbf16>,
    return
  }
  func.func @transform_0(%arg0: i32, %arg1: i32) -> (i32, i32, i32, i32) {
    %c2_i32 = arith.constant 2 : i32
    %0 = arith.muli %c2_i32, %arg1 : i32
    %c0_i32 = arith.constant 0 : i32
    %1 = arith.addi %0, %c0_i32 : i32
    %c0_i32_0 = arith.constant 0 : i32
    %c0_i32_1 = arith.constant 0 : i32
    %c0_i32_2 = arith.constant 0 : i32
    return %arg0, %1, %c0_i32_0, %c0_i32_1 : i32, i32, i32, i32
  }
  func.func @transform_1(%arg0: i32, %arg1: i32) -> (i32, i32, i32, i32) {
    %c2_i32 = arith.constant 2 : i32
    %0 = arith.muli %c2_i32, %arg1 : i32
    %c0_i32 = arith.constant 0 : i32
    %1 = arith.addi %0, %c0_i32 : i32
    %c0_i32_0 = arith.constant 0 : i32
    %c0_i32_1 = arith.constant 0 : i32
    %c0_i32_2 = arith.constant 0 : i32
    return %arg0, %1, %c0_i32_0, %c0_i32_1 : i32, i32, i32, i32
  }
  func.func @transform_2(%arg0: i32, %arg1: i32) -> (i32, i32, i32, i32) {
    %c2_i32 = arith.constant 2 : i32
    %0 = arith.muli %c2_i32, %arg1 : i32
    %c1_i32 = arith.constant 1 : i32
    %1 = arith.addi %0, %c1_i32 : i32
    %c0_i32 = arith.constant 0 : i32
    %c0_i32_0 = arith.constant 0 : i32
    %c0_i32_1 = arith.constant 0 : i32
    return %arg0, %1, %c0_i32, %c0_i32_0 : i32, i32, i32, i32
  }
  func.func @transform_3(%arg0: i32, %arg1: i32) -> (i32, i32, i32, i32) {
    %c2_i32 = arith.constant 2 : i32
    %0 = arith.muli %c2_i32, %arg1 : i32
    %c1_i32 = arith.constant 1 : i32
    %1 = arith.addi %0, %c1_i32 : i32
    %c0_i32 = arith.constant 0 : i32
    %c0_i32_0 = arith.constant 0 : i32
    %c0_i32_1 = arith.constant 0 : i32
    return %arg0, %1, %c0_i32, %c0_i32_0 : i32, i32, i32, i32
  }
  func.func @transform_4(%arg0: i32, %arg1: i32) -> (i32, i32, i32, i32) {
    %c2_i32 = arith.constant 2 : i32
    %0 = arith.muli %c2_i32, %arg1 : i32
    %c2_i32_0 = arith.constant 2 : i32
    %1 = arith.addi %0, %c2_i32_0 : i32
    %c0_i32 = arith.constant 0 : i32
    %c0_i32_1 = arith.constant 0 : i32
    %c0_i32_2 = arith.constant 0 : i32
    return %arg0, %1, %c0_i32, %c0_i32_1 : i32, i32, i32, i32
  }
  func.func @transform_5(%arg0: i32, %arg1: i32) -> (i32, i32, i32, i32) {
    %c2_i32 = arith.constant 2 : i32
    %0 = arith.muli %c2_i32, %arg1 : i32
    %c2_i32_0 = arith.constant 2 : i32
    %1 = arith.addi %0, %c2_i32_0 : i32
    %c0_i32 = arith.constant 0 : i32
    %c0_i32_1 = arith.constant 0 : i32
    %c0_i32_2 = arith.constant 0 : i32
    return %arg0, %1, %c0_i32, %c0_i32_1 : i32, i32, i32, i32
  }
  func.func @transform_6(%arg0: i32, %arg1: i32) -> (i32, i32, i32) {
    %c0_i32 = arith.constant 0 : i32
    %c0_i32_0 = arith.constant 0 : i32
    %c0_i32_1 = arith.constant 0 : i32
    %c0_i32_2 = arith.constant 0 : i32
    return %c0_i32, %c0_i32_0, %c0_i32_1 : i32, i32, i32
  }
  func.func @transform_7(%arg0: i32, %arg1: i32) -> (i32, i32) {
    %c0_i32 = arith.constant 0 : i32
    %c0_i32_0 = arith.constant 0 : i32
    %c0_i32_1 = arith.constant 0 : i32
    return %c0_i32, %c0_i32_0 : i32, i32
  }
  func.func @transform_8(%arg0: i32, %arg1: i32) -> (i32, i32) {
    %c0_i32 = arith.constant 0 : i32
    %c0_i32_0 = arith.constant 0 : i32
    %c0_i32_1 = arith.constant 0 : i32
    return %c0_i32, %c0_i32_0 : i32, i32
  }
  func.func @transform_9(%arg0: i32, %arg1: i32) -> (i32, i32, i32, i32) {
    %c0_i32 = arith.constant 0 : i32
    %c0_i32_0 = arith.constant 0 : i32
    %c0_i32_1 = arith.constant 0 : i32
    return %arg0, %arg1, %c0_i32, %c0_i32_0 : i32, i32, i32, i32
  }
}

module attributes {stable_mosaic.version = 11 : i64} {
  func.func @_pointwise_kernel(%arg0: i32, %arg1: memref<128x128xbf16, #tpu.memory_space<vmem>>, %arg2: memref<128x128xbf16, #tpu.memory_space<vmem>>, %arg3: memref<1x128xf32, #tpu.memory_space<vmem>>, %arg4: memref<1x128xf32, #tpu.memory_space<vmem>>, %arg5: memref<128x128xbf16, #tpu.memory_space<vmem>>) attributes {dimension_semantics = [#tpu.dimension_semantics<parallel>], iteration_bounds = array<i64: 1>, scalar_prefetch = 0 : i64, scratch_operands = 0 : i64, tpu.core_type = #tpu.core_type<tc>, window_params = [{transform_indices = @transform_0, window_bounds = array<i64: 128, 128>}, {pipeline_mode = #tpu.pipeline_mode<synchronous>, transform_indices = @transform_1, window_bounds = array<i64: 128, 128>}, {pipeline_mode = #tpu.pipeline_mode<synchronous>, transform_indices = @transform_2, window_bounds = array<i64: 1, 128>}, {pipeline_mode = #tpu.pipeline_mode<synchronous>, transform_indices = @transform_3, window_bounds = array<i64: 1, 128>}, {transform_indices = @transform_4, window_bounds = array<i64: 128, 128>}]} {
    %c0 = arith.constant 0 : index
    %c0_0 = arith.constant 0 : index
    %0 = vector.load %arg1[%c0, %c0_0] : memref<128x128xbf16, #tpu.memory_space<vmem>>, vector<128x128xbf16>
    %c0_1 = arith.constant 0 : index
    %c0_2 = arith.constant 0 : index
    %1 = vector.load %arg2[%c0_1, %c0_2] : memref<128x128xbf16, #tpu.memory_space<vmem>>, vector<128x128xbf16>
    %cst = arith.constant dense<0.000000e+00> : vector<128x128xf32>
    %2 = tpu.matmul %0, %1, %cst {dimension_numbers = #tpu.dot_dimension_numbers<[1], [0], [0], [1], [0, 0, 1, 1], [], []>} : vector<128x128xbf16>, vector<128x128xbf16>, vector<128x128xf32> -> vector<128x128xf32>
    %c0_3 = arith.constant 0 : index
    %c0_4 = arith.constant 0 : index
    %3 = vector.load %arg3[%c0_3, %c0_4] : memref<1x128xf32, #tpu.memory_space<vmem>>, vector<1x128xf32>
    %4 = vector.broadcast %3 : vector<1x128xf32> to vector<128x128xf32>
    %5 = arith.mulf %2, %4 : vector<128x128xf32>
    %c0_5 = arith.constant 0 : index
    %c0_6 = arith.constant 0 : index
    %6 = vector.load %arg4[%c0_5, %c0_6] : memref<1x128xf32, #tpu.memory_space<vmem>>, vector<1x128xf32>
    %7 = vector.broadcast %6 : vector<1x128xf32> to vector<128x128xf32>
    %8 = arith.addf %5, %7 : vector<128x128xf32>
    %cst_7 = arith.constant 0.000000e+00 : f32
    %9 = vector.broadcast %cst_7 : f32 to vector<128x128xf32>
    %10 = arith.maximumf %8, %9 : vector<128x128xf32>
    %11 = arith.truncf %10 : vector<128x128xf32> to vector<128x128xbf16>
    %c0_8 = arith.constant 0 : index
    %c0_9 = arith.constant 0 : index
    %12 = vector.load %arg5[%c0_8, %c0_9] : memref<128x128xbf16, #tpu.memory_space<vmem>>, vector<128x128xbf16>
    tpu.vector_store %arg5[%c0_8, %c0_9], %11 {strides = array<i32>} : memref<128x128xbf16, #tpu.memory_space<vmem>>, vector<128x128xbf16>,
    return
  }
  func.func @transform_0(%arg0: i32) -> (i32, i32) {
    %c0_i32 = arith.constant 0 : i32
    %c0_i32_0 = arith.constant 0 : i32
    return %arg0, %c0_i32 : i32, i32
  }
  func.func @transform_1(%arg0: i32) -> (i32, i32) {
    %c0_i32 = arith.constant 0 : i32
    %c0_i32_0 = arith.constant 0 : i32
    %c0_i32_1 = arith.constant 0 : i32
    return %c0_i32, %c0_i32_0 : i32, i32
  }
  func.func @transform_2(%arg0: i32) -> (i32, i32) {
    %c0_i32 = arith.constant 0 : i32
    %c0_i32_0 = arith.constant 0 : i32
    %c0_i32_1 = arith.constant 0 : i32
    return %c0_i32, %c0_i32_0 : i32, i32
  }
  func.func @transform_3(%arg0: i32) -> (i32, i32) {
    %c0_i32 = arith.constant 0 : i32
    %c0_i32_0 = arith.constant 0 : i32
    %c0_i32_1 = arith.constant 0 : i32
    return %c0_i32, %c0_i32_0 : i32, i32
  }
  func.func @transform_4(%arg0: i32) -> (i32, i32) {
    %c0_i32 = arith.constant 0 : i32
    %c0_i32_0 = arith.constant 0 : i32
    return %arg0, %c0_i32 : i32, i32
  }
}

module attributes {stable_mosaic.version = 11 : i64} {
  func.func @kernel(%arg0: i32, %arg1: i32, %arg2: memref<1x1x5x128xbf16, #tpu.memory_space<vmem>>, %arg3: memref<1x1x5x128xbf16, #tpu.memory_space<vmem>>, %arg4: memref<1x1x5x128xbf16, #tpu.memory_space<vmem>>, %arg5: memref<1x1x5x128xbf16, #tpu.memory_space<vmem>>, %arg6: memref<1x1x5x128xbf16, #tpu.memory_space<vmem>>, %arg7: memref<1x1x5x128xbf16, #tpu.memory_space<vmem>>, %arg8: memref<1x1x4x128xbf16, #tpu.memory_space<vmem>>) attributes {dimension_semantics = [#tpu.dimension_semantics<parallel>, #tpu.dimension_semantics<parallel>], iteration_bounds = array<i64: 2, 4>, scalar_prefetch = 0 : i64, scratch_operands = 0 : i64, tpu.core_type = #tpu.core_type<tc>, window_params = [{transform_indices = @transform_0, window_bounds = array<i64: 1, 1, 5, 128>}, {transform_indices = @transform_1, window_bounds = array<i64: 1, 1, 5, 128>}, {transform_indices = @transform_2, window_bounds = array<i64: 1, 1, 5, 128>}, {transform_indices = @transform_3, window_bounds = array<i64: 1, 1, 5, 128>}, {transform_indices = @transform_4, window_bounds = array<i64: 1, 1, 5, 128>}, {transform_indices = @transform_5, window_bounds = array<i64: 1, 1, 5, 128>}, {transform_indices = @transform_6, window_bounds = array<i64: 1, 1, 4, 128>}]} {
    %c0 = arith.constant 0 : index
    %c0_0 = arith.constant 0 : index
    %c0_1 = arith.constant 0 : index
    %c0_2 = arith.constant 0 : index
    %0 = vector.load %arg2[%c0, %c0_0, %c0_1, %c0_2] : memref<1x1x5x128xbf16, #tpu.memory_space<vmem>>, vector<1x1x4x128xbf16>
    %1 = vector.shape_cast %0 : vector<1x1x4x128xbf16> to vector<4x128xbf16>
    %c0_3 = arith.constant 0 : index
    %c0_4 = arith.constant 0 : index
    %c0_5 = arith.constant 0 : index
    %c0_6 = arith.constant 0 : index
    %2 = vector.load %arg3[%c0_3, %c0_4, %c0_5, %c0_6] : memref<1x1x5x128xbf16, #tpu.memory_space<vmem>>, vector<1x1x4x128xbf16>
    %3 = vector.shape_cast %2 : vector<1x1x4x128xbf16> to vector<4x128xbf16>
    %4 = arith.maximumf %1, %3 : vector<4x128xbf16>
    %c0_7 = arith.constant 0 : index
    %c0_8 = arith.constant 0 : index
    %c1 = arith.constant 1 : index
    %c0_9 = arith.constant 0 : index
    %5 = vector.load %arg2[%c0_7, %c0_8, %c1, %c0_9] : memref<1x1x5x128xbf16, #tpu.memory_space<vmem>>, vector<1x1x4x128xbf16>
    %6 = vector.shape_cast %5 : vector<1x1x4x128xbf16> to vector<4x128xbf16>
    %7 = arith.maximumf %4, %6 : vector<4x128xbf16>
    %c0_10 = arith.constant 0 : index
    %c0_11 = arith.constant 0 : index
    %c0_12 = arith.constant 0 : index
    %c0_13 = arith.constant 0 : index
    %8 = vector.load %arg4[%c0_10, %c0_11, %c0_12, %c0_13] : memref<1x1x5x128xbf16, #tpu.memory_space<vmem>>, vector<1x1x4x128xbf16>
    %9 = vector.shape_cast %8 : vector<1x1x4x128xbf16> to vector<4x128xbf16>
    %10 = arith.maximumf %7, %9 : vector<4x128xbf16>
    %c0_14 = arith.constant 0 : index
    %c0_15 = arith.constant 0 : index
    %c0_16 = arith.constant 0 : index
    %c0_17 = arith.constant 0 : index
    %11 = vector.load %arg5[%c0_14, %c0_15, %c0_16, %c0_17] : memref<1x1x5x128xbf16, #tpu.memory_space<vmem>>, vector<1x1x4x128xbf16>
    %12 = vector.shape_cast %11 : vector<1x1x4x128xbf16> to vector<4x128xbf16>
    %13 = arith.maximumf %10, %12 : vector<4x128xbf16>
    %c0_18 = arith.constant 0 : index
    %c0_19 = arith.constant 0 : index
    %c1_20 = arith.constant 1 : index
    %c0_21 = arith.constant 0 : index
    %14 = vector.load %arg4[%c0_18, %c0_19, %c1_20, %c0_21] : memref<1x1x5x128xbf16, #tpu.memory_space<vmem>>, vector<1x1x4x128xbf16>
    %15 = vector.shape_cast %14 : vector<1x1x4x128xbf16> to vector<4x128xbf16>
    %16 = arith.maximumf %13, %15 : vector<4x128xbf16>
    %c0_22 = arith.constant 0 : index
    %c0_23 = arith.constant 0 : index
    %c0_24 = arith.constant 0 : index
    %c0_25 = arith.constant 0 : index
    %17 = vector.load %arg6[%c0_22, %c0_23, %c0_24, %c0_25] : memref<1x1x5x128xbf16, #tpu.memory_space<vmem>>, vector<1x1x4x128xbf16>
    %18 = vector.shape_cast %17 : vector<1x1x4x128xbf16> to vector<4x128xbf16>
    %19 = arith.maximumf %16, %18 : vector<4x128xbf16>
    %c0_26 = arith.constant 0 : index
    %c0_27 = arith.constant 0 : index
    %c0_28 = arith.constant 0 : index
    %c0_29 = arith.constant 0 : index
    %20 = vector.load %arg7[%c0_26, %c0_27, %c0_28, %c0_29] : memref<1x1x5x128xbf16, #tpu.memory_space<vmem>>, vector<1x1x4x128xbf16>
    %21 = vector.shape_cast %20 : vector<1x1x4x128xbf16> to vector<4x128xbf16>
    %22 = arith.maximumf %19, %21 : vector<4x128xbf16>
    %c0_30 = arith.constant 0 : index
    %c0_31 = arith.constant 0 : index
    %c1_32 = arith.constant 1 : index
    %c0_33 = arith.constant 0 : index
    %23 = vector.load %arg6[%c0_30, %c0_31, %c1_32, %c0_33] : memref<1x1x5x128xbf16, #tpu.memory_space<vmem>>, vector<1x1x4x128xbf16>
    %24 = vector.shape_cast %23 : vector<1x1x4x128xbf16> to vector<4x128xbf16>
    %25 = arith.maximumf %22, %24 : vector<4x128xbf16>
    %c0_34 = arith.constant 0 : index
    %c0_35 = arith.constant 0 : index
    %c0_36 = arith.constant 0 : index
    %c0_37 = arith.constant 0 : index
    %26 = vector.load %arg8[%c0_34, %c0_35, %c0_36, %c0_37] : memref<1x1x4x128xbf16, #tpu.memory_space<vmem>>, vector<1x1x4x128xbf16>
    %27 = vector.shape_cast %26 : vector<1x1x4x128xbf16> to vector<4x128xbf16>
    %28 = vector.shape_cast %25 : vector<4x128xbf16> to vector<1x1x4x128xbf16>
    tpu.vector_store %arg8[%c0_34, %c0_35, %c0_36, %c0_37], %28 {strides = array<i32>} : memref<1x1x4x128xbf16, #tpu.memory_space<vmem>>, vector<1x1x4x128xbf16>,
    return
  }
  func.func @transform_0(%arg0: i32, %arg1: i32) -> (i32, i32, i32, i32) {
    %c2_i32 = arith.constant 2 : i32
    %0 = arith.muli %c2_i32, %arg1 : i32
    %c0_i32 = arith.constant 0 : i32
    %1 = arith.addi %0, %c0_i32 : i32
    %c0_i32_0 = arith.constant 0 : i32
    %c0_i32_1 = arith.constant 0 : i32
    %c0_i32_2 = arith.constant 0 : i32
    return %arg0, %1, %c0_i32_0, %c0_i32_1 : i32, i32, i32, i32
  }
  func.func @transform_1(%arg0: i32, %arg1: i32) -> (i32, i32, i32, i32) {
    %c2_i32 = arith.constant 2 : i32
    %0 = arith.muli %c2_i32, %arg1 : i32
    %c0_i32 = arith.constant 0 : i32
    %1 = arith.addi %0, %c0_i32 : i32
    %c0_i32_0 = arith.constant 0 : i32
    %c0_i32_1 = arith.constant 0 : i32
    %c0_i32_2 = arith.constant 0 : i32
    return %arg0, %1, %c0_i32_0, %c0_i32_1 : i32, i32, i32, i32
  }
  func.func @transform_2(%arg0: i32, %arg1: i32) -> (i32, i32, i32, i32) {
    %c2_i32 = arith.constant 2 : i32
    %0 = arith.muli %c2_i32, %arg1 : i32
    %c1_i32 = arith.constant 1 : i32
    %1 = arith.addi %0, %c1_i32 : i32
    %c0_i32 = arith.constant 0 : i32
    %c0_i32_0 = arith.constant 0 : i32
    %c0_i32_1 = arith.constant 0 : i32
    return %arg0, %1, %c0_i32, %c0_i32_0 : i32, i32, i32, i32
  }
  func.func @transform_3(%arg0: i32, %arg1: i32) -> (i32, i32, i32, i32) {
    %c2_i32 = arith.constant 2 : i32
    %0 = arith.muli %c2_i32, %arg1 : i32
    %c1_i32 = arith.constant 1 : i32
    %1 = arith.addi %0, %c1_i32 : i32
    %c0_i32 = arith.constant 0 : i32
    %c0_i32_0 = arith.constant 0 : i32
    %c0_i32_1 = arith.constant 0 : i32
    return %arg0, %1, %c0_i32, %c0_i32_0 : i32, i32, i32, i32
  }
  func.func @transform_4(%arg0: i32, %arg1: i32) -> (i32, i32, i32, i32) {
    %c2_i32 = arith.constant 2 : i32
    %0 = arith.muli %c2_i32, %arg1 : i32
    %c2_i32_0 = arith.constant 2 : i32
    %1 = arith.addi %0, %c2_i32_0 : i32
    %c0_i32 = arith.constant 0 : i32
    %c0_i32_1 = arith.constant 0 : i32
    %c0_i32_2 = arith.constant 0 : i32
    return %arg0, %1, %c0_i32, %c0_i32_1 : i32, i32, i32, i32
  }
  func.func @transform_5(%arg0: i32, %arg1: i32) -> (i32, i32, i32, i32) {
    %c2_i32 = arith.constant 2 : i32
    %0 = arith.muli %c2_i32, %arg1 : i32
    %c2_i32_0 = arith.constant 2 : i32
    %1 = arith.addi %0, %c2_i32_0 : i32
    %c0_i32 = arith.constant 0 : i32
    %c0_i32_1 = arith.constant 0 : i32
    %c0_i32_2 = arith.constant 0 : i32
    return %arg0, %1, %c0_i32, %c0_i32_1 : i32, i32, i32, i32
  }
  func.func @transform_6(%arg0: i32, %arg1: i32) -> (i32, i32, i32, i32) {
    %c0_i32 = arith.constant 0 : i32
    %c0_i32_0 = arith.constant 0 : i32
    %c0_i32_1 = arith.constant 0 : i32
    return %arg0, %arg1, %c0_i32, %c0_i32_0 : i32, i32, i32, i32
  }
}

module attributes {stable_mosaic.version = 11 : i64} {
  func.func @kernel(%arg0: i32, %arg1: i32, %arg2: memref<1x1x5x128xbf16, #tpu.memory_space<vmem>>, %arg3: memref<1x1x5x128xbf16, #tpu.memory_space<vmem>>, %arg4: memref<1x1x5x128xbf16, #tpu.memory_space<vmem>>, %arg5: memref<1x1x5x128xbf16, #tpu.memory_space<vmem>>, %arg6: memref<1x1x5x128xbf16, #tpu.memory_space<vmem>>, %arg7: memref<1x1x5x128xbf16, #tpu.memory_space<vmem>>, %arg8: memref<9x128x128xbf16, #tpu.memory_space<vmem>>, %arg9: memref<1x128xf32, #tpu.memory_space<vmem>>, %arg10: memref<1x128xf32, #tpu.memory_space<vmem>>, %arg11: memref<1x1x4x128xbf16, #tpu.memory_space<vmem>>) attributes {dimension_semantics = [#tpu.dimension_semantics<parallel>, #tpu.dimension_semantics<parallel>], iteration_bounds = array<i64: 2, 4>, scalar_prefetch = 0 : i64, scratch_operands = 0 : i64, tpu.core_type = #tpu.core_type<tc>, window_params = [{transform_indices = @transform_0, window_bounds = array<i64: 1, 1, 5, 128>}, {transform_indices = @transform_1, window_bounds = array<i64: 1, 1, 5, 128>}, {transform_indices = @transform_2, window_bounds = array<i64: 1, 1, 5, 128>}, {transform_indices = @transform_3, window_bounds = array<i64: 1, 1, 5, 128>}, {transform_indices = @transform_4, window_bounds = array<i64: 1, 1, 5, 128>}, {transform_indices = @transform_5, window_bounds = array<i64: 1, 1, 5, 128>}, {pipeline_mode = #tpu.pipeline_mode<synchronous>, transform_indices = @transform_6, window_bounds = array<i64: 9, 128, 128>}, {pipeline_mode = #tpu.pipeline_mode<synchronous>, transform_indices = @transform_7, window_bounds = array<i64: 1, 128>}, {pipeline_mode = #tpu.pipeline_mode<synchronous>, transform_indices = @transform_8, window_bounds = array<i64: 1, 128>}, {transform_indices = @transform_9, window_bounds = array<i64: 1, 1, 4, 128>}]} {
    %c0 = arith.constant 0 : index
    %c0_0 = arith.constant 0 : index
    %c0_1 = arith.constant 0 : index
    %c0_2 = arith.constant 0 : index
    %0 = vector.load %arg2[%c0, %c0_0, %c0_1, %c0_2] : memref<1x1x5x128xbf16, #tpu.memory_space<vmem>>, vector<1x1x4x128xbf16>
    %1 = vector.shape_cast %0 : vector<1x1x4x128xbf16> to vector<4x128xbf16>
    %c0_3 = arith.constant 0 : index
    %c0_4 = arith.constant 0 : index
    %c0_5 = arith.constant 0 : index
    %2 = vector.load %arg8[%c0_3, %c0_4, %c0_5] : memref<9x128x128xbf16, #tpu.memory_space<vmem>>, vector<1x128x128xbf16>
    %3 = vector.shape_cast %2 : vector<1x128x128xbf16> to vector<128x128xbf16>
    %cst = arith.constant dense<0.000000e+00> : vector<4x128xf32>
    %4 = tpu.matmul %1, %3, %cst {dimension_numbers = #tpu.dot_dimension_numbers<[1], [0], [0], [1], [0, 0, 1, 1], [], []>} : vector<4x128xbf16>, vector<128x128xbf16>, vector<4x128xf32> -> vector<4x128xf32>
    %c0_6 = arith.constant 0 : index
    %c0_7 = arith.constant 0 : index
    %c0_8 = arith.constant 0 : index
    %c0_9 = arith.constant 0 : index
    %5 = vector.load %arg3[%c0_6, %c0_7, %c0_8, %c0_9] : memref<1x1x5x128xbf16, #tpu.memory_space<vmem>>, vector<1x1x4x128xbf16>
    %6 = vector.shape_cast %5 : vector<1x1x4x128xbf16> to vector<4x128xbf16>
    %c1 = arith.constant 1 : index
    %c0_10 = arith.constant 0 : index
    %c0_11 = arith.constant 0 : index
    %7 = vector.load %arg8[%c1, %c0_10, %c0_11] : memref<9x128x128xbf16, #tpu.memory_space<vmem>>, vector<1x128x128xbf16>
    %8 = vector.shape_cast %7 : vector<1x128x128xbf16> to vector<128x128xbf16>
    %cst_12 = arith.constant dense<0.000000e+00> : vector<4x128xf32>
    %9 = tpu.matmul %6, %8, %cst_12 {dimension_numbers = #tpu.dot_dimension_numbers<[1], [0], [0], [1], [0, 0, 1, 1], [], []>} : vector<4x128xbf16>, vector<128x128xbf16>, vector<4x128xf32> -> vector<4x128xf32>
    %10 = arith.addf %4, %9 : vector<4x128xf32>
    %c0_13 = arith.constant 0 : index
    %c0_14 = arith.constant 0 : index
    %c1_15 = arith.constant 1 : index
    %c0_16 = arith.constant 0 : index
    %11 = vector.load %arg2[%c0_13, %c0_14, %c1_15, %c0_16] : memref<1x1x5x128xbf16, #tpu.memory_space<vmem>>, vector<1x1x4x128xbf16>
    %12 = vector.shape_cast %11 : vector<1x1x4x128xbf16> to vector<4x128xbf16>
    %c2 = arith.constant 2 : index
    %c0_17 = arith.constant 0 : index
    %c0_18 = arith.constant 0 : index
    %13 = vector.load %arg8[%c2, %c0_17, %c0_18] : memref<9x128x128xbf16, #tpu.memory_space<vmem>>, vector<1x128x128xbf16>
    %14 = vector.shape_cast %13 : vector<1x128x128xbf16> to vector<128x128xbf16>
    %cst_19 = arith.constant dense<0.000000e+00> : vector<4x128xf32>
    %15 = tpu.matmul %12, %14, %cst_19 {dimension_numbers = #tpu.dot_dimension_numbers<[1], [0], [0], [1], [0, 0, 1, 1], [], []>} : vector<4x128xbf16>, vector<128x128xbf16>, vector<4x128xf32> -> vector<4x128xf32>
    %16 = arith.addf %10, %15 : vector<4x128xf32>
    %c0_20 = arith.constant 0 : index
    %c0_21 = arith.constant 0 : index
    %c0_22 = arith.constant 0 : index
    %c0_23 = arith.constant 0 : index
    %17 = vector.load %arg4[%c0_20, %c0_21, %c0_22, %c0_23] : memref<1x1x5x128xbf16, #tpu.memory_space<vmem>>, vector<1x1x4x128xbf16>
    %18 = vector.shape_cast %17 : vector<1x1x4x128xbf16> to vector<4x128xbf16>
    %c3 = arith.constant 3 : index
    %c0_24 = arith.constant 0 : index
    %c0_25 = arith.constant 0 : index
    %19 = vector.load %arg8[%c3, %c0_24, %c0_25] : memref<9x128x128xbf16, #tpu.memory_space<vmem>>, vector<1x128x128xbf16>
    %20 = vector.shape_cast %19 : vector<1x128x128xbf16> to vector<128x128xbf16>
    %cst_26 = arith.constant dense<0.000000e+00> : vector<4x128xf32>
    %21 = tpu.matmul %18, %20, %cst_26 {dimension_numbers = #tpu.dot_dimension_numbers<[1], [0], [0], [1], [0, 0, 1, 1], [], []>} : vector<4x128xbf16>, vector<128x128xbf16>, vector<4x128xf32> -> vector<4x128xf32>
    %22 = arith.addf %16, %21 : vector<4x128xf32>
    %c0_27 = arith.constant 0 : index
    %c0_28 = arith.constant 0 : index
    %c0_29 = arith.constant 0 : index
    %c0_30 = arith.constant 0 : index
    %23 = vector.load %arg5[%c0_27, %c0_28, %c0_29, %c0_30] : memref<1x1x5x128xbf16, #tpu.memory_space<vmem>>, vector<1x1x4x128xbf16>
    %24 = vector.shape_cast %23 : vector<1x1x4x128xbf16> to vector<4x128xbf16>
    %c4 = arith.constant 4 : index
    %c0_31 = arith.constant 0 : index
    %c0_32 = arith.constant 0 : index
    %25 = vector.load %arg8[%c4, %c0_31, %c0_32] : memref<9x128x128xbf16, #tpu.memory_space<vmem>>, vector<1x128x128xbf16>
    %26 = vector.shape_cast %25 : vector<1x128x128xbf16> to vector<128x128xbf16>
    %cst_33 = arith.constant dense<0.000000e+00> : vector<4x128xf32>
    %27 = tpu.matmul %24, %26, %cst_33 {dimension_numbers = #tpu.dot_dimension_numbers<[1], [0], [0], [1], [0, 0, 1, 1], [], []>} : vector<4x128xbf16>, vector<128x128xbf16>, vector<4x128xf32> -> vector<4x128xf32>
    %28 = arith.addf %22, %27 : vector<4x128xf32>
    %c0_34 = arith.constant 0 : index
    %c0_35 = arith.constant 0 : index
    %c1_36 = arith.constant 1 : index
    %c0_37 = arith.constant 0 : index
    %29 = vector.load %arg4[%c0_34, %c0_35, %c1_36, %c0_37] : memref<1x1x5x128xbf16, #tpu.memory_space<vmem>>, vector<1x1x4x128xbf16>
    %30 = vector.shape_cast %29 : vector<1x1x4x128xbf16> to vector<4x128xbf16>
    %c5 = arith.constant 5 : index
    %c0_38 = arith.constant 0 : index
    %c0_39 = arith.constant 0 : index
    %31 = vector.load %arg8[%c5, %c0_38, %c0_39] : memref<9x128x128xbf16, #tpu.memory_space<vmem>>, vector<1x128x128xbf16>
    %32 = vector.shape_cast %31 : vector<1x128x128xbf16> to vector<128x128xbf16>
    %cst_40 = arith.constant dense<0.000000e+00> : vector<4x128xf32>
    %33 = tpu.matmul %30, %32, %cst_40 {dimension_numbers = #tpu.dot_dimension_numbers<[1], [0], [0], [1], [0, 0, 1, 1], [], []>} : vector<4x128xbf16>, vector<128x128xbf16>, vector<4x128xf32> -> vector<4x128xf32>
    %34 = arith.addf %28, %33 : vector<4x128xf32>
    %c0_41 = arith.constant 0 : index
    %c0_42 = arith.constant 0 : index
    %c0_43 = arith.constant 0 : index
    %c0_44 = arith.constant 0 : index
    %35 = vector.load %arg6[%c0_41, %c0_42, %c0_43, %c0_44] : memref<1x1x5x128xbf16, #tpu.memory_space<vmem>>, vector<1x1x4x128xbf16>
    %36 = vector.shape_cast %35 : vector<1x1x4x128xbf16> to vector<4x128xbf16>
    %c6 = arith.constant 6 : index
    %c0_45 = arith.constant 0 : index
    %c0_46 = arith.constant 0 : index
    %37 = vector.load %arg8[%c6, %c0_45, %c0_46] : memref<9x128x128xbf16, #tpu.memory_space<vmem>>, vector<1x128x128xbf16>
    %38 = vector.shape_cast %37 : vector<1x128x128xbf16> to vector<128x128xbf16>
    %cst_47 = arith.constant dense<0.000000e+00> : vector<4x128xf32>
    %39 = tpu.matmul %36, %38, %cst_47 {dimension_numbers = #tpu.dot_dimension_numbers<[1], [0], [0], [1], [0, 0, 1, 1], [], []>} : vector<4x128xbf16>, vector<128x128xbf16>, vector<4x128xf32> -> vector<4x128xf32>
    %40 = arith.addf %34, %39 : vector<4x128xf32>
    %c0_48 = arith.constant 0 : index
    %c0_49 = arith.constant 0 : index
    %c0_50 = arith.constant 0 : index
    %c0_51 = arith.constant 0 : index
    %41 = vector.load %arg7[%c0_48, %c0_49, %c0_50, %c0_51] : memref<1x1x5x128xbf16, #tpu.memory_space<vmem>>, vector<1x1x4x128xbf16>
    %42 = vector.shape_cast %41 : vector<1x1x4x128xbf16> to vector<4x128xbf16>
    %c7 = arith.constant 7 : index
    %c0_52 = arith.constant 0 : index
    %c0_53 = arith.constant 0 : index
    %43 = vector.load %arg8[%c7, %c0_52, %c0_53] : memref<9x128x128xbf16, #tpu.memory_space<vmem>>, vector<1x128x128xbf16>
    %44 = vector.shape_cast %43 : vector<1x128x128xbf16> to vector<128x128xbf16>
    %cst_54 = arith.constant dense<0.000000e+00> : vector<4x128xf32>
    %45 = tpu.matmul %42, %44, %cst_54 {dimension_numbers = #tpu.dot_dimension_numbers<[1], [0], [0], [1], [0, 0, 1, 1], [], []>} : vector<4x128xbf16>, vector<128x128xbf16>, vector<4x128xf32> -> vector<4x128xf32>
    %46 = arith.addf %40, %45 : vector<4x128xf32>
    %c0_55 = arith.constant 0 : index
    %c0_56 = arith.constant 0 : index
    %c1_57 = arith.constant 1 : index
    %c0_58 = arith.constant 0 : index
    %47 = vector.load %arg6[%c0_55, %c0_56, %c1_57, %c0_58] : memref<1x1x5x128xbf16, #tpu.memory_space<vmem>>, vector<1x1x4x128xbf16>
    %48 = vector.shape_cast %47 : vector<1x1x4x128xbf16> to vector<4x128xbf16>
    %c8 = arith.constant 8 : index
    %c0_59 = arith.constant 0 : index
    %c0_60 = arith.constant 0 : index
    %49 = vector.load %arg8[%c8, %c0_59, %c0_60] : memref<9x128x128xbf16, #tpu.memory_space<vmem>>, vector<1x128x128xbf16>
    %50 = vector.shape_cast %49 : vector<1x128x128xbf16> to vector<128x128xbf16>
    %cst_61 = arith.constant dense<0.000000e+00> : vector<4x128xf32>
    %51 = tpu.matmul %48, %50, %cst_61 {dimension_numbers = #tpu.dot_dimension_numbers<[1], [0], [0], [1], [0, 0, 1, 1], [], []>} : vector<4x128xbf16>, vector<128x128xbf16>, vector<4x128xf32> -> vector<4x128xf32>
    %52 = arith.addf %46, %51 : vector<4x128xf32>
    %c0_62 = arith.constant 0 : index
    %c0_63 = arith.constant 0 : index
    %53 = vector.load %arg9[%c0_62, %c0_63] : memref<1x128xf32, #tpu.memory_space<vmem>>, vector<1x128xf32>
    %54 = vector.broadcast %53 : vector<1x128xf32> to vector<4x128xf32>
    %55 = arith.mulf %52, %54 : vector<4x128xf32>
    %c0_64 = arith.constant 0 : index
    %c0_65 = arith.constant 0 : index
    %56 = vector.load %arg10[%c0_64, %c0_65] : memref<1x128xf32, #tpu.memory_space<vmem>>, vector<1x128xf32>
    %57 = vector.broadcast %56 : vector<1x128xf32> to vector<4x128xf32>
    %58 = arith.addf %55, %57 : vector<4x128xf32>
    %cst_66 = arith.constant 0.000000e+00 : f32
    %59 = vector.broadcast %cst_66 : f32 to vector<4x128xf32>
    %60 = arith.maximumf %58, %59 : vector<4x128xf32>
    %61 = arith.truncf %60 : vector<4x128xf32> to vector<4x128xbf16>
    %c0_67 = arith.constant 0 : index
    %c0_68 = arith.constant 0 : index
    %c0_69 = arith.constant 0 : index
    %c0_70 = arith.constant 0 : index
    %62 = vector.load %arg11[%c0_67, %c0_68, %c0_69, %c0_70] : memref<1x1x4x128xbf16, #tpu.memory_space<vmem>>, vector<1x1x4x128xbf16>
    %63 = vector.shape_cast %62 : vector<1x1x4x128xbf16> to vector<4x128xbf16>
    %64 = vector.shape_cast %61 : vector<4x128xbf16> to vector<1x1x4x128xbf16>
    tpu.vector_store %arg11[%c0_67, %c0_68, %c0_69, %c0_70], %64 {strides = array<i32>} : memref<1x1x4x128xbf16, #tpu.memory_space<vmem>>, vector<1x1x4x128xbf16>,
    return
  }
  func.func @transform_0(%arg0: i32, %arg1: i32) -> (i32, i32, i32, i32) {
    %c2_i32 = arith.constant 2 : i32
    %0 = arith.muli %c2_i32, %arg1 : i32
    %c0_i32 = arith.constant 0 : i32
    %1 = arith.addi %0, %c0_i32 : i32
    %c0_i32_0 = arith.constant 0 : i32
    %c0_i32_1 = arith.constant 0 : i32
    %c0_i32_2 = arith.constant 0 : i32
    return %arg0, %1, %c0_i32_0, %c0_i32_1 : i32, i32, i32, i32
  }
  func.func @transform_1(%arg0: i32, %arg1: i32) -> (i32, i32, i32, i32) {
    %c2_i32 = arith.constant 2 : i32
    %0 = arith.muli %c2_i32, %arg1 : i32
    %c0_i32 = arith.constant 0 : i32
    %1 = arith.addi %0, %c0_i32 : i32
    %c0_i32_0 = arith.constant 0 : i32
    %c0_i32_1 = arith.constant 0 : i32
    %c0_i32_2 = arith.constant 0 : i32
    return %arg0, %1, %c0_i32_0, %c0_i32_1 : i32, i32, i32, i32
  }
  func.func @transform_2(%arg0: i32, %arg1: i32) -> (i32, i32, i32, i32) {
    %c2_i32 = arith.constant 2 : i32
    %0 = arith.muli %c2_i32, %arg1 : i32
    %c1_i32 = arith.constant 1 : i32
    %1 = arith.addi %0, %c1_i32 : i32
    %c0_i32 = arith.constant 0 : i32
    %c0_i32_0 = arith.constant 0 : i32
    %c0_i32_1 = arith.constant 0 : i32
    return %arg0, %1, %c0_i32, %c0_i32_0 : i32, i32, i32, i32
  }
  func.func @transform_3(%arg0: i32, %arg1: i32) -> (i32, i32, i32, i32) {
    %c2_i32 = arith.constant 2 : i32
    %0 = arith.muli %c2_i32, %arg1 : i32
    %c1_i32 = arith.constant 1 : i32
    %1 = arith.addi %0, %c1_i32 : i32
    %c0_i32 = arith.constant 0 : i32
    %c0_i32_0 = arith.constant 0 : i32
    %c0_i32_1 = arith.constant 0 : i32
    return %arg0, %1, %c0_i32, %c0_i32_0 : i32, i32, i32, i32
  }
  func.func @transform_4(%arg0: i32, %arg1: i32) -> (i32, i32, i32, i32) {
    %c2_i32 = arith.constant 2 : i32
    %0 = arith.muli %c2_i32, %arg1 : i32
    %c2_i32_0 = arith.constant 2 : i32
    %1 = arith.addi %0, %c2_i32_0 : i32
    %c0_i32 = arith.constant 0 : i32
    %c0_i32_1 = arith.constant 0 : i32
    %c0_i32_2 = arith.constant 0 : i32
    return %arg0, %1, %c0_i32, %c0_i32_1 : i32, i32, i32, i32
  }
  func.func @transform_5(%arg0: i32, %arg1: i32) -> (i32, i32, i32, i32) {
    %c2_i32 = arith.constant 2 : i32
    %0 = arith.muli %c2_i32, %arg1 : i32
    %c2_i32_0 = arith.constant 2 : i32
    %1 = arith.addi %0, %c2_i32_0 : i32
    %c0_i32 = arith.constant 0 : i32
    %c0_i32_1 = arith.constant 0 : i32
    %c0_i32_2 = arith.constant 0 : i32
    return %arg0, %1, %c0_i32, %c0_i32_1 : i32, i32, i32, i32
  }
  func.func @transform_6(%arg0: i32, %arg1: i32) -> (i32, i32, i32) {
    %c0_i32 = arith.constant 0 : i32
    %c0_i32_0 = arith.constant 0 : i32
    %c0_i32_1 = arith.constant 0 : i32
    %c0_i32_2 = arith.constant 0 : i32
    return %c0_i32, %c0_i32_0, %c0_i32_1 : i32, i32, i32
  }
  func.func @transform_7(%arg0: i32, %arg1: i32) -> (i32, i32) {
    %c0_i32 = arith.constant 0 : i32
    %c0_i32_0 = arith.constant 0 : i32
    %c0_i32_1 = arith.constant 0 : i32
    return %c0_i32, %c0_i32_0 : i32, i32
  }
  func.func @transform_8(%arg0: i32, %arg1: i32) -> (i32, i32) {
    %c0_i32 = arith.constant 0 : i32
    %c0_i32_0 = arith.constant 0 : i32
    %c0_i32_1 = arith.constant 0 : i32
    return %c0_i32, %c0_i32_0 : i32, i32
  }
  func.func @transform_9(%arg0: i32, %arg1: i32) -> (i32, i32, i32, i32) {
    %c0_i32 = arith.constant 0 : i32
    %c0_i32_0 = arith.constant 0 : i32
    %c0_i32_1 = arith.constant 0 : i32
    return %arg0, %arg1, %c0_i32, %c0_i32_0 : i32, i32, i32, i32
  }
}

module attributes {stable_mosaic.version = 11 : i64} {
  func.func @kernel(%arg0: i32, %arg1: i32, %arg2: memref<1x1x6x128xbf16, #tpu.memory_space<vmem>>, %arg3: memref<1x1x6x128xbf16, #tpu.memory_space<vmem>>, %arg4: memref<1x1x6x128xbf16, #tpu.memory_space<vmem>>, %arg5: memref<1x1x6x128xbf16, #tpu.memory_space<vmem>>, %arg6: memref<1x1x6x128xbf16, #tpu.memory_space<vmem>>, %arg7: memref<1x1x6x128xbf16, #tpu.memory_space<vmem>>, %arg8: memref<9x128x128xbf16, #tpu.memory_space<vmem>>, %arg9: memref<9x128x128xbf16, #tpu.memory_space<vmem>>, %arg10: memref<1x128xf32, #tpu.memory_space<vmem>>, %arg11: memref<1x128xf32, #tpu.memory_space<vmem>>, %arg12: memref<1x1x4x128xbf16, #tpu.memory_space<vmem>>) attributes {dimension_semantics = [#tpu.dimension_semantics<parallel>, #tpu.dimension_semantics<parallel>], iteration_bounds = array<i64: 2, 4>, scalar_prefetch = 0 : i64, scratch_operands = 0 : i64, tpu.core_type = #tpu.core_type<tc>, window_params = [{transform_indices = @transform_0, window_bounds = array<i64: 1, 1, 6, 128>}, {transform_indices = @transform_1, window_bounds = array<i64: 1, 1, 6, 128>}, {transform_indices = @transform_2, window_bounds = array<i64: 1, 1, 6, 128>}, {transform_indices = @transform_3, window_bounds = array<i64: 1, 1, 6, 128>}, {transform_indices = @transform_4, window_bounds = array<i64: 1, 1, 6, 128>}, {transform_indices = @transform_5, window_bounds = array<i64: 1, 1, 6, 128>}, {pipeline_mode = #tpu.pipeline_mode<synchronous>, transform_indices = @transform_6, window_bounds = array<i64: 9, 128, 128>}, {pipeline_mode = #tpu.pipeline_mode<synchronous>, transform_indices = @transform_7, window_bounds = array<i64: 9, 128, 128>}, {pipeline_mode = #tpu.pipeline_mode<synchronous>, transform_indices = @transform_8, window_bounds = array<i64: 1, 128>}, {pipeline_mode = #tpu.pipeline_mode<synchronous>, transform_indices = @transform_9, window_bounds = array<i64: 1, 128>}, {transform_indices = @transform_10, window_bounds = array<i64: 1, 1, 4, 128>}]} {
    %c0 = arith.constant 0 : index
    %c0_0 = arith.constant 0 : index
    %c0_1 = arith.constant 0 : index
    %c0_2 = arith.constant 0 : index
    %0 = vector.load %arg2[%c0, %c0_0, %c0_1, %c0_2] : memref<1x1x6x128xbf16, #tpu.memory_space<vmem>>, vector<1x1x4x128xbf16>
    %1 = vector.shape_cast %0 : vector<1x1x4x128xbf16> to vector<4x128xbf16>
    %c0_3 = arith.constant 0 : index
    %c0_4 = arith.constant 0 : index
    %c0_5 = arith.constant 0 : index
    %2 = vector.load %arg8[%c0_3, %c0_4, %c0_5] : memref<9x128x128xbf16, #tpu.memory_space<vmem>>, vector<1x128x128xbf16>
    %3 = vector.shape_cast %2 : vector<1x128x128xbf16> to vector<128x128xbf16>
    %cst = arith.constant dense<0.000000e+00> : vector<4x128xf32>
    %4 = tpu.matmul %1, %3, %cst {dimension_numbers = #tpu.dot_dimension_numbers<[1], [0], [0], [1], [0, 0, 1, 1], [], []>} : vector<4x128xbf16>, vector<128x128xbf16>, vector<4x128xf32> -> vector<4x128xf32>
    %c0_6 = arith.constant 0 : index
    %c0_7 = arith.constant 0 : index
    %c1 = arith.constant 1 : index
    %c0_8 = arith.constant 0 : index
    %5 = vector.load %arg2[%c0_6, %c0_7, %c1, %c0_8] : memref<1x1x6x128xbf16, #tpu.memory_space<vmem>>, vector<1x1x4x128xbf16>
    %6 = vector.shape_cast %5 : vector<1x1x4x128xbf16> to vector<4x128xbf16>
    %c1_9 = arith.constant 1 : index
    %c0_10 = arith.constant 0 : index
    %c0_11 = arith.constant 0 : index
    %7 = vector.load %arg8[%c1_9, %c0_10, %c0_11] : memref<9x128x128xbf16, #tpu.memory_space<vmem>>, vector<1x128x128xbf16>
    %8 = vector.shape_cast %7 : vector<1x128x128xbf16> to vector<128x128xbf16>
    %cst_12 = arith.constant dense<0.000000e+00> : vector<4x128xf32>
    %9 = tpu.matmul %6, %8, %cst_12 {dimension_numbers = #tpu.dot_dimension_numbers<[1], [0], [0], [1], [0, 0, 1, 1], [], []>} : vector<4x128xbf16>, vector<128x128xbf16>, vector<4x128xf32> -> vector<4x128xf32>
    %10 = arith.addf %4, %9 : vector<4x128xf32>
    %c0_13 = arith.constant 0 : index
    %c0_14 = arith.constant 0 : index
    %c2 = arith.constant 2 : index
    %c0_15 = arith.constant 0 : index
    %11 = vector.load %arg2[%c0_13, %c0_14, %c2, %c0_15] : memref<1x1x6x128xbf16, #tpu.memory_space<vmem>>, vector<1x1x4x128xbf16>
    %12 = vector.shape_cast %11 : vector<1x1x4x128xbf16> to vector<4x128xbf16>
    %c2_16 = arith.constant 2 : index
    %c0_17 = arith.constant 0 : index
    %c0_18 = arith.constant 0 : index
    %13 = vector.load %arg8[%c2_16, %c0_17, %c0_18] : memref<9x128x128xbf16, #tpu.memory_space<vmem>>, vector<1x128x128xbf16>
    %14 = vector.shape_cast %13 : vector<1x128x128xbf16> to vector<128x128xbf16>
    %cst_19 = arith.constant dense<0.000000e+00> : vector<4x128xf32>
    %15 = tpu.matmul %12, %14, %cst_19 {dimension_numbers = #tpu.dot_dimension_numbers<[1], [0], [0], [1], [0, 0, 1, 1], [], []>} : vector<4x128xbf16>, vector<128x128xbf16>, vector<4x128xf32> -> vector<4x128xf32>
    %16 = arith.addf %10, %15 : vector<4x128xf32>
    %c0_20 = arith.constant 0 : index
    %c0_21 = arith.constant 0 : index
    %c0_22 = arith.constant 0 : index
    %c0_23 = arith.constant 0 : index
    %17 = vector.load %arg3[%c0_20, %c0_21, %c0_22, %c0_23] : memref<1x1x6x128xbf16, #tpu.memory_space<vmem>>, vector<1x1x4x128xbf16>
    %18 = vector.shape_cast %17 : vector<1x1x4x128xbf16> to vector<4x128xbf16>
    %c3 = arith.constant 3 : index
    %c0_24 = arith.constant 0 : index
    %c0_25 = arith.constant 0 : index
    %19 = vector.load %arg8[%c3, %c0_24, %c0_25] : memref<9x128x128xbf16, #tpu.memory_space<vmem>>, vector<1x128x128xbf16>
    %20 = vector.shape_cast %19 : vector<1x128x128xbf16> to vector<128x128xbf16>
    %cst_26 = arith.constant dense<0.000000e+00> : vector<4x128xf32>
    %21 = tpu.matmul %18, %20, %cst_26 {dimension_numbers = #tpu.dot_dimension_numbers<[1], [0], [0], [1], [0, 0, 1, 1], [], []>} : vector<4x128xbf16>, vector<128x128xbf16>, vector<4x128xf32> -> vector<4x128xf32>
    %22 = arith.addf %16, %21 : vector<4x128xf32>
    %c0_27 = arith.constant 0 : index
    %c0_28 = arith.constant 0 : index
    %c1_29 = arith.constant 1 : index
    %c0_30 = arith.constant 0 : index
    %23 = vector.load %arg3[%c0_27, %c0_28, %c1_29, %c0_30] : memref<1x1x6x128xbf16, #tpu.memory_space<vmem>>, vector<1x1x4x128xbf16>
    %24 = vector.shape_cast %23 : vector<1x1x4x128xbf16> to vector<4x128xbf16>
    %c4 = arith.constant 4 : index
    %c0_31 = arith.constant 0 : index
    %c0_32 = arith.constant 0 : index
    %25 = vector.load %arg8[%c4, %c0_31, %c0_32] : memref<9x128x128xbf16, #tpu.memory_space<vmem>>, vector<1x128x128xbf16>
    %26 = vector.shape_cast %25 : vector<1x128x128xbf16> to vector<128x128xbf16>
    %cst_33 = arith.constant dense<0.000000e+00> : vector<4x128xf32>
    %27 = tpu.matmul %24, %26, %cst_33 {dimension_numbers = #tpu.dot_dimension_numbers<[1], [0], [0], [1], [0, 0, 1, 1], [], []>} : vector<4x128xbf16>, vector<128x128xbf16>, vector<4x128xf32> -> vector<4x128xf32>
    %28 = arith.addf %22, %27 : vector<4x128xf32>
    %c0_34 = arith.constant 0 : index
    %c0_35 = arith.constant 0 : index
    %c2_36 = arith.constant 2 : index
    %c0_37 = arith.constant 0 : index
    %29 = vector.load %arg3[%c0_34, %c0_35, %c2_36, %c0_37] : memref<1x1x6x128xbf16, #tpu.memory_space<vmem>>, vector<1x1x4x128xbf16>
    %30 = vector.shape_cast %29 : vector<1x1x4x128xbf16> to vector<4x128xbf16>
    %c5 = arith.constant 5 : index
    %c0_38 = arith.constant 0 : index
    %c0_39 = arith.constant 0 : index
    %31 = vector.load %arg8[%c5, %c0_38, %c0_39] : memref<9x128x128xbf16, #tpu.memory_space<vmem>>, vector<1x128x128xbf16>
    %32 = vector.shape_cast %31 : vector<1x128x128xbf16> to vector<128x128xbf16>
    %cst_40 = arith.constant dense<0.000000e+00> : vector<4x128xf32>
    %33 = tpu.matmul %30, %32, %cst_40 {dimension_numbers = #tpu.dot_dimension_numbers<[1], [0], [0], [1], [0, 0, 1, 1], [], []>} : vector<4x128xbf16>, vector<128x128xbf16>, vector<4x128xf32> -> vector<4x128xf32>
    %34 = arith.addf %28, %33 : vector<4x128xf32>
    %c0_41 = arith.constant 0 : index
    %c0_42 = arith.constant 0 : index
    %c0_43 = arith.constant 0 : index
    %c0_44 = arith.constant 0 : index
    %35 = vector.load %arg4[%c0_41, %c0_42, %c0_43, %c0_44] : memref<1x1x6x128xbf16, #tpu.memory_space<vmem>>, vector<1x1x4x128xbf16>
    %36 = vector.shape_cast %35 : vector<1x1x4x128xbf16> to vector<4x128xbf16>
    %c6 = arith.constant 6 : index
    %c0_45 = arith.constant 0 : index
    %c0_46 = arith.constant 0 : index
    %37 = vector.load %arg8[%c6, %c0_45, %c0_46] : memref<9x128x128xbf16, #tpu.memory_space<vmem>>, vector<1x128x128xbf16>
    %38 = vector.shape_cast %37 : vector<1x128x128xbf16> to vector<128x128xbf16>
    %cst_47 = arith.constant dense<0.000000e+00> : vector<4x128xf32>
    %39 = tpu.matmul %36, %38, %cst_47 {dimension_numbers = #tpu.dot_dimension_numbers<[1], [0], [0], [1], [0, 0, 1, 1], [], []>} : vector<4x128xbf16>, vector<128x128xbf16>, vector<4x128xf32> -> vector<4x128xf32>
    %40 = arith.addf %34, %39 : vector<4x128xf32>
    %c0_48 = arith.constant 0 : index
    %c0_49 = arith.constant 0 : index
    %c1_50 = arith.constant 1 : index
    %c0_51 = arith.constant 0 : index
    %41 = vector.load %arg4[%c0_48, %c0_49, %c1_50, %c0_51] : memref<1x1x6x128xbf16, #tpu.memory_space<vmem>>, vector<1x1x4x128xbf16>
    %42 = vector.shape_cast %41 : vector<1x1x4x128xbf16> to vector<4x128xbf16>
    %c7 = arith.constant 7 : index
    %c0_52 = arith.constant 0 : index
    %c0_53 = arith.constant 0 : index
    %43 = vector.load %arg8[%c7, %c0_52, %c0_53] : memref<9x128x128xbf16, #tpu.memory_space<vmem>>, vector<1x128x128xbf16>
    %44 = vector.shape_cast %43 : vector<1x128x128xbf16> to vector<128x128xbf16>
    %cst_54 = arith.constant dense<0.000000e+00> : vector<4x128xf32>
    %45 = tpu.matmul %42, %44, %cst_54 {dimension_numbers = #tpu.dot_dimension_numbers<[1], [0], [0], [1], [0, 0, 1, 1], [], []>} : vector<4x128xbf16>, vector<128x128xbf16>, vector<4x128xf32> -> vector<4x128xf32>
    %46 = arith.addf %40, %45 : vector<4x128xf32>
    %c0_55 = arith.constant 0 : index
    %c0_56 = arith.constant 0 : index
    %c2_57 = arith.constant 2 : index
    %c0_58 = arith.constant 0 : index
    %47 = vector.load %arg4[%c0_55, %c0_56, %c2_57, %c0_58] : memref<1x1x6x128xbf16, #tpu.memory_space<vmem>>, vector<1x1x4x128xbf16>
    %48 = vector.shape_cast %47 : vector<1x1x4x128xbf16> to vector<4x128xbf16>
    %c8 = arith.constant 8 : index
    %c0_59 = arith.constant 0 : index
    %c0_60 = arith.constant 0 : index
    %49 = vector.load %arg8[%c8, %c0_59, %c0_60] : memref<9x128x128xbf16, #tpu.memory_space<vmem>>, vector<1x128x128xbf16>
    %50 = vector.shape_cast %49 : vector<1x128x128xbf16> to vector<128x128xbf16>
    %cst_61 = arith.constant dense<0.000000e+00> : vector<4x128xf32>
    %51 = tpu.matmul %48, %50, %cst_61 {dimension_numbers = #tpu.dot_dimension_numbers<[1], [0], [0], [1], [0, 0, 1, 1], [], []>} : vector<4x128xbf16>, vector<128x128xbf16>, vector<4x128xf32> -> vector<4x128xf32>
    %52 = arith.addf %46, %51 : vector<4x128xf32>
    %c0_62 = arith.constant 0 : index
    %c0_63 = arith.constant 0 : index
    %c0_64 = arith.constant 0 : index
    %c0_65 = arith.constant 0 : index
    %53 = vector.load %arg5[%c0_62, %c0_63, %c0_64, %c0_65] : memref<1x1x6x128xbf16, #tpu.memory_space<vmem>>, vector<1x1x4x128xbf16>
    %54 = vector.shape_cast %53 : vector<1x1x4x128xbf16> to vector<4x128xbf16>
    %c0_66 = arith.constant 0 : index
    %c0_67 = arith.constant 0 : index
    %c0_68 = arith.constant 0 : index
    %55 = vector.load %arg9[%c0_66, %c0_67, %c0_68] : memref<9x128x128xbf16, #tpu.memory_space<vmem>>, vector<1x128x128xbf16>
    %56 = vector.shape_cast %55 : vector<1x128x128xbf16> to vector<128x128xbf16>
    %cst_69 = arith.constant dense<0.000000e+00> : vector<4x128xf32>
    %57 = tpu.matmul %54, %56, %cst_69 {dimension_numbers = #tpu.dot_dimension_numbers<[1], [0], [0], [1], [0, 0, 1, 1], [], []>} : vector<4x128xbf16>, vector<128x128xbf16>, vector<4x128xf32> -> vector<4x128xf32>
    %58 = arith.addf %52, %57 : vector<4x128xf32>
    %c0_70 = arith.constant 0 : index
    %c0_71 = arith.constant 0 : index
    %c1_72 = arith.constant 1 : index
    %c0_73 = arith.constant 0 : index
    %59 = vector.load %arg5[%c0_70, %c0_71, %c1_72, %c0_73] : memref<1x1x6x128xbf16, #tpu.memory_space<vmem>>, vector<1x1x4x128xbf16>
    %60 = vector.shape_cast %59 : vector<1x1x4x128xbf16> to vector<4x128xbf16>
    %c1_74 = arith.constant 1 : index
    %c0_75 = arith.constant 0 : index
    %c0_76 = arith.constant 0 : index
    %61 = vector.load %arg9[%c1_74, %c0_75, %c0_76] : memref<9x128x128xbf16, #tpu.memory_space<vmem>>, vector<1x128x128xbf16>
    %62 = vector.shape_cast %61 : vector<1x128x128xbf16> to vector<128x128xbf16>
    %cst_77 = arith.constant dense<0.000000e+00> : vector<4x128xf32>
    %63 = tpu.matmul %60, %62, %cst_77 {dimension_numbers = #tpu.dot_dimension_numbers<[1], [0], [0], [1], [0, 0, 1, 1], [], []>} : vector<4x128xbf16>, vector<128x128xbf16>, vector<4x128xf32> -> vector<4x128xf32>
    %64 = arith.addf %58, %63 : vector<4x128xf32>
    %c0_78 = arith.constant 0 : index
    %c0_79 = arith.constant 0 : index
    %c2_80 = arith.constant 2 : index
    %c0_81 = arith.constant 0 : index
    %65 = vector.load %arg5[%c0_78, %c0_79, %c2_80, %c0_81] : memref<1x1x6x128xbf16, #tpu.memory_space<vmem>>, vector<1x1x4x128xbf16>
    %66 = vector.shape_cast %65 : vector<1x1x4x128xbf16> to vector<4x128xbf16>
    %c2_82 = arith.constant 2 : index
    %c0_83 = arith.constant 0 : index
    %c0_84 = arith.constant 0 : index
    %67 = vector.load %arg9[%c2_82, %c0_83, %c0_84] : memref<9x128x128xbf16, #tpu.memory_space<vmem>>, vector<1x128x128xbf16>
    %68 = vector.shape_cast %67 : vector<1x128x128xbf16> to vector<128x128xbf16>
    %cst_85 = arith.constant dense<0.000000e+00> : vector<4x128xf32>
    %69 = tpu.matmul %66, %68, %cst_85 {dimension_numbers = #tpu.dot_dimension_numbers<[1], [0], [0], [1], [0, 0, 1, 1], [], []>} : vector<4x128xbf16>, vector<128x128xbf16>, vector<4x128xf32> -> vector<4x128xf32>
    %70 = arith.addf %64, %69 : vector<4x128xf32>
    %c0_86 = arith.constant 0 : index
    %c0_87 = arith.constant 0 : index
    %c0_88 = arith.constant 0 : index
    %c0_89 = arith.constant 0 : index
    %71 = vector.load %arg6[%c0_86, %c0_87, %c0_88, %c0_89] : memref<1x1x6x128xbf16, #tpu.memory_space<vmem>>, vector<1x1x4x128xbf16>
    %72 = vector.shape_cast %71 : vector<1x1x4x128xbf16> to vector<4x128xbf16>
    %c3_90 = arith.constant 3 : index
    %c0_91 = arith.constant 0 : index
    %c0_92 = arith.constant 0 : index
    %73 = vector.load %arg9[%c3_90, %c0_91, %c0_92] : memref<9x128x128xbf16, #tpu.memory_space<vmem>>, vector<1x128x128xbf16>
    %74 = vector.shape_cast %73 : vector<1x128x128xbf16> to vector<128x128xbf16>
    %cst_93 = arith.constant dense<0.000000e+00> : vector<4x128xf32>
    %75 = tpu.matmul %72, %74, %cst_93 {dimension_numbers = #tpu.dot_dimension_numbers<[1], [0], [0], [1], [0, 0, 1, 1], [], []>} : vector<4x128xbf16>, vector<128x128xbf16>, vector<4x128xf32> -> vector<4x128xf32>
    %76 = arith.addf %70, %75 : vector<4x128xf32>
    %c0_94 = arith.constant 0 : index
    %c0_95 = arith.constant 0 : index
    %c1_96 = arith.constant 1 : index
    %c0_97 = arith.constant 0 : index
    %77 = vector.load %arg6[%c0_94, %c0_95, %c1_96, %c0_97] : memref<1x1x6x128xbf16, #tpu.memory_space<vmem>>, vector<1x1x4x128xbf16>
    %78 = vector.shape_cast %77 : vector<1x1x4x128xbf16> to vector<4x128xbf16>
    %c4_98 = arith.constant 4 : index
    %c0_99 = arith.constant 0 : index
    %c0_100 = arith.constant 0 : index
    %79 = vector.load %arg9[%c4_98, %c0_99, %c0_100] : memref<9x128x128xbf16, #tpu.memory_space<vmem>>, vector<1x128x128xbf16>
    %80 = vector.shape_cast %79 : vector<1x128x128xbf16> to vector<128x128xbf16>
    %cst_101 = arith.constant dense<0.000000e+00> : vector<4x128xf32>
    %81 = tpu.matmul %78, %80, %cst_101 {dimension_numbers = #tpu.dot_dimension_numbers<[1], [0], [0], [1], [0, 0, 1, 1], [], []>} : vector<4x128xbf16>, vector<128x128xbf16>, vector<4x128xf32> -> vector<4x128xf32>
    %82 = arith.addf %76, %81 : vector<4x128xf32>
    %c0_102 = arith.constant 0 : index
    %c0_103 = arith.constant 0 : index
    %c2_104 = arith.constant 2 : index
    %c0_105 = arith.constant 0 : index
    %83 = vector.load %arg6[%c0_102, %c0_103, %c2_104, %c0_105] : memref<1x1x6x128xbf16, #tpu.memory_space<vmem>>, vector<1x1x4x128xbf16>
    %84 = vector.shape_cast %83 : vector<1x1x4x128xbf16> to vector<4x128xbf16>
    %c5_106 = arith.constant 5 : index
    %c0_107 = arith.constant 0 : index
    %c0_108 = arith.constant 0 : index
    %85 = vector.load %arg9[%c5_106, %c0_107, %c0_108] : memref<9x128x128xbf16, #tpu.memory_space<vmem>>, vector<1x128x128xbf16>
    %86 = vector.shape_cast %85 : vector<1x128x128xbf16> to vector<128x128xbf16>
    %cst_109 = arith.constant dense<0.000000e+00> : vector<4x128xf32>
    %87 = tpu.matmul %84, %86, %cst_109 {dimension_numbers = #tpu.dot_dimension_numbers<[1], [0], [0], [1], [0, 0, 1, 1], [], []>} : vector<4x128xbf16>, vector<128x128xbf16>, vector<4x128xf32> -> vector<4x128xf32>
    %88 = arith.addf %82, %87 : vector<4x128xf32>
    %c0_110 = arith.constant 0 : index
    %c0_111 = arith.constant 0 : index
    %c0_112 = arith.constant 0 : index
    %c0_113 = arith.constant 0 : index
    %89 = vector.load %arg7[%c0_110, %c0_111, %c0_112, %c0_113] : memref<1x1x6x128xbf16, #tpu.memory_space<vmem>>, vector<1x1x4x128xbf16>
    %90 = vector.shape_cast %89 : vector<1x1x4x128xbf16> to vector<4x128xbf16>
    %c6_114 = arith.constant 6 : index
    %c0_115 = arith.constant 0 : index
    %c0_116 = arith.constant 0 : index
    %91 = vector.load %arg9[%c6_114, %c0_115, %c0_116] : memref<9x128x128xbf16, #tpu.memory_space<vmem>>, vector<1x128x128xbf16>
    %92 = vector.shape_cast %91 : vector<1x128x128xbf16> to vector<128x128xbf16>
    %cst_117 = arith.constant dense<0.000000e+00> : vector<4x128xf32>
    %93 = tpu.matmul %90, %92, %cst_117 {dimension_numbers = #tpu.dot_dimension_numbers<[1], [0], [0], [1], [0, 0, 1, 1], [], []>} : vector<4x128xbf16>, vector<128x128xbf16>, vector<4x128xf32> -> vector<4x128xf32>
    %94 = arith.addf %88, %93 : vector<4x128xf32>
    %c0_118 = arith.constant 0 : index
    %c0_119 = arith.constant 0 : index
    %c1_120 = arith.constant 1 : index
    %c0_121 = arith.constant 0 : index
    %95 = vector.load %arg7[%c0_118, %c0_119, %c1_120, %c0_121] : memref<1x1x6x128xbf16, #tpu.memory_space<vmem>>, vector<1x1x4x128xbf16>
    %96 = vector.shape_cast %95 : vector<1x1x4x128xbf16> to vector<4x128xbf16>
    %c7_122 = arith.constant 7 : index
    %c0_123 = arith.constant 0 : index
    %c0_124 = arith.constant 0 : index
    %97 = vector.load %arg9[%c7_122, %c0_123, %c0_124] : memref<9x128x128xbf16, #tpu.memory_space<vmem>>, vector<1x128x128xbf16>
    %98 = vector.shape_cast %97 : vector<1x128x128xbf16> to vector<128x128xbf16>
    %cst_125 = arith.constant dense<0.000000e+00> : vector<4x128xf32>
    %99 = tpu.matmul %96, %98, %cst_125 {dimension_numbers = #tpu.dot_dimension_numbers<[1], [0], [0], [1], [0, 0, 1, 1], [], []>} : vector<4x128xbf16>, vector<128x128xbf16>, vector<4x128xf32> -> vector<4x128xf32>
    %100 = arith.addf %94, %99 : vector<4x128xf32>
    %c0_126 = arith.constant 0 : index
    %c0_127 = arith.constant 0 : index
    %c2_128 = arith.constant 2 : index
    %c0_129 = arith.constant 0 : index
    %101 = vector.load %arg7[%c0_126, %c0_127, %c2_128, %c0_129] : memref<1x1x6x128xbf16, #tpu.memory_space<vmem>>, vector<1x1x4x128xbf16>
    %102 = vector.shape_cast %101 : vector<1x1x4x128xbf16> to vector<4x128xbf16>
    %c8_130 = arith.constant 8 : index
    %c0_131 = arith.constant 0 : index
    %c0_132 = arith.constant 0 : index
    %103 = vector.load %arg9[%c8_130, %c0_131, %c0_132] : memref<9x128x128xbf16, #tpu.memory_space<vmem>>, vector<1x128x128xbf16>
    %104 = vector.shape_cast %103 : vector<1x128x128xbf16> to vector<128x128xbf16>
    %cst_133 = arith.constant dense<0.000000e+00> : vector<4x128xf32>
    %105 = tpu.matmul %102, %104, %cst_133 {dimension_numbers = #tpu.dot_dimension_numbers<[1], [0], [0], [1], [0, 0, 1, 1], [], []>} : vector<4x128xbf16>, vector<128x128xbf16>, vector<4x128xf32> -> vector<4x128xf32>
    %106 = arith.addf %100, %105 : vector<4x128xf32>
    %c0_134 = arith.constant 0 : index
    %c0_135 = arith.constant 0 : index
    %107 = vector.load %arg10[%c0_134, %c0_135] : memref<1x128xf32, #tpu.memory_space<vmem>>, vector<1x128xf32>
    %108 = vector.broadcast %107 : vector<1x128xf32> to vector<4x128xf32>
    %109 = arith.mulf %106, %108 : vector<4x128xf32>
    %c0_136 = arith.constant 0 : index
    %c0_137 = arith.constant 0 : index
    %110 = vector.load %arg11[%c0_136, %c0_137] : memref<1x128xf32, #tpu.memory_space<vmem>>, vector<1x128xf32>
    %111 = vector.broadcast %110 : vector<1x128xf32> to vector<4x128xf32>
    %112 = arith.addf %109, %111 : vector<4x128xf32>
    %cst_138 = arith.constant 0.000000e+00 : f32
    %113 = vector.broadcast %cst_138 : f32 to vector<4x128xf32>
    %114 = arith.maximumf %112, %113 : vector<4x128xf32>
    %115 = arith.truncf %114 : vector<4x128xf32> to vector<4x128xbf16>
    %c0_139 = arith.constant 0 : index
    %c0_140 = arith.constant 0 : index
    %c0_141 = arith.constant 0 : index
    %c0_142 = arith.constant 0 : index
    %116 = vector.load %arg12[%c0_139, %c0_140, %c0_141, %c0_142] : memref<1x1x4x128xbf16, #tpu.memory_space<vmem>>, vector<1x1x4x128xbf16>
    %117 = vector.shape_cast %116 : vector<1x1x4x128xbf16> to vector<4x128xbf16>
    %118 = vector.shape_cast %115 : vector<4x128xbf16> to vector<1x1x4x128xbf16>
    tpu.vector_store %arg12[%c0_139, %c0_140, %c0_141, %c0_142], %118 {strides = array<i32>} : memref<1x1x4x128xbf16, #tpu.memory_space<vmem>>, vector<1x1x4x128xbf16>,
    return
  }
  func.func @transform_0(%arg0: i32, %arg1: i32) -> (i32, i32, i32, i32) {
    %c0_i32 = arith.constant 0 : i32
    %0 = arith.addi %arg1, %c0_i32 : i32
    %c0_i32_0 = arith.constant 0 : i32
    %c0_i32_1 = arith.constant 0 : i32
    %c0_i32_2 = arith.constant 0 : i32
    return %arg0, %0, %c0_i32_0, %c0_i32_1 : i32, i32, i32, i32
  }
  func.func @transform_1(%arg0: i32, %arg1: i32) -> (i32, i32, i32, i32) {
    %c1_i32 = arith.constant 1 : i32
    %0 = arith.addi %arg1, %c1_i32 : i32
    %c0_i32 = arith.constant 0 : i32
    %c0_i32_0 = arith.constant 0 : i32
    %c0_i32_1 = arith.constant 0 : i32
    return %arg0, %0, %c0_i32, %c0_i32_0 : i32, i32, i32, i32
  }
  func.func @transform_2(%arg0: i32, %arg1: i32) -> (i32, i32, i32, i32) {
    %c2_i32 = arith.constant 2 : i32
    %0 = arith.addi %arg1, %c2_i32 : i32
    %c0_i32 = arith.constant 0 : i32
    %c0_i32_0 = arith.constant 0 : i32
    %c0_i32_1 = arith.constant 0 : i32
    return %arg0, %0, %c0_i32, %c0_i32_0 : i32, i32, i32, i32
  }
  func.func @transform_3(%arg0: i32, %arg1: i32) -> (i32, i32, i32, i32) {
    %c0_i32 = arith.constant 0 : i32
    %0 = arith.addi %arg1, %c0_i32 : i32
    %c0_i32_0 = arith.constant 0 : i32
    %c0_i32_1 = arith.constant 0 : i32
    %c0_i32_2 = arith.constant 0 : i32
    return %arg0, %0, %c0_i32_0, %c0_i32_1 : i32, i32, i32, i32
  }
  func.func @transform_4(%arg0: i32, %arg1: i32) -> (i32, i32, i32, i32) {
    %c1_i32 = arith.constant 1 : i32
    %0 = arith.addi %arg1, %c1_i32 : i32
    %c0_i32 = arith.constant 0 : i32
    %c0_i32_0 = arith.constant 0 : i32
    %c0_i32_1 = arith.constant 0 : i32
    return %arg0, %0, %c0_i32, %c0_i32_0 : i32, i32, i32, i32
  }
  func.func @transform_5(%arg0: i32, %arg1: i32) -> (i32, i32, i32, i32) {
    %c2_i32 = arith.constant 2 : i32
    %0 = arith.addi %arg1, %c2_i32 : i32
    %c0_i32 = arith.constant 0 : i32
    %c0_i32_0 = arith.constant 0 : i32
    %c0_i32_1 = arith.constant 0 : i32
    return %arg0, %0, %c0_i32, %c0_i32_0 : i32, i32, i32, i32
  }
  func.func @transform_6(%arg0: i32, %arg1: i32) -> (i32, i32, i32) {
    %c0_i32 = arith.constant 0 : i32
    %c0_i32_0 = arith.constant 0 : i32
    %c0_i32_1 = arith.constant 0 : i32
    %c0_i32_2 = arith.constant 0 : i32
    return %c0_i32, %c0_i32_0, %c0_i32_1 : i32, i32, i32
  }
  func.func @transform_7(%arg0: i32, %arg1: i32) -> (i32, i32, i32) {
    %c0_i32 = arith.constant 0 : i32
    %c0_i32_0 = arith.constant 0 : i32
    %c0_i32_1 = arith.constant 0 : i32
    %c0_i32_2 = arith.constant 0 : i32
    return %c0_i32, %c0_i32_0, %c0_i32_1 : i32, i32, i32
  }
  func.func @transform_8(%arg0: i32, %arg1: i32) -> (i32, i32) {
    %c0_i32 = arith.constant 0 : i32
    %c0_i32_0 = arith.constant 0 : i32
    %c0_i32_1 = arith.constant 0 : i32
    return %c0_i32, %c0_i32_0 : i32, i32
  }
  func.func @transform_9(%arg0: i32, %arg1: i32) -> (i32, i32) {
    %c0_i32 = arith.constant 0 : i32
    %c0_i32_0 = arith.constant 0 : i32
    %c0_i32_1 = arith.constant 0 : i32
    return %c0_i32, %c0_i32_0 : i32, i32
  }
  func.func @transform_10(%arg0: i32, %arg1: i32) -> (i32, i32, i32, i32) {
    %c0_i32 = arith.constant 0 : i32
    %c0_i32_0 = arith.constant 0 : i32
    %c0_i32_1 = arith.constant 0 : i32
    return %arg0, %arg1, %c0_i32, %c0_i32_0 : i32, i32, i32, i32
  }
}

</mosaic_0001>

<llo_original>
// kernel: stem_block_forward.5
$region0: #{stem_block_forward.5}
  #allocation0 [shape = 'u32[]', space=smem, size = 0x4, offset = 0x4, fixed_abs, tag = 'smem constant byte address 0x4 - core index']
  #allocation1 [shape = 'u32[72,128]{1,0:T(1,128)}', space=vmem, size = 0x9000, scoped, tag = 'internal scratch']
  %s0 = inlined_call_operand.vmem [shape: bf16[2,18,9,8], index: 0, kind: input, shape index: {}, may-alias: {0,2,4}]
  %s1 = inlined_call_operand.vmem [shape: bf16[2,18,9,8], index: 1, kind: input, shape index: {}, may-alias: {1,3,5}]
  %s2 = inlined_call_operand.vmem [shape: bf16[2,18,9,8], index: 2, kind: input, shape index: {}, may-alias: {0,2,4}]
  %s3 = inlined_call_operand.vmem [shape: bf16[2,18,9,8], index: 3, kind: input, shape index: {}, may-alias: {1,3,5}]
  %s4 = inlined_call_operand.vmem [shape: bf16[2,18,9,8], index: 4, kind: input, shape index: {}, may-alias: {0,2,4}]
  %s5 = inlined_call_operand.vmem [shape: bf16[2,18,9,8], index: 5, kind: input, shape index: {}, may-alias: {1,3,5}]
  %s6 = inlined_call_operand.vmem [shape: bf16[9,8,128], index: 6, kind: input, shape index: {}]
  %s7 = inlined_call_operand.vmem [shape: f32[1,128], index: 7, kind: input, shape index: {}]
  %s8 = inlined_call_operand.vmem [shape: f32[1,128], index: 8, kind: input, shape index: {}]
  %s9 = inlined_call_operand.vmem [shape: bf16[2,8,8,128], index: 9, kind: output, shape index: {}]
  %s10 = sld [smem:[#allocation0]]
  $region69: #{stem_block_forward.5} parent=0
    _
  %s12 = ssub.s32 1, %s10
  %s13 = scalar_select 0, %s12, %s10
  loop: start=0, step=1, limit=18
  $region2: #{stem_block_forward.5} parent=0 // loop_pre_header
    _
  $region3: #{stem_block_forward.5} parent=0 // loop_header
    %s15 = sphi 0, %s19
    %p16 = scmp.ge.s32.totalorder %s15, 18
    %s22 = sphi 0, %s34
    %s23 = sphi 0, %s30
    %s24 = sphi 0, %s22
    %s25 = sphi 0, %s23
    %s26 = sphi 0, %s24
    %s27 = sphi 0, %s25
    %s41 = sphi 0, %s43
    %s44 = sphi 0, %s41
    %s45 = sphi 0, %s44
    %s61 = sphi 0, %s45
    %s71 = sphi 0, %s73
    %s74 = sphi 0, %s71
    %s75 = sphi 0, %s74
    %s91 = sphi 0, %s75
    %s103 = sphi 0, %s105
    %s106 = sphi 0, %s103
    %s107 = sphi 0, %s106
    %s123 = sphi 0, %s107
    %s135 = sphi 0, %s137
    %s138 = sphi 0, %s135
    %s139 = sphi 0, %s138
    %s155 = sphi 0, %s139
    %s167 = sphi 0, %s169
    %s170 = sphi 0, %s167
    %s171 = sphi 0, %s170
    %s187 = sphi 0, %s171
    %s199 = sphi 0, %s201
    %s202 = sphi 0, %s199
    %s203 = sphi 0, %s202
    %s219 = sphi 0, %s203
    %s223 = sphi 0, %s223
    %s225 = sphi 0, %s223
    %s226 = sphi 0, %s225
    %s240 = sphi 0, %s226
    %s244 = sphi 0, %s244
    %s246 = sphi 0, %s244
    %s247 = sphi 0, %s246
    %s261 = sphi 0, %s247
    %s265 = sphi 0, %s265
    %s267 = sphi 0, %s265
    %s268 = sphi 0, %s267
    %s282 = sphi 0, %s268
    %s290 = sphi 0, %s292
    %s293 = sphi 0, %s290
    %s294 = sphi 0, %s293
    %s310 = sphi 0, %s294
  $region4: #{stem_block_forward.5} parent=0 // loop_header_branch
    %18 = sbr.rel (%p16) target = $region8
  $region5: #{stem_block_forward.5} parent=0 // loop_body
    %s20 = ssub.s32 %s15, 1
    %s21 = ssub.s32 %s15, 2
    %s28 = sadd.s32 1, %s23
    %p29 = scmp.ge.s32.totalorder %s28, 8
    %s30 = scalar_select %p29, 0, %s28
    %s31 = sadd.s32 1, %s22
    %s32 = scalar_select %p29, %s31, %s22
    %p33 = scmp.ge.s32.totalorder %s32, 2
    %s34 = scalar_select %p33, 0, %s32
    %s35 = smul.u32 %s23, 2
    %s36 = smul.u32 %s30, 2
    %s37 = ssub.s32 %s22, %s34
    %s38 = ssub.s32 %s35, %s36
    %s39 = sor.u32 %s37, %s38
    %p40 = scmp.eq.s32.totalorder %s39, 0
    %s42 = sadd.s32 %s41, 1
    %s43 = scalar_select %p40, %s41, %s42
    %p46 = pneg %p40
    %p47 = scmp.eq.s32.totalorder %s15, 15
    %p48 = por %p46, %p47
    %p49 = scmp.ne.s32.totalorder %s41, %s44
    %p50 = scmp.eq.s32.totalorder %s15, 0
    %p51 = por %p49, %p50
    %p52 = scmp.ne.s32.totalorder %s41, %s44
    %p53 = scmp.eq.s32.totalorder %s20, 15
    %p54 = por %p52, %p53
    %p55 = scmp.ne.s32.totalorder %s44, %s45
    %p56 = scmp.eq.s32.totalorder %s20, 0
    %p57 = por %p55, %p56
    %p58 = scmp.ne.s32.totalorder %s44, %s45
    %p59 = scmp.eq.s32.totalorder %s21, 15
    %p60 = por %p58, %p59
    %p62 = scmp.ne.s32.totalorder %s45, %s61
    %p63 = scmp.eq.s32.totalorder %s21, 0
    %p64 = por %p62, %p63
    %s65 = smul.u32 %s23, 2
    %s66 = smul.u32 %s30, 2
    %s67 = ssub.s32 %s22, %s34
    %s68 = ssub.s32 %s65, %s66
    %s69 = sor.u32 %s67, %s68
    %p70 = scmp.eq.s32.totalorder %s69, 0
    %s72 = sadd.s32 %s71, 1
    %s73 = scalar_select %p70, %s71, %s72
    %p76 = pneg %p70
    %p77 = scmp.eq.s32.totalorder %s15, 15
    %p78 = por %p76, %p77
    %p79 = scmp.ne.s32.totalorder %s71, %s74
    %p80 = scmp.eq.s32.totalorder %s15, 0
    %p81 = por %p79, %p80
    %p82 = scmp.ne.s32.totalorder %s71, %s74
    %p83 = scmp.eq.s32.totalorder %s20, 15
    %p84 = por %p82, %p83
    %p85 = scmp.ne.s32.totalorder %s74, %s75
    %p86 = scmp.eq.s32.totalorder %s20, 0
    %p87 = por %p85, %p86
    %p88 = scmp.ne.s32.totalorder %s74, %s75
    %p89 = scmp.eq.s32.totalorder %s21, 15
    %p90 = por %p88, %p89
    %p92 = scmp.ne.s32.totalorder %s75, %s91
    %p93 = scmp.eq.s32.totalorder %s21, 0
    %p94 = por %p92, %p93
    %s95 = smul.u32 %s23, 2
    %s96 = sadd.s32 %s95, 1
    %s97 = smul.u32 %s30, 2
    %s98 = sadd.s32 %s97, 1
    %s99 = ssub.s32 %s22, %s34
    %s100 = ssub.s32 %s96, %s98
    %s101 = sor.u32 %s99, %s100
    %p102 = scmp.eq.s32.totalorder %s101, 0
    %s104 = sadd.s32 %s103, 1
    %s105 = scalar_select %p102, %s103, %s104
    %p108 = pneg %p102
    %p109 = scmp.eq.s32.totalorder %s15, 15
    %p110 = por %p108, %p109
    %p111 = scmp.ne.s32.totalorder %s103, %s106
    %p112 = scmp.eq.s32.totalorder %s15, 0
    %p113 = por %p111, %p112
    %p114 = scmp.ne.s32.totalorder %s103, %s106
    %p115 = scmp.eq.s32.totalorder %s20, 15
    %p116 = por %p114, %p115
    %p117 = scmp.ne.s32.totalorder %s106, %s107
    %p118 = scmp.eq.s32.totalorder %s20, 0
    %p119 = por %p117, %p118
    %p120 = scmp.ne.s32.totalorder %s106, %s107
    %p121 = scmp.eq.s32.totalorder %s21, 15
    %p122 = por %p120, %p121
    %p124 = scmp.ne.s32.totalorder %s107, %s123
    %p125 = scmp.eq.s32.totalorder %s21, 0
    %p126 = por %p124, %p125
    %s127 = smul.u32 %s23, 2
    %s128 = sadd.s32 %s127, 1
    %s129 = smul.u32 %s30, 2
    %s130 = sadd.s32 %s129, 1
    %s131 = ssub.s32 %s22, %s34
    %s132 = ssub.s32 %s128, %s130
    %s133 = sor.u32 %s131, %s132
    %p134 = scmp.eq.s32.totalorder %s133, 0
    %s136 = sadd.s32 %s135, 1
    %s137 = scalar_select %p134, %s135, %s136
    %p140 = pneg %p134
    %p141 = scmp.eq.s32.totalorder %s15, 15
    %p142 = por %p140, %p141
    %p143 = scmp.ne.s32.totalorder %s135, %s138
    %p144 = scmp.eq.s32.totalorder %s15, 0
    %p145 = por %p143, %p144
    %p146 = scmp.ne.s32.totalorder %s135, %s138
    %p147 = scmp.eq.s32.totalorder %s20, 15
    %p148 = por %p146, %p147
    %p149 = scmp.ne.s32.totalorder %s138, %s139
    %p150 = scmp.eq.s32.totalorder %s20, 0
    %p151 = por %p149, %p150
    %p152 = scmp.ne.s32.totalorder %s138, %s139
    %p153 = scmp.eq.s32.totalorder %s21, 15
    %p154 = por %p152, %p153
    %p156 = scmp.ne.s32.totalorder %s139, %s155
    %p157 = scmp.eq.s32.totalorder %s21, 0
    %p158 = por %p156, %p157
    %s159 = smul.u32 %s23, 2
    %s160 = sadd.s32 %s159, 2
    %s161 = smul.u32 %s30, 2
    %s162 = sadd.s32 %s161, 2
    %s163 = ssub.s32 %s22, %s34
    %s164 = ssub.s32 %s160, %s162
    %s165 = sor.u32 %s163, %s164
    %p166 = scmp.eq.s32.totalorder %s165, 0
    %s168 = sadd.s32 %s167, 1
    %s169 = scalar_select %p166, %s167, %s168
    %p172 = pneg %p166
    %p173 = scmp.eq.s32.totalorder %s15, 15
    %p174 = por %p172, %p173
    %p175 = scmp.ne.s32.totalorder %s167, %s170
    %p176 = scmp.eq.s32.totalorder %s15, 0
    %p177 = por %p175, %p176
    %p178 = scmp.ne.s32.totalorder %s167, %s170
    %p179 = scmp.eq.s32.totalorder %s20, 15
    %p180 = por %p178, %p179
    %p181 = scmp.ne.s32.totalorder %s170, %s171
    %p182 = scmp.eq.s32.totalorder %s20, 0
    %p183 = por %p181, %p182
    %p184 = scmp.ne.s32.totalorder %s170, %s171
    %p185 = scmp.eq.s32.totalorder %s21, 15
    %p186 = por %p184, %p185
    %p188 = scmp.ne.s32.totalorder %s171, %s187
    %p189 = scmp.eq.s32.totalorder %s21, 0
    %p190 = por %p188, %p189
    %s191 = smul.u32 %s23, 2
    %s192 = sadd.s32 %s191, 2
    %s193 = smul.u32 %s30, 2
    %s194 = sadd.s32 %s193, 2
    %s195 = ssub.s32 %s22, %s34
    %s196 = ssub.s32 %s192, %s194
    %s197 = sor.u32 %s195, %s196
    %p198 = scmp.eq.s32.totalorder %s197, 0
    %s200 = sadd.s32 %s199, 1
    %s201 = scalar_select %p198, %s199, %s200
    %p204 = pneg %p198
    %p205 = scmp.eq.s32.totalorder %s15, 15
    %p206 = por %p204, %p205
    %p207 = scmp.ne.s32.totalorder %s199, %s202
    %p208 = scmp.eq.s32.totalorder %s15, 0
    %p209 = por %p207, %p208
    %p210 = scmp.ne.s32.totalorder %s199, %s202
    %p211 = scmp.eq.s32.totalorder %s20, 15
    %p212 = por %p210, %p211
    %p213 = scmp.ne.s32.totalorder %s202, %s203
    %p214 = scmp.eq.s32.totalorder %s20, 0
    %p215 = por %p213, %p214
    %p216 = scmp.ne.s32.totalorder %s202, %s203
    %p217 = scmp.eq.s32.totalorder %s21, 15
    %p218 = por %p216, %p217
    %p220 = scmp.ne.s32.totalorder %s203, %s219
    %p221 = scmp.eq.s32.totalorder %s21, 0
    %p222 = por %p220, %p221
    %s224 = sadd.s32 %s223, 1
    %p227 = scmp.eq.s32.totalorder %s15, 15
    %p228 = scmp.ne.s32.totalorder %s223, %s225
    %p229 = scmp.eq.s32.totalorder %s15, 0
    %p230 = por %p228, %p229
    %p231 = scmp.ne.s32.totalorder %s223, %s225
    %p232 = scmp.eq.s32.totalorder %s20, 15
    %p233 = por %p231, %p232
    %p234 = scmp.ne.s32.totalorder %s225, %s226
    %p235 = scmp.eq.s32.totalorder %s20, 0
    %p236 = por %p234, %p235
    %p237 = scmp.ne.s32.totalorder %s225, %s226
    %p238 = scmp.eq.s32.totalorder %s21, 15
    %p239 = por %p237, %p238
    %p241 = scmp.ne.s32.totalorder %s226, %s240
    %p242 = scmp.eq.s32.totalorder %s21, 0
    %p243 = por %p241, %p242
    %s245 = sadd.s32 %s244, 1
    %p248 = scmp.eq.s32.totalorder %s15, 15
    %p249 = scmp.ne.s32.totalorder %s244, %s246
    %p250 = scmp.eq.s32.totalorder %s15, 0
    %p251 = por %p249, %p250
    %p252 = scmp.ne.s32.totalorder %s244, %s246
    %p253 = scmp.eq.s32.totalorder %s20, 15
    %p254 = por %p252, %p253
    %p255 = scmp.ne.s32.totalorder %s246, %s247
    %p256 = scmp.eq.s32.totalorder %s20, 0
    %p257 = por %p255, %p256
    %p258 = scmp.ne.s32.totalorder %s246, %s247
    %p259 = scmp.eq.s32.totalorder %s21, 15
    %p260 = por %p258, %p259
    %p262 = scmp.ne.s32.totalorder %s247, %s261
    %p263 = scmp.eq.s32.totalorder %s21, 0
    %p264 = por %p262, %p263
    %s266 = sadd.s32 %s265, 1
    %p269 = scmp.eq.s32.totalorder %s15, 15
    %p270 = scmp.ne.s32.totalorder %s265, %s267
    %p271 = scmp.eq.s32.totalorder %s15, 0
    %p272 = por %p270, %p271
    %p273 = scmp.ne.s32.totalorder %s265, %s267
    %p274 = scmp.eq.s32.totalorder %s20, 15
    %p275 = por %p273, %p274
    %p276 = scmp.ne.s32.totalorder %s267, %s268
    %p277 = scmp.eq.s32.totalorder %s20, 0
    %p278 = por %p276, %p277
    %p279 = scmp.ne.s32.totalorder %s267, %s268
    %p280 = scmp.eq.s32.totalorder %s21, 15
    %p281 = por %p279, %p280
    %p283 = scmp.ne.s32.totalorder %s268, %s282
    %p284 = scmp.eq.s32.totalorder %s21, 0
    %p285 = por %p283, %p284
    %s286 = ssub.s32 %s22, %s34
    %s287 = ssub.s32 %s23, %s30
    %s288 = sor.u32 %s286, %s287
    %p289 = scmp.eq.s32.totalorder %s288, 0
    %s291 = sadd.s32 %s290, 1
    %s292 = scalar_select %p289, %s290, %s291
    %p295 = pneg %p289
    %p296 = scmp.eq.s32.totalorder %s15, 15
    %p297 = por %p295, %p296
    %p298 = scmp.ne.s32.totalorder %s290, %s293
    %p299 = scmp.eq.s32.totalorder %s15, 0
    %p300 = por %p298, %p299
    %p301 = scmp.ne.s32.totalorder %s290, %s293
    %p302 = scmp.eq.s32.totalorder %s20, 15
    %p303 = por %p301, %p302
    %p304 = scmp.ne.s32.totalorder %s293, %s294
    %p305 = scmp.eq.s32.totalorder %s20, 0
    %p306 = por %p304, %p305
    %p307 = scmp.ne.s32.totalorder %s293, %s294
    %p308 = scmp.eq.s32.totalorder %s21, 15
    %p309 = por %p307, %p308
    %p311 = scmp.ne.s32.totalorder %s294, %s310
    %p312 = scmp.eq.s32.totalorder %s21, 0
    %p313 = por %p311, %p312
    %p314 = scmp.le.s32.totalorder 1, %s15
    %p315 = scmp.lt.s32.totalorder %s15, 17
    %p316 = pnand %p314, %p315
    %p317 = pneg %p316
    // Predicated region
    $region9: #{stem_block_forward.5} parent=5 // pred_check
      _
    $region10: #{stem_block_forward.5} parent=5 // pred_check_branch
      %319 = sbr.rel (%p316) target = $region12
    $region11: #{stem_block_forward.5} parent=5 // pred_region
      %s320 = ssub.s32 %s15, 1
      // Predicated region
      $region13: #{stem_block_forward.5} parent=11 // pred_check
        %p321 = pneg %p236
      $region14: #{stem_block_forward.5} parent=11 // pred_check_branch
        %323 = sbr.rel (%p321) target = $region16
      $region15: #{stem_block_forward.5} parent=11 // pred_region
        _
      $region16: #{stem_block_forward.5} parent=11 // pred_fallthru
        _
      // Predicated region
      $region17: #{stem_block_forward.5} parent=11 // pred_check
        %p324 = pneg %p257
      $region18: #{stem_block_forward.5} parent=11 // pred_check_branch
        %326 = sbr.rel (%p324) target = $region20
      $region19: #{stem_block_forward.5} parent=11 // pred_region
        _
      $region20: #{stem_block_forward.5} parent=11 // pred_fallthru
        _
      // Predicated region
      $region21: #{stem_block_forward.5} parent=11 // pred_check
        %p327 = pneg %p278
      $region22: #{stem_block_forward.5} parent=11 // pred_check_branch
        %329 = sbr.rel (%p327) target = $region24
      $region23: #{stem_block_forward.5} parent=11 // pred_region
        _
      $region24: #{stem_block_forward.5} parent=11 // pred_fallthru
        _
    $region12: #{stem_block_forward.5} parent=5 // pred_fallthru
      _
    %p330 = scmp.lt.s32.totalorder %s15, 16
    // Predicated region
    $region25: #{stem_block_forward.5} parent=5 // pred_check
      %p331 = pneg %p330
    $region26: #{stem_block_forward.5} parent=5 // pred_check_branch
      %333 = sbr.rel (%p331) target = $region28
    $region27: #{stem_block_forward.5} parent=5 // pred_region
      // Predicated region
      $region29: #{stem_block_forward.5} parent=27 // pred_check
        %p334 = pneg %p51
      $region30: #{stem_block_forward.5} parent=27 // pred_check_branch
        %336 = sbr.rel (%p334) target = $region32
      $region31: #{stem_block_forward.5} parent=27 // pred_region
        %s337 = smul.u32 %s23, 2
        %p338 = scmp.lt.s32.totalorder %s22, 1
        %s339 = scalar_select %p338, %s22, 1
        %p340 = scmp.lt.s32.totalorder %s337, 17
        %s341 = scalar_select %p340, %s337, 17
        %s342 = smul.addr %s341, 2
        %s343 = smul.addr %s339, 36
        %s344 = sadd.s32 %s342, %s343
        %s345 = smul.addr %s344, 4
        %s346 = scalar_lea.vmem %s0, %s345
        %s347 = smul.u32 %s23, 2
      $region32: #{stem_block_forward.5} parent=27 // pred_fallthru
        _
      // Predicated region
      $region33: #{stem_block_forward.5} parent=27 // pred_check
        %p348 = pneg %p81
      $region34: #{stem_block_forward.5} parent=27 // pred_check_branch
        %350 = sbr.rel (%p348) target = $region36
      $region35: #{stem_block_forward.5} parent=27 // pred_region
        %s351 = smul.u32 %s23, 2
        %p352 = scmp.lt.s32.totalorder %s22, 1
        %s353 = scalar_select %p352, %s22, 1
        %p354 = scmp.lt.s32.totalorder %s351, 17
        %s355 = scalar_select %p354, %s351, 17
        %s356 = smul.addr %s355, 2
        %s357 = smul.addr %s353, 36
        %s358 = sadd.s32 %s356, %s357
        %s359 = smul.addr %s358, 4
        %s360 = scalar_lea.vmem %s1, %s359
        %s361 = smul.u32 %s23, 2
      $region36: #{stem_block_forward.5} parent=27 // pred_fallthru
        _
      // Predicated region
      $region37: #{stem_block_forward.5} parent=27 // pred_check
        %p362 = pneg %p113
      $region38: #{stem_block_forward.5} parent=27 // pred_check_branch
        %364 = sbr.rel (%p362) target = $region40
      $region39: #{stem_block_forward.5} parent=27 // pred_region
        %s365 = smul.u32 %s23, 2
        %s366 = sadd.s32 %s365, 1
        %p367 = scmp.lt.s32.totalorder %s22, 1
        %s368 = scalar_select %p367, %s22, 1
        %p369 = scmp.lt.s32.totalorder %s366, 17
        %s370 = scalar_select %p369, %s366, 17
        %s371 = smul.addr %s370, 2
        %s372 = smul.addr %s368, 36
        %s373 = sadd.s32 %s371, %s372
        %s374 = smul.addr %s373, 4
        %s375 = scalar_lea.vmem %s2, %s374
        %s376 = smul.u32 %s23, 2
        %s377 = sadd.s32 %s376, 1
      $region40: #{stem_block_forward.5} parent=27 // pred_fallthru
        _
      // Predicated region
      $region41: #{stem_block_forward.5} parent=27 // pred_check
        %p378 = pneg %p145
      $region42: #{stem_block_forward.5} parent=27 // pred_check_branch
        %380 = sbr.rel (%p378) target = $region44
      $region43: #{stem_block_forward.5} parent=27 // pred_region
        %s381 = smul.u32 %s23, 2
        %s382 = sadd.s32 %s381, 1
        %p383 = scmp.lt.s32.totalorder %s22, 1
        %s384 = scalar_select %p383, %s22, 1
        %p385 = scmp.lt.s32.totalorder %s382, 17
        %s386 = scalar_select %p385, %s382, 17
        %s387 = smul.addr %s386, 2
        %s388 = smul.addr %s384, 36
        %s389 = sadd.s32 %s387, %s388
        %s390 = smul.addr %s389, 4
        %s391 = scalar_lea.vmem %s3, %s390
        %s392 = smul.u32 %s23, 2
        %s393 = sadd.s32 %s392, 1
      $region44: #{stem_block_forward.5} parent=27 // pred_fallthru
        _
      // Predicated region
      $region45: #{stem_block_forward.5} parent=27 // pred_check
        %p394 = pneg %p177
      $region46: #{stem_block_forward.5} parent=27 // pred_check_branch
        %396 = sbr.rel (%p394) target = $region48
      $region47: #{stem_block_forward.5} parent=27 // pred_region
        %s397 = smul.u32 %s23, 2
        %s398 = sadd.s32 %s397, 2
        %p399 = scmp.lt.s32.totalorder %s22, 1
        %s400 = scalar_select %p399, %s22, 1
        %p401 = scmp.lt.s32.totalorder %s398, 17
        %s402 = scalar_select %p401, %s398, 17
        %s403 = smul.addr %s402, 2
        %s404 = smul.addr %s400, 36
        %s405 = sadd.s32 %s403, %s404
        %s406 = smul.addr %s405, 4
        %s407 = scalar_lea.vmem %s4, %s406
        %s408 = smul.u32 %s23, 2
        %s409 = sadd.s32 %s408, 2
      $region48: #{stem_block_forward.5} parent=27 // pred_fallthru
        _
      // Predicated region
      $region49: #{stem_block_forward.5} parent=27 // pred_check
        %p410 = pneg %p209
      $region50: #{stem_block_forward.5} parent=27 // pred_check_branch
        %412 = sbr.rel (%p410) target = $region52
      $region51: #{stem_block_forward.5} parent=27 // pred_region
        %s413 = smul.u32 %s23, 2
        %s414 = sadd.s32 %s413, 2
        %p415 = scmp.lt.s32.totalorder %s22, 1
        %s416 = scalar_select %p415, %s22, 1
        %p417 = scmp.lt.s32.totalorder %s414, 17
        %s418 = scalar_select %p417, %s414, 17
        %s419 = smul.addr %s418, 2
        %s420 = smul.addr %s416, 36
        %s421 = sadd.s32 %s419, %s420
        %s422 = smul.addr %s421, 4
        %s423 = scalar_lea.vmem %s5, %s422
        %s424 = smul.u32 %s23, 2
        %s425 = sadd.s32 %s424, 2
      $region52: #{stem_block_forward.5} parent=27 // pred_fallthru
        _
    $region28: #{stem_block_forward.5} parent=5 // pred_fallthru
      _
    %p426 = scmp.le.s32.totalorder 1, %s15
    %p427 = scmp.lt.s32.totalorder %s15, 17
    %p428 = pnand %p426, %p427
    %p429 = pneg %p428
    // Predicated region
    $region53: #{stem_block_forward.5} parent=5 // pred_check
      _
    $region54: #{stem_block_forward.5} parent=5 // pred_check_branch
      %431 = sbr.rel (%p428) target = $region56
    $region55: #{stem_block_forward.5} parent=5 // pred_region
      %s432 = ssub.s32 %s15, 1
      %s433 = smul.u32 %s25, 2
      %p434 = scmp.lt.s32.totalorder %s24, 1
      %s435 = scalar_select %p434, %s24, 1
      %p436 = scmp.lt.s32.totalorder %s433, 17
      %s437 = scalar_select %p436, %s433, 17
      %s438 = smul.addr %s437, 2
      %s439 = smul.addr %s435, 36
      %s440 = sadd.s32 %s438, %s439
      %s441 = smul.addr %s440, 4
      %s442 = scalar_lea.vmem %s0, %s441
      %p443 = pneg %p57
      %p444 = pneg %p54
      %s445 = smul.u32 %s25, 2
      %p446 = scmp.lt.s32.totalorder %s24, 1
      %s447 = scalar_select %p446, %s24, 1
      %p448 = scmp.lt.s32.totalorder %s445, 17
      %s449 = scalar_select %p448, %s445, 17
      %s450 = smul.addr %s449, 2
      %s451 = smul.addr %s447, 36
      %s452 = sadd.s32 %s450, %s451
      %s453 = smul.addr %s452, 4
      %s454 = scalar_lea.vmem %s1, %s453
      %p455 = pneg %p87
      %p456 = pneg %p84
      %s457 = smul.u32 %s25, 2
      %s458 = sadd.s32 %s457, 1
      %p459 = scmp.lt.s32.totalorder %s24, 1
      %s460 = scalar_select %p459, %s24, 1
      %p461 = scmp.lt.s32.totalorder %s458, 17
      %s462 = scalar_select %p461, %s458, 17
      %s463 = smul.addr %s462, 2
      %s464 = smul.addr %s460, 36
      %s465 = sadd.s32 %s463, %s464
      %s466 = smul.addr %s465, 4
      %s467 = scalar_lea.vmem %s2, %s466
      %p468 = pneg %p119
      %p469 = pneg %p116
      %s470 = smul.u32 %s25, 2
      %s471 = sadd.s32 %s470, 1
      %p472 = scmp.lt.s32.totalorder %s24, 1
      %s473 = scalar_select %p472, %s24, 1
      %p474 = scmp.lt.s32.totalorder %s471, 17
      %s475 = scalar_select %p474, %s471, 17
      %s476 = smul.addr %s475, 2
      %s477 = smul.addr %s473, 36
      %s478 = sadd.s32 %s476, %s477
      %s479 = smul.addr %s478, 4
      %s480 = scalar_lea.vmem %s3, %s479
      %p481 = pneg %p151
      %p482 = pneg %p148
      %s483 = smul.u32 %s25, 2
      %s484 = sadd.s32 %s483, 2
      %p485 = scmp.lt.s32.totalorder %s24, 1
      %s486 = scalar_select %p485, %s24, 1
      %p487 = scmp.lt.s32.totalorder %s484, 17
      %s488 = scalar_select %p487, %s484, 17
      %s489 = smul.addr %s488, 2
      %s490 = smul.addr %s486, 36
      %s491 = sadd.s32 %s489, %s490
      %s492 = smul.addr %s491, 4
      %s493 = scalar_lea.vmem %s4, %s492
      %p494 = pneg %p183
      %p495 = pneg %p180
      %s496 = smul.u32 %s25, 2
      %s497 = sadd.s32 %s496, 2
      %p498 = scmp.lt.s32.totalorder %s24, 1
      %s499 = scalar_select %p498, %s24, 1
      %p500 = scmp.lt.s32.totalorder %s497, 17
      %s501 = scalar_select %p500, %s497, 17
      %s502 = smul.addr %s501, 2
      %s503 = smul.addr %s499, 36
      %s504 = sadd.s32 %s502, %s503
      %s505 = smul.addr %s504, 4
      %s506 = scalar_lea.vmem %s5, %s505
      %p507 = pneg %p215
      %p508 = pneg %p212
      %p509 = pneg %p236
      %p510 = pneg %p233
      %p511 = pneg %p257
      %p512 = pneg %p254
      %p513 = pneg %p278
      %p514 = pneg %p275
      %p515 = pneg %p306
      %p516 = pneg %p303
      %p517 = scmp.lt.s32.totalorder %s24, 1
      %s518 = scalar_select %p517, %s24, 1
      %p519 = scmp.lt.s32.totalorder %s25, 7
      %s520 = scalar_select %p519, %s25, 7
      %s521 = smul.addr %s518, 8
      %s522 = sadd.s32 %s520, %s521
      %s523 = smul.addr %s522, 4
      %s524 = scalar_lea.vmem %s9, %s523
      %s525 = smul.u32 %s25, 2
      %p526 = scmp.lt.s32.totalorder %s24, 1
      %s527 = scalar_select %p526, %s24, 1
      %p528 = scmp.lt.s32.totalorder %s525, 17
      %s529 = scalar_select %p528, %s525, 17
      %s530 = smul.addr %s529, 2
      %s531 = smul.addr %s527, 36
      %s532 = sadd.s32 %s530, %s531
      %s533 = smul.addr %s532, 4
      %s534 = scalar_lea.vmem %s0, %s533
      %s535 = smul.u32 %s25, 2
      %s536 = smul.u32 %s25, 2
      %p537 = scmp.lt.s32.totalorder %s24, 1
      %s538 = scalar_select %p537, %s24, 1
      %p539 = scmp.lt.s32.totalorder %s536, 17
      %s540 = scalar_select %p539, %s536, 17
      %s541 = smul.addr %s540, 2
      %s542 = smul.addr %s538, 36
      %s543 = sadd.s32 %s541, %s542
      %s544 = smul.addr %s543, 4
      %s545 = scalar_lea.vmem %s1, %s544
      %s546 = smul.u32 %s25, 2
      %s547 = smul.u32 %s25, 2
      %s548 = sadd.s32 %s547, 1
      %p549 = scmp.lt.s32.totalorder %s24, 1
      %s550 = scalar_select %p549, %s24, 1
      %p551 = scmp.lt.s32.totalorder %s548, 17
      %s552 = scalar_select %p551, %s548, 17
      %s553 = smul.addr %s552, 2
      %s554 = smul.addr %s550, 36
      %s555 = sadd.s32 %s553, %s554
      %s556 = smul.addr %s555, 4
      %s557 = scalar_lea.vmem %s2, %s556
      %s558 = smul.u32 %s25, 2
      %s559 = sadd.s32 %s558, 1
      %s560 = smul.u32 %s25, 2
      %s561 = sadd.s32 %s560, 1
      %p562 = scmp.lt.s32.totalorder %s24, 1
      %s563 = scalar_select %p562, %s24, 1
      %p564 = scmp.lt.s32.totalorder %s561, 17
      %s565 = scalar_select %p564, %s561, 17
      %s566 = smul.addr %s565, 2
      %s567 = smul.addr %s563, 36
      %s568 = sadd.s32 %s566, %s567
      %s569 = smul.addr %s568, 4
      %s570 = scalar_lea.vmem %s3, %s569
      %s571 = smul.u32 %s25, 2
      %s572 = sadd.s32 %s571, 1
      %s573 = smul.u32 %s25, 2
      %s574 = sadd.s32 %s573, 2
      %p575 = scmp.lt.s32.totalorder %s24, 1
      %s576 = scalar_select %p575, %s24, 1
      %p577 = scmp.lt.s32.totalorder %s574, 17
      %s578 = scalar_select %p577, %s574, 17
      %s579 = smul.addr %s578, 2
      %s580 = smul.addr %s576, 36
      %s581 = sadd.s32 %s579, %s580
      %s582 = smul.addr %s581, 4
      %s583 = scalar_lea.vmem %s4, %s582
      %s584 = smul.u32 %s25, 2
      %s585 = sadd.s32 %s584, 2
      %s586 = smul.u32 %s25, 2
      %s587 = sadd.s32 %s586, 2
      %p588 = scmp.lt.s32.totalorder %s24, 1
      %s589 = scalar_select %p588, %s24, 1
      %p590 = scmp.lt.s32.totalorder %s587, 17
      %s591 = scalar_select %p590, %s587, 17
      %s592 = smul.addr %s591, 2
      %s593 = smul.addr %s589, 36
      %s594 = sadd.s32 %s592, %s593
      %s595 = smul.addr %s594, 4
      %s596 = scalar_lea.vmem %s5, %s595
      %s597 = smul.u32 %s25, 2
      %s598 = sadd.s32 %s597, 2
      %p599 = scmp.lt.s32.totalorder %s24, 1
      %s600 = scalar_select %p599, %s24, 1
      %p601 = scmp.lt.s32.totalorder %s25, 7
      %s602 = scalar_select %p601, %s25, 7
      %s603 = smul.addr %s600, 8
      %s604 = sadd.s32 %s602, %s603
      %s605 = smul.addr %s604, 4
      %s606 = scalar_lea.vmem %s9, %s605
      %v608 = vld [vmem:[%s534] sm:$0xf]
      %v609 = vld [vmem:[%s6] sm:$0xf]
      %v610 = vld [vmem:[%s545] sm:$0xf]
      %s611 = scalar_lea.vmem %s6, 4
      %v612 = vld [vmem:[%s611] sm:$0xf]
      %vm613 = vcmask 64512
      %v615 = vsel %vm613, %v610, 0
      %vm617 = vcmask 1043456
      %v619 = vsel %vm617, %v612, 0
      %621 = vmatpush.bf16.msra.mxu0 0
      %622 = vmatpush.bf16.msra.mxu0 0
      %623 = vmatpush.bf16.msra.mxu0 0
      %624 = vmatpush.bf16.msra.mxu0 0
      %625 = vmatpush.bf16.msra.mxu0 0
      %626 = vmatpush.bf16.msra.mxu0 0
      %627 = vmatpush.bf16.msra.mxu0 0
      %628 = vmatpush.bf16.msra.mxu0 %v619
      %629 = vmatmul.bf16.gmra.mxu0 %v615
      %v630 = vpop.f32.mrf.mxu0
      %v631 = vadd.f32 0.0, %v630
      %v632 = vpop.f32.mrf.mxu0
      %633 = vdwg.mxu0
      %v635 = vsel %vm613, %v608, 0
      %v638 = vsel %vm617, %v609, 0
      %640 = vmatpush.bf16.msra.mxu0 0
      %641 = vmatpush.bf16.msra.mxu0 0
      %642 = vmatpush.bf16.msra.mxu0 0
      %643 = vmatpush.bf16.msra.mxu0 0
      %644 = vmatpush.bf16.msra.mxu0 0
      %645 = vmatpush.bf16.msra.mxu0 0
      %646 = vmatpush.bf16.msra.mxu0 0
      %647 = vmatpush.bf16.msra.mxu0 %v638
      %648 = vmatmul.bf16.gmra.mxu0 %v635
      %v649 = vpop.f32.mrf.mxu0
      %v650 = vadd.f32 %v631, %v649
      %v651 = vpop.f32.mrf.mxu0
      %652 = vdwg.mxu0
      %v653 = vld [vmem:[%s534] sm:$0xf]
      %v654 = vld [vmem:[%s534 + $0x4] sm:$0x1]
      %s655 = scalar_lea.vmem %s6, 8
      %v656 = vld [vmem:[%s655] sm:$0xf]
      %v659 = vunpack.c.l.b16 %v653
      %v660 = vunpack.c.l.b16 %v654
      %v661 = vpack.c.b16 %v660, %v659
      %v663 = vshrl.u32 %v661, 16
      %v665 = vshll.u32 %v661, 16
      %v667 = vrot.slane %v665, 1
      %v668 = vor.u32 %v663, %v667
      %v670 = vsel %vm613, %v668, 0
      %v673 = vsel %vm617, %v656, 0
      %675 = vmatpush.bf16.msra.mxu0 0
      %676 = vmatpush.bf16.msra.mxu0 0
      %677 = vmatpush.bf16.msra.mxu0 0
      %678 = vmatpush.bf16.msra.mxu0 0
      %679 = vmatpush.bf16.msra.mxu0 0
      %680 = vmatpush.bf16.msra.mxu0 0
      %681 = vmatpush.bf16.msra.mxu0 0
      %682 = vmatpush.bf16.msra.mxu0 %v673
      %683 = vmatmul.bf16.gmra.mxu0 %v670
      %v684 = vpop.f32.mrf.mxu0
      %v685 = vadd.f32 0.0, %v684
      %v686 = vpop.f32.mrf.mxu0
      %687 = vdwg.mxu0
      %v688 = vadd.f32 %v650, %v685
      %v689 = vld [vmem:[%s557] sm:$0xf]
      %s690 = scalar_lea.vmem %s6, 12
      %v691 = vld [vmem:[%s690] sm:$0xf]
      %v693 = vsel %vm613, %v689, 0
      %v696 = vsel %vm617, %v691, 0
      %698 = vmatpush.bf16.msra.mxu0 0
      %699 = vmatpush.bf16.msra.mxu0 0
      %700 = vmatpush.bf16.msra.mxu0 0
      %701 = vmatpush.bf16.msra.mxu0 0
      %702 = vmatpush.bf16.msra.mxu0 0
      %703 = vmatpush.bf16.msra.mxu0 0
      %704 = vmatpush.bf16.msra.mxu0 0
      %705 = vmatpush.bf16.msra.mxu0 %v696
      %706 = vmatmul.bf16.gmra.mxu0 %v693
      %v707 = vpop.f32.mrf.mxu0
      %v708 = vadd.f32 0.0, %v707
      %v709 = vpop.f32.mrf.mxu0
      %710 = vdwg.mxu0
      %v711 = vadd.f32 %v688, %v708
      %v712 = vld [vmem:[%s570] sm:$0xf]
      %s713 = scalar_lea.vmem %s6, 16
      %v714 = vld [vmem:[%s713] sm:$0xf]
      %v716 = vsel %vm613, %v712, 0
      %v719 = vsel %vm617, %v714, 0
      %721 = vmatpush.bf16.msra.mxu0 0
      %722 = vmatpush.bf16.msra.mxu0 0
      %723 = vmatpush.bf16.msra.mxu0 0
      %724 = vmatpush.bf16.msra.mxu0 0
      %725 = vmatpush.bf16.msra.mxu0 0
      %726 = vmatpush.bf16.msra.mxu0 0
      %727 = vmatpush.bf16.msra.mxu0 0
      %728 = vmatpush.bf16.msra.mxu0 %v719
      %729 = vmatmul.bf16.gmra.mxu0 %v716
      %v730 = vpop.f32.mrf.mxu0
      %v731 = vadd.f32 0.0, %v730
      %v732 = vpop.f32.mrf.mxu0
      %733 = vdwg.mxu0
      %v734 = vadd.f32 %v711, %v731
      %v735 = vld [vmem:[%s557] sm:$0xf]
      %v736 = vld [vmem:[%s557 + $0x4] sm:$0x1]
      %s737 = scalar_lea.vmem %s6, 20
      %v738 = vld [vmem:[%s737] sm:$0xf]
      %v741 = vunpack.c.l.b16 %v735
      %v742 = vunpack.c.l.b16 %v736
      %v743 = vpack.c.b16 %v742, %v741
      %v745 = vshrl.u32 %v743, 16
      %v747 = vshll.u32 %v743, 16
      %v749 = vrot.slane %v747, 1
      %v750 = vor.u32 %v745, %v749
      %v752 = vsel %vm613, %v750, 0
      %v755 = vsel %vm617, %v738, 0
      %757 = vmatpush.bf16.msra.mxu0 0
      %758 = vmatpush.bf16.msra.mxu0 0
      %759 = vmatpush.bf16.msra.mxu0 0
      %760 = vmatpush.bf16.msra.mxu0 0
      %761 = vmatpush.bf16.msra.mxu0 0
      %762 = vmatpush.bf16.msra.mxu0 0
      %763 = vmatpush.bf16.msra.mxu0 0
      %764 = vmatpush.bf16.msra.mxu0 %v755
      %765 = vmatmul.bf16.gmra.mxu0 %v752
      %v766 = vpop.f32.mrf.mxu0
      %v767 = vadd.f32 0.0, %v766
      %v768 = vpop.f32.mrf.mxu0
      %769 = vdwg.mxu0
      %v770 = vadd.f32 %v734, %v767
      %v771 = vld [vmem:[%s583] sm:$0xf]
      %s772 = scalar_lea.vmem %s6, 24
      %v773 = vld [vmem:[%s772] sm:$0xf]
      %v775 = vsel %vm613, %v771, 0
      %v778 = vsel %vm617, %v773, 0
      %780 = vmatpush.bf16.msra.mxu0 0
      %781 = vmatpush.bf16.msra.mxu0 0
      %782 = vmatpush.bf16.msra.mxu0 0
      %783 = vmatpush.bf16.msra.mxu0 0
      %784 = vmatpush.bf16.msra.mxu0 0
      %785 = vmatpush.bf16.msra.mxu0 0
      %786 = vmatpush.bf16.msra.mxu0 0
      %787 = vmatpush.bf16.msra.mxu0 %v778
      %788 = vmatmul.bf16.gmra.mxu0 %v775
      %v789 = vpop.f32.mrf.mxu0
      %v790 = vadd.f32 0.0, %v789
      %v791 = vpop.f32.mrf.mxu0
      %792 = vdwg.mxu0
      %v793 = vadd.f32 %v770, %v790
      %v794 = vld [vmem:[%s596] sm:$0xf]
      %s795 = scalar_lea.vmem %s6, 28
      %v796 = vld [vmem:[%s795] sm:$0xf]
      %v798 = vsel %vm613, %v794, 0
      %v801 = vsel %vm617, %v796, 0
      %803 = vmatpush.bf16.msra.mxu0 0
      %804 = vmatpush.bf16.msra.mxu0 0
      %805 = vmatpush.bf16.msra.mxu0 0
      %806 = vmatpush.bf16.msra.mxu0 0
      %807 = vmatpush.bf16.msra.mxu0 0
      %808 = vmatpush.bf16.msra.mxu0 0
      %809 = vmatpush.bf16.msra.mxu0 0
      %810 = vmatpush.bf16.msra.mxu0 %v801
      %811 = vmatmul.bf16.gmra.mxu0 %v798
      %v812 = vpop.f32.mrf.mxu0
      %v813 = vadd.f32 0.0, %v812
      %v814 = vpop.f32.mrf.mxu0
      %815 = vdwg.mxu0
      %v816 = vadd.f32 %v793, %v813
      %v817 = vld [vmem:[%s583] sm:$0xf]
      %v818 = vld [vmem:[%s583 + $0x4] sm:$0x1]
      %s819 = scalar_lea.vmem %s6, 32
      %v820 = vld [vmem:[%s819] sm:$0xf]
      %v823 = vunpack.c.l.b16 %v817
      %v824 = vunpack.c.l.b16 %v818
      %v825 = vpack.c.b16 %v824, %v823
      %v827 = vshrl.u32 %v825, 16
      %v829 = vshll.u32 %v825, 16
      %v831 = vrot.slane %v829, 1
      %v832 = vor.u32 %v827, %v831
      %v834 = vsel %vm613, %v832, 0
      %v837 = vsel %vm617, %v820, 0
      %839 = vmatpush.bf16.msra.mxu0 0
      %840 = vmatpush.bf16.msra.mxu0 0
      %841 = vmatpush.bf16.msra.mxu0 0
      %842 = vmatpush.bf16.msra.mxu0 0
      %843 = vmatpush.bf16.msra.mxu0 0
      %844 = vmatpush.bf16.msra.mxu0 0
      %845 = vmatpush.bf16.msra.mxu0 0
      %846 = vmatpush.bf16.msra.mxu0 %v837
      %847 = vmatmul.bf16.gmra.mxu0 %v834
      %v848 = vpop.f32.mrf.mxu0
      %v849 = vadd.f32 0.0, %v848
      %v850 = vpop.f32.mrf.mxu0
      %851 = vdwg.mxu0
      %v852 = vadd.f32 %v816, %v849
      %v853 = vld [vmem:[%s7] sm:$0x1]
      %v855 = vperm.slane %v853, 0
      %v857 = vmul.f32 %v852, %v855
      %v858 = vld [vmem:[%s8] sm:$0x1]
      %v860 = vperm.slane %v858, 0
      %v862 = vadd.f32 %v857, %v860
      %v863 = vmax.f32 %v862, 0.0
      %v864 = vpack.c.bf16 %v863, %v863
      %865 = vst [vmem:[%s606] sm:$0xf] %v864
      %p866 = scmp.lt.s32.totalorder %s24, 1
      %s867 = scalar_select %p866, %s24, 1
      %p868 = scmp.lt.s32.totalorder %s25, 7
      %s869 = scalar_select %p868, %s25, 7
      %s870 = smul.addr %s867, 8
      %s871 = sadd.s32 %s869, %s870
      %s872 = smul.addr %s871, 4
      %s873 = scalar_lea.vmem %s9, %s872
      // Predicated region
      $region57: #{stem_block_forward.5} parent=55 // pred_check
        %p874 = pneg %p303
      $region58: #{stem_block_forward.5} parent=55 // pred_check_branch
        %876 = sbr.rel (%p874) target = $region60
      $region59: #{stem_block_forward.5} parent=55 // pred_region
        _
      $region60: #{stem_block_forward.5} parent=55 // pred_fallthru
        _
    $region56: #{stem_block_forward.5} parent=5 // pred_fallthru
      _
    %p877 = scmp.le.s32.totalorder 2, %s15
    // Predicated region
    $region61: #{stem_block_forward.5} parent=5 // pred_check
      %p878 = pneg %p877
    $region62: #{stem_block_forward.5} parent=5 // pred_check_branch
      %880 = sbr.rel (%p878) target = $region64
    $region63: #{stem_block_forward.5} parent=5 // pred_region
      %s881 = ssub.s32 %s15, 2
      // Predicated region
      $region65: #{stem_block_forward.5} parent=63 // pred_check
        %p882 = pneg %p309
      $region66: #{stem_block_forward.5} parent=63 // pred_check_branch
        %884 = sbr.rel (%p882) target = $region68
      $region67: #{stem_block_forward.5} parent=63 // pred_region
        %p885 = scmp.lt.s32.totalorder %s26, 1
        %s886 = scalar_select %p885, %s26, 1
        %p887 = scmp.lt.s32.totalorder %s27, 7
        %s888 = scalar_select %p887, %s27, 7
        %s889 = smul.addr %s886, 8
        %s890 = sadd.s32 %s888, %s889
        %s891 = smul.addr %s890, 4
        %s892 = scalar_lea.vmem %s9, %s891
      $region68: #{stem_block_forward.5} parent=63 // pred_fallthru
        _
    $region64: #{stem_block_forward.5} parent=5 // pred_fallthru
      _
  $region6: #{stem_block_forward.5} parent=0 // loop_footer
    %s19 = sadd.s32 1, %s15
  $region7: #{stem_block_forward.5} parent=0 // loop_footer_branch
    %14 = sbr.rel target = $region3
  $region8: #{stem_block_forward.5} parent=0 // loop_exit
    _

// kernel: stem_block_forward.6
$region0: #{stem_block_forward.6}
  #allocation0 [shape = 'u32[]', space=smem, size = 0x4, offset = 0x4, fixed_abs, tag = 'smem constant byte address 0x4 - core index']
  #allocation1 [shape = 'u32[72,128]{1,0:T(1,128)}', space=vmem, size = 0x9000, scoped, tag = 'internal scratch']
  %s0 = inlined_call_operand.vmem [shape: bf16[128,128], index: 0, kind: input, shape index: {}]
  %s1 = inlined_call_operand.vmem [shape: bf16[128,128], index: 1, kind: input, shape index: {}]
  %s2 = inlined_call_operand.vmem [shape: f32[1,128], index: 2, kind: input, shape index: {}]
  %s3 = inlined_call_operand.vmem [shape: f32[1,128], index: 3, kind: input, shape index: {}]
  %s4 = inlined_call_operand.vmem [shape: bf16[128,128], index: 4, kind: output, shape index: {}]
  %s5 = sld [smem:[#allocation0]]
  $region26: #{stem_block_forward.6} parent=0
    _
  %s7 = ssub.s32 1, %s5
  %s8 = scalar_select 0, %s7, %s5
  // Predicated region
  $region2: #{stem_block_forward.6} parent=0 // pred_check
    _
  $region3: #{stem_block_forward.6} parent=0 // pred_check_branch
    %10 = sbr.rel (0) target = $region5
  $region4: #{stem_block_forward.6} parent=0 // pred_region
    _
  $region5: #{stem_block_forward.6} parent=0 // pred_fallthru
    _
  // Predicated region
  $region6: #{stem_block_forward.6} parent=0 // pred_check
    _
  $region7: #{stem_block_forward.6} parent=0 // pred_check_branch
    %12 = sbr.rel (0) target = $region9
  $region8: #{stem_block_forward.6} parent=0 // pred_region
    _
  $region9: #{stem_block_forward.6} parent=0 // pred_fallthru
    _
  // Predicated region
  $region10: #{stem_block_forward.6} parent=0 // pred_check
    _
  $region11: #{stem_block_forward.6} parent=0 // pred_check_branch
    %14 = sbr.rel (0) target = $region13
  $region12: #{stem_block_forward.6} parent=0 // pred_region
    _
  $region13: #{stem_block_forward.6} parent=0 // pred_fallthru
    _
  // Predicated region
  $region14: #{stem_block_forward.6} parent=0 // pred_check
    _
  $region15: #{stem_block_forward.6} parent=0 // pred_check_branch
    %16 = sbr.rel (0) target = $region17
  $region16: #{stem_block_forward.6} parent=0 // pred_region
    _
  $region17: #{stem_block_forward.6} parent=0 // pred_fallthru
    _
  %v17 = vld [vmem:[%s0] sm:$0xf]
  %v18 = vld [vmem:[%s0 + $0x4] sm:$0xf]
  %v19 = vld [vmem:[%s0 + $0x8] sm:$0xf]
  %v20 = vld [vmem:[%s0 + $0xc] sm:$0xf]
  %v21 = vld [vmem:[%s0 + $0x10] sm:$0xf]
  %v22 = vld [vmem:[%s0 + $0x14] sm:$0xf]
  %v23 = vld [vmem:[%s0 + $0x18] sm:$0xf]
  %v24 = vld [vmem:[%s0 + $0x1c] sm:$0xf]
  %v25 = vld [vmem:[%s0 + $0x20] sm:$0xf]
  %v26 = vld [vmem:[%s0 + $0x24] sm:$0xf]
  %v27 = vld [vmem:[%s0 + $0x28] sm:$0xf]
  %v28 = vld [vmem:[%s0 + $0x2c] sm:$0xf]
  %v29 = vld [vmem:[%s0 + $0x30] sm:$0xf]
  %v30 = vld [vmem:[%s0 + $0x34] sm:$0xf]
  %v31 = vld [vmem:[%s0 + $0x38] sm:$0xf]
  %v32 = vld [vmem:[%s0 + $0x3c] sm:$0xf]
  %v33 = vld [vmem:[%s1] sm:$0xf]
  %v34 = vld [vmem:[%s1 + $0x4] sm:$0xf]
  %v35 = vld [vmem:[%s1 + $0x8] sm:$0xf]
  %v36 = vld [vmem:[%s1 + $0xc] sm:$0xf]
  %v37 = vld [vmem:[%s1 + $0x10] sm:$0xf]
  %v38 = vld [vmem:[%s1 + $0x14] sm:$0xf]
  %v39 = vld [vmem:[%s1 + $0x18] sm:$0xf]
  %v40 = vld [vmem:[%s1 + $0x1c] sm:$0xf]
  %v41 = vld [vmem:[%s1 + $0x20] sm:$0xf]
  %v42 = vld [vmem:[%s1 + $0x24] sm:$0xf]
  %v43 = vld [vmem:[%s1 + $0x28] sm:$0xf]
  %v44 = vld [vmem:[%s1 + $0x2c] sm:$0xf]
  %v45 = vld [vmem:[%s1 + $0x30] sm:$0xf]
  %v46 = vld [vmem:[%s1 + $0x34] sm:$0xf]
  %v47 = vld [vmem:[%s1 + $0x38] sm:$0xf]
  %v48 = vld [vmem:[%s1 + $0x3c] sm:$0xf]
  %v65 = vunpack.c.l.b16 %v17
  %v66 = vunpack.c.l.b16 %v18
  %v67 = vunpack.c.l.b16 %v19
  %v68 = vunpack.c.l.b16 %v20
  %v69 = vunpack.c.l.b16 %v21
  %v70 = vunpack.c.l.b16 %v22
  %v71 = vunpack.c.l.b16 %v23
  %v72 = vunpack.c.l.b16 %v24
  %v73 = vunpack.c.l.b16 %v25
  %v74 = vunpack.c.l.b16 %v26
  %v75 = vunpack.c.l.b16 %v27
  %v76 = vunpack.c.l.b16 %v28
  %v77 = vunpack.c.l.b16 %v29
  %v78 = vunpack.c.l.b16 %v30
  %v79 = vunpack.c.l.b16 %v31
  %v80 = vunpack.c.l.b16 %v32
  %v81 = vpack.c.b16 %v66, %v65
  %v82 = vpack.c.b16 %v68, %v67
  %v83 = vpack.c.b16 %v70, %v69
  %v84 = vpack.c.b16 %v72, %v71
  %v85 = vpack.c.b16 %v74, %v73
  %v86 = vpack.c.b16 %v76, %v75
  %v87 = vpack.c.b16 %v78, %v77
  %v88 = vpack.c.b16 %v80, %v79
  %v113 = vunpack.c.l.b16 %v33
  %v114 = vunpack.c.l.b16 %v34
  %v115 = vunpack.c.l.b16 %v35
  %v116 = vunpack.c.l.b16 %v36
  %v117 = vunpack.c.l.b16 %v37
  %v118 = vunpack.c.l.b16 %v38
  %v119 = vunpack.c.l.b16 %v39
  %v120 = vunpack.c.l.b16 %v40
  %v121 = vunpack.c.l.b16 %v41
  %v122 = vunpack.c.l.b16 %v42
  %v123 = vunpack.c.l.b16 %v43
  %v124 = vunpack.c.l.b16 %v44
  %v125 = vunpack.c.l.b16 %v45
  %v126 = vunpack.c.l.b16 %v46
  %v127 = vunpack.c.l.b16 %v47
  %v128 = vunpack.c.l.b16 %v48
  %v129 = vpack.c.b16 %v114, %v113
  %v130 = vpack.c.b16 %v116, %v115
  %v131 = vpack.c.b16 %v118, %v117
  %v132 = vpack.c.b16 %v120, %v119
  %v133 = vpack.c.b16 %v122, %v121
  %v134 = vpack.c.b16 %v124, %v123
  %v135 = vpack.c.b16 %v126, %v125
  %v136 = vpack.c.b16 %v128, %v127
  %145 = vmatpush.bf16.msra.mxu0 %v136
  %146 = vmatpush.bf16.msra.mxu0 %v135
  %147 = vmatpush.bf16.msra.mxu0 %v134
  %148 = vmatpush.bf16.msra.mxu0 %v133
  %149 = vmatpush.bf16.msra.mxu0 %v132
  %150 = vmatpush.bf16.msra.mxu0 %v131
  %151 = vmatpush.bf16.msra.mxu0 %v130
  %152 = vmatpush.bf16.msra.mxu0 %v129
  %153 = vmatmul.bf16.gmra.mxu0 %v81
  %v154 = vpop.f32.mrf.mxu0
  %v155 = vadd.f32 0.0, %v154
  %v156 = vpop.f32.mrf.mxu0
  %v157 = vadd.f32 0.0, %v156
  %158 = vmatmul.bf16.gmra.mxu0 %v82
  %v159 = vpop.f32.mrf.mxu0
  %v160 = vadd.f32 0.0, %v159
  %v161 = vpop.f32.mrf.mxu0
  %v162 = vadd.f32 0.0, %v161
  %163 = vmatmul.bf16.gmra.mxu0 %v83
  %v164 = vpop.f32.mrf.mxu0
  %v165 = vadd.f32 0.0, %v164
  %v166 = vpop.f32.mrf.mxu0
  %v167 = vadd.f32 0.0, %v166
  %168 = vmatmul.bf16.gmra.mxu0 %v84
  %v169 = vpop.f32.mrf.mxu0
  %v170 = vadd.f32 0.0, %v169
  %v171 = vpop.f32.mrf.mxu0
  %v172 = vadd.f32 0.0, %v171
  %173 = vmatmul.bf16.gmra.mxu0 %v85
  %v174 = vpop.f32.mrf.mxu0
  %v175 = vadd.f32 0.0, %v174
  %v176 = vpop.f32.mrf.mxu0
  %v177 = vadd.f32 0.0, %v176
  %178 = vmatmul.bf16.gmra.mxu0 %v86
  %v179 = vpop.f32.mrf.mxu0
  %v180 = vadd.f32 0.0, %v179
  %v181 = vpop.f32.mrf.mxu0
  %v182 = vadd.f32 0.0, %v181
  %183 = vmatmul.bf16.gmra.mxu0 %v87
  %v184 = vpop.f32.mrf.mxu0
  %v185 = vadd.f32 0.0, %v184
  %v186 = vpop.f32.mrf.mxu0
  %v187 = vadd.f32 0.0, %v186
  %188 = vmatmul.bf16.gmra.mxu0 %v88
  %v189 = vpop.f32.mrf.mxu0
  %v190 = vadd.f32 0.0, %v189
  %v191 = vpop.f32.mrf.mxu0
  %v192 = vadd.f32 0.0, %v191
  %193 = vdwg.mxu0
  %v194 = vld [vmem:[%s2] sm:$0x1]
  %v196 = vperm.slane %v194, 0
  %v198 = vmul.f32 %v155, %v196
  %v199 = vmul.f32 %v157, %v196
  %v200 = vmul.f32 %v160, %v196
  %v201 = vmul.f32 %v162, %v196
  %v202 = vmul.f32 %v165, %v196
  %v203 = vmul.f32 %v167, %v196
  %v204 = vmul.f32 %v170, %v196
  %v205 = vmul.f32 %v172, %v196
  %v206 = vmul.f32 %v175, %v196
  %v207 = vmul.f32 %v177, %v196
  %v208 = vmul.f32 %v180, %v196
  %v209 = vmul.f32 %v182, %v196
  %v210 = vmul.f32 %v185, %v196
  %v211 = vmul.f32 %v187, %v196
  %v212 = vmul.f32 %v190, %v196
  %v213 = vmul.f32 %v192, %v196
  %v214 = vld [vmem:[%s3] sm:$0x1]
  %v216 = vperm.slane %v214, 0
  %v218 = vadd.f32 %v198, %v216
  %v219 = vadd.f32 %v199, %v216
  %v220 = vadd.f32 %v200, %v216
  %v221 = vadd.f32 %v201, %v216
  %v222 = vadd.f32 %v202, %v216
  %v223 = vadd.f32 %v203, %v216
  %v224 = vadd.f32 %v204, %v216
  %v225 = vadd.f32 %v205, %v216
  %v226 = vadd.f32 %v206, %v216
  %v227 = vadd.f32 %v207, %v216
  %v228 = vadd.f32 %v208, %v216
  %v229 = vadd.f32 %v209, %v216
  %v230 = vadd.f32 %v210, %v216
  %v231 = vadd.f32 %v211, %v216
  %v232 = vadd.f32 %v212, %v216
  %v233 = vadd.f32 %v213, %v216
  %v234 = vmax.f32 %v218, 0.0
  %v235 = vmax.f32 %v219, 0.0
  %v236 = vmax.f32 %v220, 0.0
  %v237 = vmax.f32 %v221, 0.0
  %v238 = vmax.f32 %v222, 0.0
  %v239 = vmax.f32 %v223, 0.0
  %v240 = vmax.f32 %v224, 0.0
  %v241 = vmax.f32 %v225, 0.0
  %v242 = vmax.f32 %v226, 0.0
  %v243 = vmax.f32 %v227, 0.0
  %v244 = vmax.f32 %v228, 0.0
  %v245 = vmax.f32 %v229, 0.0
  %v246 = vmax.f32 %v230, 0.0
  %v247 = vmax.f32 %v231, 0.0
  %v248 = vmax.f32 %v232, 0.0
  %v249 = vmax.f32 %v233, 0.0
  %v250 = vpack.c.bf16 %v234, %v234
  %v251 = vpack.c.bf16 %v235, %v235
  %v252 = vpack.c.bf16 %v236, %v236
  %v253 = vpack.c.bf16 %v237, %v237
  %v254 = vpack.c.bf16 %v238, %v238
  %v255 = vpack.c.bf16 %v239, %v239
  %v256 = vpack.c.bf16 %v240, %v240
  %v257 = vpack.c.bf16 %v241, %v241
  %v258 = vpack.c.bf16 %v242, %v242
  %v259 = vpack.c.bf16 %v243, %v243
  %v260 = vpack.c.bf16 %v244, %v244
  %v261 = vpack.c.bf16 %v245, %v245
  %v262 = vpack.c.bf16 %v246, %v246
  %v263 = vpack.c.bf16 %v247, %v247
  %v264 = vpack.c.bf16 %v248, %v248
  %v265 = vpack.c.bf16 %v249, %v249
  %266 = vst [vmem:[%s4] sm:$0xf] %v250
  %267 = vst [vmem:[%s4 + $0x4] sm:$0xf] %v251
  %268 = vst [vmem:[%s4 + $0x8] sm:$0xf] %v252
  %269 = vst [vmem:[%s4 + $0xc] sm:$0xf] %v253
  %270 = vst [vmem:[%s4 + $0x10] sm:$0xf] %v254
  %271 = vst [vmem:[%s4 + $0x14] sm:$0xf] %v255
  %272 = vst [vmem:[%s4 + $0x18] sm:$0xf] %v256
  %273 = vst [vmem:[%s4 + $0x1c] sm:$0xf] %v257
  %274 = vst [vmem:[%s4 + $0x20] sm:$0xf] %v258
  %275 = vst [vmem:[%s4 + $0x24] sm:$0xf] %v259
  %276 = vst [vmem:[%s4 + $0x28] sm:$0xf] %v260
  %277 = vst [vmem:[%s4 + $0x2c] sm:$0xf] %v261
  %278 = vst [vmem:[%s4 + $0x30] sm:$0xf] %v262
  %279 = vst [vmem:[%s4 + $0x34] sm:$0xf] %v263
  %280 = vst [vmem:[%s4 + $0x38] sm:$0xf] %v264
  %281 = vst [vmem:[%s4 + $0x3c] sm:$0xf] %v265
  // Predicated region
  $region18: #{stem_block_forward.6} parent=0 // pred_check
    _
  $region19: #{stem_block_forward.6} parent=0 // pred_check_branch
    %283 = sbr.rel (0) target = $region21
  $region20: #{stem_block_forward.6} parent=0 // pred_region
    _
  $region21: #{stem_block_forward.6} parent=0 // pred_fallthru
    _
  // Predicated region
  $region22: #{stem_block_forward.6} parent=0 // pred_check
    _
  $region23: #{stem_block_forward.6} parent=0 // pred_check_branch
    %285 = sbr.rel (0) target = $region25
  $region24: #{stem_block_forward.6} parent=0 // pred_region
    _
  $region25: #{stem_block_forward.6} parent=0 // pred_fallthru
    _

// kernel: stem_block_forward.8
$region0: #{stem_block_forward.8}
  #allocation0 [shape = 'u32[]', space=smem, size = 0x4, offset = 0x4, fixed_abs, tag = 'smem constant byte address 0x4 - core index']
  #allocation1 [shape = 'u32[72,128]{1,0:T(1,128)}', space=vmem, size = 0x9000, scoped, tag = 'internal scratch']
  %s0 = inlined_call_operand.vmem [shape: bf16[2,10,5,128], index: 0, kind: input, shape index: {}, may-alias: {0,2,4}]
  %s1 = inlined_call_operand.vmem [shape: bf16[2,10,5,128], index: 1, kind: input, shape index: {}, may-alias: {1,3,5}]
  %s2 = inlined_call_operand.vmem [shape: bf16[2,10,5,128], index: 2, kind: input, shape index: {}, may-alias: {0,2,4}]
  %s3 = inlined_call_operand.vmem [shape: bf16[2,10,5,128], index: 3, kind: input, shape index: {}, may-alias: {1,3,5}]
  %s4 = inlined_call_operand.vmem [shape: bf16[2,10,5,128], index: 4, kind: input, shape index: {}, may-alias: {0,2,4}]
  %s5 = inlined_call_operand.vmem [shape: bf16[2,10,5,128], index: 5, kind: input, shape index: {}, may-alias: {1,3,5}]
  %s6 = inlined_call_operand.vmem [shape: bf16[2,4,4,128], index: 6, kind: output, shape index: {}]
  %s7 = sld [smem:[#allocation0]]
  $region57: #{stem_block_forward.8} parent=0
    _
  %s9 = ssub.s32 1, %s7
  %s10 = scalar_select 0, %s9, %s7
  loop: start=0, step=1, limit=10
  $region2: #{stem_block_forward.8} parent=0 // loop_pre_header
    _
  $region3: #{stem_block_forward.8} parent=0 // loop_header
    %s12 = sphi 0, %s16
    %p13 = scmp.ge.s32.totalorder %s12, 10
    %s19 = sphi 0, %s31
    %s20 = sphi 0, %s27
    %s21 = sphi 0, %s19
    %s22 = sphi 0, %s20
    %s23 = sphi 0, %s21
    %s24 = sphi 0, %s22
    %s38 = sphi 0, %s40
    %s41 = sphi 0, %s38
    %s42 = sphi 0, %s41
    %s58 = sphi 0, %s42
    %s68 = sphi 0, %s70
    %s71 = sphi 0, %s68
    %s72 = sphi 0, %s71
    %s88 = sphi 0, %s72
    %s100 = sphi 0, %s102
    %s103 = sphi 0, %s100
    %s104 = sphi 0, %s103
    %s120 = sphi 0, %s104
    %s132 = sphi 0, %s134
    %s135 = sphi 0, %s132
    %s136 = sphi 0, %s135
    %s152 = sphi 0, %s136
    %s164 = sphi 0, %s166
    %s167 = sphi 0, %s164
    %s168 = sphi 0, %s167
    %s184 = sphi 0, %s168
    %s196 = sphi 0, %s198
    %s199 = sphi 0, %s196
    %s200 = sphi 0, %s199
    %s216 = sphi 0, %s200
    %s224 = sphi 0, %s226
    %s227 = sphi 0, %s224
    %s228 = sphi 0, %s227
    %s244 = sphi 0, %s228
  $region4: #{stem_block_forward.8} parent=0 // loop_header_branch
    %15 = sbr.rel (%p13) target = $region8
  $region5: #{stem_block_forward.8} parent=0 // loop_body
    %s17 = ssub.s32 %s12, 1
    %s18 = ssub.s32 %s12, 2
    %s25 = sadd.s32 1, %s20
    %p26 = scmp.ge.s32.totalorder %s25, 4
    %s27 = scalar_select %p26, 0, %s25
    %s28 = sadd.s32 1, %s19
    %s29 = scalar_select %p26, %s28, %s19
    %p30 = scmp.ge.s32.totalorder %s29, 2
    %s31 = scalar_select %p30, 0, %s29
    %s32 = smul.u32 %s20, 2
    %s33 = smul.u32 %s27, 2
    %s34 = ssub.s32 %s19, %s31
    %s35 = ssub.s32 %s32, %s33
    %s36 = sor.u32 %s34, %s35
    %p37 = scmp.eq.s32.totalorder %s36, 0
    %s39 = sadd.s32 %s38, 1
    %s40 = scalar_select %p37, %s38, %s39
    %p43 = pneg %p37
    %p44 = scmp.eq.s32.totalorder %s12, 7
    %p45 = por %p43, %p44
    %p46 = scmp.ne.s32.totalorder %s38, %s41
    %p47 = scmp.eq.s32.totalorder %s12, 0
    %p48 = por %p46, %p47
    %p49 = scmp.ne.s32.totalorder %s38, %s41
    %p50 = scmp.eq.s32.totalorder %s17, 7
    %p51 = por %p49, %p50
    %p52 = scmp.ne.s32.totalorder %s41, %s42
    %p53 = scmp.eq.s32.totalorder %s17, 0
    %p54 = por %p52, %p53
    %p55 = scmp.ne.s32.totalorder %s41, %s42
    %p56 = scmp.eq.s32.totalorder %s18, 7
    %p57 = por %p55, %p56
    %p59 = scmp.ne.s32.totalorder %s42, %s58
    %p60 = scmp.eq.s32.totalorder %s18, 0
    %p61 = por %p59, %p60
    %s62 = smul.u32 %s20, 2
    %s63 = smul.u32 %s27, 2
    %s64 = ssub.s32 %s19, %s31
    %s65 = ssub.s32 %s62, %s63
    %s66 = sor.u32 %s64, %s65
    %p67 = scmp.eq.s32.totalorder %s66, 0
    %s69 = sadd.s32 %s68, 1
    %s70 = scalar_select %p67, %s68, %s69
    %p73 = pneg %p67
    %p74 = scmp.eq.s32.totalorder %s12, 7
    %p75 = por %p73, %p74
    %p76 = scmp.ne.s32.totalorder %s68, %s71
    %p77 = scmp.eq.s32.totalorder %s12, 0
    %p78 = por %p76, %p77
    %p79 = scmp.ne.s32.totalorder %s68, %s71
    %p80 = scmp.eq.s32.totalorder %s17, 7
    %p81 = por %p79, %p80
    %p82 = scmp.ne.s32.totalorder %s71, %s72
    %p83 = scmp.eq.s32.totalorder %s17, 0
    %p84 = por %p82, %p83
    %p85 = scmp.ne.s32.totalorder %s71, %s72
    %p86 = scmp.eq.s32.totalorder %s18, 7
    %p87 = por %p85, %p86
    %p89 = scmp.ne.s32.totalorder %s72, %s88
    %p90 = scmp.eq.s32.totalorder %s18, 0
    %p91 = por %p89, %p90
    %s92 = smul.u32 %s20, 2
    %s93 = sadd.s32 %s92, 1
    %s94 = smul.u32 %s27, 2
    %s95 = sadd.s32 %s94, 1
    %s96 = ssub.s32 %s19, %s31
    %s97 = ssub.s32 %s93, %s95
    %s98 = sor.u32 %s96, %s97
    %p99 = scmp.eq.s32.totalorder %s98, 0
    %s101 = sadd.s32 %s100, 1
    %s102 = scalar_select %p99, %s100, %s101
    %p105 = pneg %p99
    %p106 = scmp.eq.s32.totalorder %s12, 7
    %p107 = por %p105, %p106
    %p108 = scmp.ne.s32.totalorder %s100, %s103
    %p109 = scmp.eq.s32.totalorder %s12, 0
    %p110 = por %p108, %p109
    %p111 = scmp.ne.s32.totalorder %s100, %s103
    %p112 = scmp.eq.s32.totalorder %s17, 7
    %p113 = por %p111, %p112
    %p114 = scmp.ne.s32.totalorder %s103, %s104
    %p115 = scmp.eq.s32.totalorder %s17, 0
    %p116 = por %p114, %p115
    %p117 = scmp.ne.s32.totalorder %s103, %s104
    %p118 = scmp.eq.s32.totalorder %s18, 7
    %p119 = por %p117, %p118
    %p121 = scmp.ne.s32.totalorder %s104, %s120
    %p122 = scmp.eq.s32.totalorder %s18, 0
    %p123 = por %p121, %p122
    %s124 = smul.u32 %s20, 2
    %s125 = sadd.s32 %s124, 1
    %s126 = smul.u32 %s27, 2
    %s127 = sadd.s32 %s126, 1
    %s128 = ssub.s32 %s19, %s31
    %s129 = ssub.s32 %s125, %s127
    %s130 = sor.u32 %s128, %s129
    %p131 = scmp.eq.s32.totalorder %s130, 0
    %s133 = sadd.s32 %s132, 1
    %s134 = scalar_select %p131, %s132, %s133
    %p137 = pneg %p131
    %p138 = scmp.eq.s32.totalorder %s12, 7
    %p139 = por %p137, %p138
    %p140 = scmp.ne.s32.totalorder %s132, %s135
    %p141 = scmp.eq.s32.totalorder %s12, 0
    %p142 = por %p140, %p141
    %p143 = scmp.ne.s32.totalorder %s132, %s135
    %p144 = scmp.eq.s32.totalorder %s17, 7
    %p145 = por %p143, %p144
    %p146 = scmp.ne.s32.totalorder %s135, %s136
    %p147 = scmp.eq.s32.totalorder %s17, 0
    %p148 = por %p146, %p147
    %p149 = scmp.ne.s32.totalorder %s135, %s136
    %p150 = scmp.eq.s32.totalorder %s18, 7
    %p151 = por %p149, %p150
    %p153 = scmp.ne.s32.totalorder %s136, %s152
    %p154 = scmp.eq.s32.totalorder %s18, 0
    %p155 = por %p153, %p154
    %s156 = smul.u32 %s20, 2
    %s157 = sadd.s32 %s156, 2
    %s158 = smul.u32 %s27, 2
    %s159 = sadd.s32 %s158, 2
    %s160 = ssub.s32 %s19, %s31
    %s161 = ssub.s32 %s157, %s159
    %s162 = sor.u32 %s160, %s161
    %p163 = scmp.eq.s32.totalorder %s162, 0
    %s165 = sadd.s32 %s164, 1
    %s166 = scalar_select %p163, %s164, %s165
    %p169 = pneg %p163
    %p170 = scmp.eq.s32.totalorder %s12, 7
    %p171 = por %p169, %p170
    %p172 = scmp.ne.s32.totalorder %s164, %s167
    %p173 = scmp.eq.s32.totalorder %s12, 0
    %p174 = por %p172, %p173
    %p175 = scmp.ne.s32.totalorder %s164, %s167
    %p176 = scmp.eq.s32.totalorder %s17, 7
    %p177 = por %p175, %p176
    %p178 = scmp.ne.s32.totalorder %s167, %s168
    %p179 = scmp.eq.s32.totalorder %s17, 0
    %p180 = por %p178, %p179
    %p181 = scmp.ne.s32.totalorder %s167, %s168
    %p182 = scmp.eq.s32.totalorder %s18, 7
    %p183 = por %p181, %p182
    %p185 = scmp.ne.s32.totalorder %s168, %s184
    %p186 = scmp.eq.s32.totalorder %s18, 0
    %p187 = por %p185, %p186
    %s188 = smul.u32 %s20, 2
    %s189 = sadd.s32 %s188, 2
    %s190 = smul.u32 %s27, 2
    %s191 = sadd.s32 %s190, 2
    %s192 = ssub.s32 %s19, %s31
    %s193 = ssub.s32 %s189, %s191
    %s194 = sor.u32 %s192, %s193
    %p195 = scmp.eq.s32.totalorder %s194, 0
    %s197 = sadd.s32 %s196, 1
    %s198 = scalar_select %p195, %s196, %s197
    %p201 = pneg %p195
    %p202 = scmp.eq.s32.totalorder %s12, 7
    %p203 = por %p201, %p202
    %p204 = scmp.ne.s32.totalorder %s196, %s199
    %p205 = scmp.eq.s32.totalorder %s12, 0
    %p206 = por %p204, %p205
    %p207 = scmp.ne.s32.totalorder %s196, %s199
    %p208 = scmp.eq.s32.totalorder %s17, 7
    %p209 = por %p207, %p208
    %p210 = scmp.ne.s32.totalorder %s199, %s200
    %p211 = scmp.eq.s32.totalorder %s17, 0
    %p212 = por %p210, %p211
    %p213 = scmp.ne.s32.totalorder %s199, %s200
    %p214 = scmp.eq.s32.totalorder %s18, 7
    %p215 = por %p213, %p214
    %p217 = scmp.ne.s32.totalorder %s200, %s216
    %p218 = scmp.eq.s32.totalorder %s18, 0
    %p219 = por %p217, %p218
    %s220 = ssub.s32 %s19, %s31
    %s221 = ssub.s32 %s20, %s27
    %s222 = sor.u32 %s220, %s221
    %p223 = scmp.eq.s32.totalorder %s222, 0
    %s225 = sadd.s32 %s224, 1
    %s226 = scalar_select %p223, %s224, %s225
    %p229 = pneg %p223
    %p230 = scmp.eq.s32.totalorder %s12, 7
    %p231 = por %p229, %p230
    %p232 = scmp.ne.s32.totalorder %s224, %s227
    %p233 = scmp.eq.s32.totalorder %s12, 0
    %p234 = por %p232, %p233
    %p235 = scmp.ne.s32.totalorder %s224, %s227
    %p236 = scmp.eq.s32.totalorder %s17, 7
    %p237 = por %p235, %p236
    %p238 = scmp.ne.s32.totalorder %s227, %s228
    %p239 = scmp.eq.s32.totalorder %s17, 0
    %p240 = por %p238, %p239
    %p241 = scmp.ne.s32.totalorder %s227, %s228
    %p242 = scmp.eq.s32.totalorder %s18, 7
    %p243 = por %p241, %p242
    %p245 = scmp.ne.s32.totalorder %s228, %s244
    %p246 = scmp.eq.s32.totalorder %s18, 0
    %p247 = por %p245, %p246
    %p248 = scmp.le.s32.totalorder 1, %s12
    %p249 = scmp.lt.s32.totalorder %s12, 9
    %p250 = pnand %p248, %p249
    %p251 = pneg %p250
    // Predicated region
    $region9: #{stem_block_forward.8} parent=5 // pred_check
      _
    $region10: #{stem_block_forward.8} parent=5 // pred_check_branch
      %253 = sbr.rel (%p250) target = $region12
    $region11: #{stem_block_forward.8} parent=5 // pred_region
      %s254 = ssub.s32 %s12, 1
    $region12: #{stem_block_forward.8} parent=5 // pred_fallthru
      _
    %p255 = scmp.lt.s32.totalorder %s12, 8
    // Predicated region
    $region13: #{stem_block_forward.8} parent=5 // pred_check
      %p256 = pneg %p255
    $region14: #{stem_block_forward.8} parent=5 // pred_check_branch
      %258 = sbr.rel (%p256) target = $region16
    $region15: #{stem_block_forward.8} parent=5 // pred_region
      // Predicated region
      $region17: #{stem_block_forward.8} parent=15 // pred_check
        %p259 = pneg %p48
      $region18: #{stem_block_forward.8} parent=15 // pred_check_branch
        %261 = sbr.rel (%p259) target = $region20
      $region19: #{stem_block_forward.8} parent=15 // pred_region
        %s262 = smul.u32 %s20, 2
        %p263 = scmp.lt.s32.totalorder %s19, 1
        %s264 = scalar_select %p263, %s19, 1
        %p265 = scmp.lt.s32.totalorder %s262, 9
        %s266 = scalar_select %p265, %s262, 9
        %s267 = smul.addr %s264, 10
        %s268 = sadd.s32 %s266, %s267
        %s269 = smul.addr %s268, 4
        %s270 = scalar_lea.vmem %s0, %s269
        %s271 = smul.u32 %s20, 2
      $region20: #{stem_block_forward.8} parent=15 // pred_fallthru
        _
      // Predicated region
      $region21: #{stem_block_forward.8} parent=15 // pred_check
        %p272 = pneg %p78
      $region22: #{stem_block_forward.8} parent=15 // pred_check_branch
        %274 = sbr.rel (%p272) target = $region24
      $region23: #{stem_block_forward.8} parent=15 // pred_region
        %s275 = smul.u32 %s20, 2
        %p276 = scmp.lt.s32.totalorder %s19, 1
        %s277 = scalar_select %p276, %s19, 1
        %p278 = scmp.lt.s32.totalorder %s275, 9
        %s279 = scalar_select %p278, %s275, 9
        %s280 = smul.addr %s277, 10
        %s281 = sadd.s32 %s279, %s280
        %s282 = smul.addr %s281, 4
        %s283 = scalar_lea.vmem %s1, %s282
        %s284 = smul.u32 %s20, 2
      $region24: #{stem_block_forward.8} parent=15 // pred_fallthru
        _
      // Predicated region
      $region25: #{stem_block_forward.8} parent=15 // pred_check
        %p285 = pneg %p110
      $region26: #{stem_block_forward.8} parent=15 // pred_check_branch
        %287 = sbr.rel (%p285) target = $region28
      $region27: #{stem_block_forward.8} parent=15 // pred_region
        %s288 = smul.u32 %s20, 2
        %s289 = sadd.s32 %s288, 1
        %p290 = scmp.lt.s32.totalorder %s19, 1
        %s291 = scalar_select %p290, %s19, 1
        %p292 = scmp.lt.s32.totalorder %s289, 9
        %s293 = scalar_select %p292, %s289, 9
        %s294 = smul.addr %s291, 10
        %s295 = sadd.s32 %s293, %s294
        %s296 = smul.addr %s295, 4
        %s297 = scalar_lea.vmem %s2, %s296
        %s298 = smul.u32 %s20, 2
        %s299 = sadd.s32 %s298, 1
      $region28: #{stem_block_forward.8} parent=15 // pred_fallthru
        _
      // Predicated region
      $region29: #{stem_block_forward.8} parent=15 // pred_check
        %p300 = pneg %p142
      $region30: #{stem_block_forward.8} parent=15 // pred_check_branch
        %302 = sbr.rel (%p300) target = $region32
      $region31: #{stem_block_forward.8} parent=15 // pred_region
        %s303 = smul.u32 %s20, 2
        %s304 = sadd.s32 %s303, 1
        %p305 = scmp.lt.s32.totalorder %s19, 1
        %s306 = scalar_select %p305, %s19, 1
        %p307 = scmp.lt.s32.totalorder %s304, 9
        %s308 = scalar_select %p307, %s304, 9
        %s309 = smul.addr %s306, 10
        %s310 = sadd.s32 %s308, %s309
        %s311 = smul.addr %s310, 4
        %s312 = scalar_lea.vmem %s3, %s311
        %s313 = smul.u32 %s20, 2
        %s314 = sadd.s32 %s313, 1
      $region32: #{stem_block_forward.8} parent=15 // pred_fallthru
        _
      // Predicated region
      $region33: #{stem_block_forward.8} parent=15 // pred_check
        %p315 = pneg %p174
      $region34: #{stem_block_forward.8} parent=15 // pred_check_branch
        %317 = sbr.rel (%p315) target = $region36
      $region35: #{stem_block_forward.8} parent=15 // pred_region
        %s318 = smul.u32 %s20, 2
        %s319 = sadd.s32 %s318, 2
        %p320 = scmp.lt.s32.totalorder %s19, 1
        %s321 = scalar_select %p320, %s19, 1
        %p322 = scmp.lt.s32.totalorder %s319, 9
        %s323 = scalar_select %p322, %s319, 9
        %s324 = smul.addr %s321, 10
        %s325 = sadd.s32 %s323, %s324
        %s326 = smul.addr %s325, 4
        %s327 = scalar_lea.vmem %s4, %s326
        %s328 = smul.u32 %s20, 2
        %s329 = sadd.s32 %s328, 2
      $region36: #{stem_block_forward.8} parent=15 // pred_fallthru
        _
      // Predicated region
      $region37: #{stem_block_forward.8} parent=15 // pred_check
        %p330 = pneg %p206
      $region38: #{stem_block_forward.8} parent=15 // pred_check_branch
        %332 = sbr.rel (%p330) target = $region40
      $region39: #{stem_block_forward.8} parent=15 // pred_region
        %s333 = smul.u32 %s20, 2
        %s334 = sadd.s32 %s333, 2
        %p335 = scmp.lt.s32.totalorder %s19, 1
        %s336 = scalar_select %p335, %s19, 1
        %p337 = scmp.lt.s32.totalorder %s334, 9
        %s338 = scalar_select %p337, %s334, 9
        %s339 = smul.addr %s336, 10
        %s340 = sadd.s32 %s338, %s339
        %s341 = smul.addr %s340, 4
        %s342 = scalar_lea.vmem %s5, %s341
        %s343 = smul.u32 %s20, 2
        %s344 = sadd.s32 %s343, 2
      $region40: #{stem_block_forward.8} parent=15 // pred_fallthru
        _
    $region16: #{stem_block_forward.8} parent=5 // pred_fallthru
      _
    %p345 = scmp.le.s32.totalorder 1, %s12
    %p346 = scmp.lt.s32.totalorder %s12, 9
    %p347 = pnand %p345, %p346
    %p348 = pneg %p347
    // Predicated region
    $region41: #{stem_block_forward.8} parent=5 // pred_check
      _
    $region42: #{stem_block_forward.8} parent=5 // pred_check_branch
      %350 = sbr.rel (%p347) target = $region44
    $region43: #{stem_block_forward.8} parent=5 // pred_region
      %s351 = ssub.s32 %s12, 1
      %s352 = smul.u32 %s22, 2
      %p353 = scmp.lt.s32.totalorder %s21, 1
      %s354 = scalar_select %p353, %s21, 1
      %p355 = scmp.lt.s32.totalorder %s352, 9
      %s356 = scalar_select %p355, %s352, 9
      %s357 = smul.addr %s354, 10
      %s358 = sadd.s32 %s356, %s357
      %s359 = smul.addr %s358, 4
      %s360 = scalar_lea.vmem %s0, %s359
      %p361 = pneg %p54
      %p362 = pneg %p51
      %s363 = smul.u32 %s22, 2
      %p364 = scmp.lt.s32.totalorder %s21, 1
      %s365 = scalar_select %p364, %s21, 1
      %p366 = scmp.lt.s32.totalorder %s363, 9
      %s367 = scalar_select %p366, %s363, 9
      %s368 = smul.addr %s365, 10
      %s369 = sadd.s32 %s367, %s368
      %s370 = smul.addr %s369, 4
      %s371 = scalar_lea.vmem %s1, %s370
      %p372 = pneg %p84
      %p373 = pneg %p81
      %s374 = smul.u32 %s22, 2
      %s375 = sadd.s32 %s374, 1
      %p376 = scmp.lt.s32.totalorder %s21, 1
      %s377 = scalar_select %p376, %s21, 1
      %p378 = scmp.lt.s32.totalorder %s375, 9
      %s379 = scalar_select %p378, %s375, 9
      %s380 = smul.addr %s377, 10
      %s381 = sadd.s32 %s379, %s380
      %s382 = smul.addr %s381, 4
      %s383 = scalar_lea.vmem %s2, %s382
      %p384 = pneg %p116
      %p385 = pneg %p113
      %s386 = smul.u32 %s22, 2
      %s387 = sadd.s32 %s386, 1
      %p388 = scmp.lt.s32.totalorder %s21, 1
      %s389 = scalar_select %p388, %s21, 1
      %p390 = scmp.lt.s32.totalorder %s387, 9
      %s391 = scalar_select %p390, %s387, 9
      %s392 = smul.addr %s389, 10
      %s393 = sadd.s32 %s391, %s392
      %s394 = smul.addr %s393, 4
      %s395 = scalar_lea.vmem %s3, %s394
      %p396 = pneg %p148
      %p397 = pneg %p145
      %s398 = smul.u32 %s22, 2
      %s399 = sadd.s32 %s398, 2
      %p400 = scmp.lt.s32.totalorder %s21, 1
      %s401 = scalar_select %p400, %s21, 1
      %p402 = scmp.lt.s32.totalorder %s399, 9
      %s403 = scalar_select %p402, %s399, 9
      %s404 = smul.addr %s401, 10
      %s405 = sadd.s32 %s403, %s404
      %s406 = smul.addr %s405, 4
      %s407 = scalar_lea.vmem %s4, %s406
      %p408 = pneg %p180
      %p409 = pneg %p177
      %s410 = smul.u32 %s22, 2
      %s411 = sadd.s32 %s410, 2
      %p412 = scmp.lt.s32.totalorder %s21, 1
      %s413 = scalar_select %p412, %s21, 1
      %p414 = scmp.lt.s32.totalorder %s411, 9
      %s415 = scalar_select %p414, %s411, 9
      %s416 = smul.addr %s413, 10
      %s417 = sadd.s32 %s415, %s416
      %s418 = smul.addr %s417, 4
      %s419 = scalar_lea.vmem %s5, %s418
      %p420 = pneg %p212
      %p421 = pneg %p209
      %p422 = pneg %p240
      %p423 = pneg %p237
      %p424 = scmp.lt.s32.totalorder %s21, 1
      %s425 = scalar_select %p424, %s21, 1
      %p426 = scmp.lt.s32.totalorder %s22, 3
      %s427 = scalar_select %p426, %s22, 3
      %s428 = smul.addr %s425, 4
      %s429 = sadd.s32 %s427, %s428
      %s430 = smul.addr %s429, 2
      %s431 = scalar_lea.vmem %s6, %s430
      %s432 = smul.u32 %s22, 2
      %p433 = scmp.lt.s32.totalorder %s21, 1
      %s434 = scalar_select %p433, %s21, 1
      %p435 = scmp.lt.s32.totalorder %s432, 9
      %s436 = scalar_select %p435, %s432, 9
      %s437 = smul.addr %s434, 10
      %s438 = sadd.s32 %s436, %s437
      %s439 = smul.addr %s438, 4
      %s440 = scalar_lea.vmem %s0, %s439
      %s441 = smul.u32 %s22, 2
      %s442 = smul.u32 %s22, 2
      %p443 = scmp.lt.s32.totalorder %s21, 1
      %s444 = scalar_select %p443, %s21, 1
      %p445 = scmp.lt.s32.totalorder %s442, 9
      %s446 = scalar_select %p445, %s442, 9
      %s447 = smul.addr %s444, 10
      %s448 = sadd.s32 %s446, %s447
      %s449 = smul.addr %s448, 4
      %s450 = scalar_lea.vmem %s1, %s449
      %s451 = smul.u32 %s22, 2
      %s452 = smul.u32 %s22, 2
      %s453 = sadd.s32 %s452, 1
      %p454 = scmp.lt.s32.totalorder %s21, 1
      %s455 = scalar_select %p454, %s21, 1
      %p456 = scmp.lt.s32.totalorder %s453, 9
      %s457 = scalar_select %p456, %s453, 9
      %s458 = smul.addr %s455, 10
      %s459 = sadd.s32 %s457, %s458
      %s460 = smul.addr %s459, 4
      %s461 = scalar_lea.vmem %s2, %s460
      %s462 = smul.u32 %s22, 2
      %s463 = sadd.s32 %s462, 1
      %s464 = smul.u32 %s22, 2
      %s465 = sadd.s32 %s464, 1
      %p466 = scmp.lt.s32.totalorder %s21, 1
      %s467 = scalar_select %p466, %s21, 1
      %p468 = scmp.lt.s32.totalorder %s465, 9
      %s469 = scalar_select %p468, %s465, 9
      %s470 = smul.addr %s467, 10
      %s471 = sadd.s32 %s469, %s470
      %s472 = smul.addr %s471, 4
      %s473 = scalar_lea.vmem %s3, %s472
      %s474 = smul.u32 %s22, 2
      %s475 = sadd.s32 %s474, 1
      %s476 = smul.u32 %s22, 2
      %s477 = sadd.s32 %s476, 2
      %p478 = scmp.lt.s32.totalorder %s21, 1
      %s479 = scalar_select %p478, %s21, 1
      %p480 = scmp.lt.s32.totalorder %s477, 9
      %s481 = scalar_select %p480, %s477, 9
      %s482 = smul.addr %s479, 10
      %s483 = sadd.s32 %s481, %s482
      %s484 = smul.addr %s483, 4
      %s485 = scalar_lea.vmem %s4, %s484
      %s486 = smul.u32 %s22, 2
      %s487 = sadd.s32 %s486, 2
      %s488 = smul.u32 %s22, 2
      %s489 = sadd.s32 %s488, 2
      %p490 = scmp.lt.s32.totalorder %s21, 1
      %s491 = scalar_select %p490, %s21, 1
      %p492 = scmp.lt.s32.totalorder %s489, 9
      %s493 = scalar_select %p492, %s489, 9
      %s494 = smul.addr %s491, 10
      %s495 = sadd.s32 %s493, %s494
      %s496 = smul.addr %s495, 4
      %s497 = scalar_lea.vmem %s5, %s496
      %s498 = smul.u32 %s22, 2
      %s499 = sadd.s32 %s498, 2
      %p500 = scmp.lt.s32.totalorder %s21, 1
      %s501 = scalar_select %p500, %s21, 1
      %p502 = scmp.lt.s32.totalorder %s22, 3
      %s503 = scalar_select %p502, %s22, 3
      %s504 = smul.addr %s501, 4
      %s505 = sadd.s32 %s503, %s504
      %s506 = smul.addr %s505, 2
      %s507 = scalar_lea.vmem %s6, %s506
      %v508 = vld [vmem:[%s440] sm:$0x3]
      %v509 = vld [vmem:[%s450] sm:$0x3]
      %v510 = vunpack.c.l.bf16 %v508
      %v511 = vunpack.c.l.bf16 %v509
      %v512 = vmax.f32 %v510, %v511
      %v513 = vpack.c.bf16 %v512, %v512
      %v514 = vld [vmem:[%s440] sm:$0x7]
      %v515 = vunpack.c.l.bf16 %v513
      %v516 = vunpack.c.l.bf16 %v514
      %v518 = vrot.slane %v516, 1
      %v520 = vmax.f32 %v515, %v518
      %v521 = vpack.c.bf16 %v520, %v520
      %v522 = vld [vmem:[%s461] sm:$0x3]
      %v523 = vunpack.c.l.bf16 %v521
      %v524 = vunpack.c.l.bf16 %v522
      %v525 = vmax.f32 %v523, %v524
      %v526 = vpack.c.bf16 %v525, %v525
      %v527 = vld [vmem:[%s473] sm:$0x3]
      %v528 = vunpack.c.l.bf16 %v526
      %v529 = vunpack.c.l.bf16 %v527
      %v530 = vmax.f32 %v528, %v529
      %v531 = vpack.c.bf16 %v530, %v530
      %v532 = vld [vmem:[%s461] sm:$0x7]
      %v533 = vunpack.c.l.bf16 %v531
      %v534 = vunpack.c.l.bf16 %v532
      %v536 = vrot.slane %v534, 1
      %v538 = vmax.f32 %v533, %v536
      %v539 = vpack.c.bf16 %v538, %v538
      %v540 = vld [vmem:[%s485] sm:$0x3]
      %v541 = vunpack.c.l.bf16 %v539
      %v542 = vunpack.c.l.bf16 %v540
      %v543 = vmax.f32 %v541, %v542
      %v544 = vpack.c.bf16 %v543, %v543
      %v545 = vld [vmem:[%s497] sm:$0x3]
      %v546 = vunpack.c.l.bf16 %v544
      %v547 = vunpack.c.l.bf16 %v545
      %v548 = vmax.f32 %v546, %v547
      %v549 = vpack.c.bf16 %v548, %v548
      %v550 = vld [vmem:[%s485] sm:$0x7]
      %v551 = vunpack.c.l.bf16 %v549
      %v552 = vunpack.c.l.bf16 %v550
      %v554 = vrot.slane %v552, 1
      %v556 = vmax.f32 %v551, %v554
      %v557 = vpack.c.bf16 %v556, %v556
      %558 = vst [vmem:[%s507] sm:$0x3] %v557
      %p559 = scmp.lt.s32.totalorder %s21, 1
      %s560 = scalar_select %p559, %s21, 1
      %p561 = scmp.lt.s32.totalorder %s22, 3
      %s562 = scalar_select %p561, %s22, 3
      %s563 = smul.addr %s560, 4
      %s564 = sadd.s32 %s562, %s563
      %s565 = smul.addr %s564, 2
      %s566 = scalar_lea.vmem %s6, %s565
      // Predicated region
      $region45: #{stem_block_forward.8} parent=43 // pred_check
        %p567 = pneg %p237
      $region46: #{stem_block_forward.8} parent=43 // pred_check_branch
        %569 = sbr.rel (%p567) target = $region48
      $region47: #{stem_block_forward.8} parent=43 // pred_region
        _
      $region48: #{stem_block_forward.8} parent=43 // pred_fallthru
        _
    $region44: #{stem_block_forward.8} parent=5 // pred_fallthru
      _
    %p570 = scmp.le.s32.totalorder 2, %s12
    // Predicated region
    $region49: #{stem_block_forward.8} parent=5 // pred_check
      %p571 = pneg %p570
    $region50: #{stem_block_forward.8} parent=5 // pred_check_branch
      %573 = sbr.rel (%p571) target = $region52
    $region51: #{stem_block_forward.8} parent=5 // pred_region
      %s574 = ssub.s32 %s12, 2
      // Predicated region
      $region53: #{stem_block_forward.8} parent=51 // pred_check
        %p575 = pneg %p243
      $region54: #{stem_block_forward.8} parent=51 // pred_check_branch
        %577 = sbr.rel (%p575) target = $region56
      $region55: #{stem_block_forward.8} parent=51 // pred_region
        %p578 = scmp.lt.s32.totalorder %s23, 1
        %s579 = scalar_select %p578, %s23, 1
        %p580 = scmp.lt.s32.totalorder %s24, 3
        %s581 = scalar_select %p580, %s24, 3
        %s582 = smul.addr %s579, 4
        %s583 = sadd.s32 %s581, %s582
        %s584 = smul.addr %s583, 2
        %s585 = scalar_lea.vmem %s6, %s584
      $region56: #{stem_block_forward.8} parent=51 // pred_fallthru
        _
    $region52: #{stem_block_forward.8} parent=5 // pred_fallthru
      _
  $region6: #{stem_block_forward.8} parent=0 // loop_footer
    %s16 = sadd.s32 1, %s12
  $region7: #{stem_block_forward.8} parent=0 // loop_footer_branch
    %11 = sbr.rel target = $region3
  $region8: #{stem_block_forward.8} parent=0 // loop_exit
    _

// kernel: stem_block_forward.7
$region0: #{stem_block_forward.7}
  #allocation0 [shape = 'u32[]', space=smem, size = 0x4, offset = 0x4, fixed_abs, tag = 'smem constant byte address 0x4 - core index']
  #allocation1 [shape = 'u32[72,128]{1,0:T(1,128)}', space=vmem, size = 0x9000, scoped, tag = 'internal scratch']
  %s0 = inlined_call_operand.vmem [shape: bf16[2,10,5,128], index: 0, kind: input, shape index: {}, may-alias: {0,2,4}]
  %s1 = inlined_call_operand.vmem [shape: bf16[2,10,5,128], index: 1, kind: input, shape index: {}, may-alias: {1,3,5}]
  %s2 = inlined_call_operand.vmem [shape: bf16[2,10,5,128], index: 2, kind: input, shape index: {}, may-alias: {0,2,4}]
  %s3 = inlined_call_operand.vmem [shape: bf16[2,10,5,128], index: 3, kind: input, shape index: {}, may-alias: {1,3,5}]
  %s4 = inlined_call_operand.vmem [shape: bf16[2,10,5,128], index: 4, kind: input, shape index: {}, may-alias: {0,2,4}]
  %s5 = inlined_call_operand.vmem [shape: bf16[2,10,5,128], index: 5, kind: input, shape index: {}, may-alias: {1,3,5}]
  %s6 = inlined_call_operand.vmem [shape: bf16[9,128,128], index: 6, kind: input, shape index: {}]
  %s7 = inlined_call_operand.vmem [shape: f32[1,128], index: 7, kind: input, shape index: {}]
  %s8 = inlined_call_operand.vmem [shape: f32[1,128], index: 8, kind: input, shape index: {}]
  %s9 = inlined_call_operand.vmem [shape: bf16[2,4,4,128], index: 9, kind: output, shape index: {}]
  %s10 = sld [smem:[#allocation0]]
  $region69: #{stem_block_forward.7} parent=0
    _
  %s12 = ssub.s32 1, %s10
  %s13 = scalar_select 0, %s12, %s10
  loop: start=0, step=1, limit=10
  $region2: #{stem_block_forward.7} parent=0 // loop_pre_header
    _
  $region3: #{stem_block_forward.7} parent=0 // loop_header
    %s15 = sphi 0, %s19
    %p16 = scmp.ge.s32.totalorder %s15, 10
    %s22 = sphi 0, %s34
    %s23 = sphi 0, %s30
    %s24 = sphi 0, %s22
    %s25 = sphi 0, %s23
    %s26 = sphi 0, %s24
    %s27 = sphi 0, %s25
    %s41 = sphi 0, %s43
    %s44 = sphi 0, %s41
    %s45 = sphi 0, %s44
    %s61 = sphi 0, %s45
    %s71 = sphi 0, %s73
    %s74 = sphi 0, %s71
    %s75 = sphi 0, %s74
    %s91 = sphi 0, %s75
    %s103 = sphi 0, %s105
    %s106 = sphi 0, %s103
    %s107 = sphi 0, %s106
    %s123 = sphi 0, %s107
    %s135 = sphi 0, %s137
    %s138 = sphi 0, %s135
    %s139 = sphi 0, %s138
    %s155 = sphi 0, %s139
    %s167 = sphi 0, %s169
    %s170 = sphi 0, %s167
    %s171 = sphi 0, %s170
    %s187 = sphi 0, %s171
    %s199 = sphi 0, %s201
    %s202 = sphi 0, %s199
    %s203 = sphi 0, %s202
    %s219 = sphi 0, %s203
    %s223 = sphi 0, %s223
    %s225 = sphi 0, %s223
    %s226 = sphi 0, %s225
    %s240 = sphi 0, %s226
    %s244 = sphi 0, %s244
    %s246 = sphi 0, %s244
    %s247 = sphi 0, %s246
    %s261 = sphi 0, %s247
    %s265 = sphi 0, %s265
    %s267 = sphi 0, %s265
    %s268 = sphi 0, %s267
    %s282 = sphi 0, %s268
    %s290 = sphi 0, %s292
    %s293 = sphi 0, %s290
    %s294 = sphi 0, %s293
    %s310 = sphi 0, %s294
  $region4: #{stem_block_forward.7} parent=0 // loop_header_branch
    %18 = sbr.rel (%p16) target = $region8
  $region5: #{stem_block_forward.7} parent=0 // loop_body
    %s20 = ssub.s32 %s15, 1
    %s21 = ssub.s32 %s15, 2
    %s28 = sadd.s32 1, %s23
    %p29 = scmp.ge.s32.totalorder %s28, 4
    %s30 = scalar_select %p29, 0, %s28
    %s31 = sadd.s32 1, %s22
    %s32 = scalar_select %p29, %s31, %s22
    %p33 = scmp.ge.s32.totalorder %s32, 2
    %s34 = scalar_select %p33, 0, %s32
    %s35 = smul.u32 %s23, 2
    %s36 = smul.u32 %s30, 2
    %s37 = ssub.s32 %s22, %s34
    %s38 = ssub.s32 %s35, %s36
    %s39 = sor.u32 %s37, %s38
    %p40 = scmp.eq.s32.totalorder %s39, 0
    %s42 = sadd.s32 %s41, 1
    %s43 = scalar_select %p40, %s41, %s42
    %p46 = pneg %p40
    %p47 = scmp.eq.s32.totalorder %s15, 7
    %p48 = por %p46, %p47
    %p49 = scmp.ne.s32.totalorder %s41, %s44
    %p50 = scmp.eq.s32.totalorder %s15, 0
    %p51 = por %p49, %p50
    %p52 = scmp.ne.s32.totalorder %s41, %s44
    %p53 = scmp.eq.s32.totalorder %s20, 7
    %p54 = por %p52, %p53
    %p55 = scmp.ne.s32.totalorder %s44, %s45
    %p56 = scmp.eq.s32.totalorder %s20, 0
    %p57 = por %p55, %p56
    %p58 = scmp.ne.s32.totalorder %s44, %s45
    %p59 = scmp.eq.s32.totalorder %s21, 7
    %p60 = por %p58, %p59
    %p62 = scmp.ne.s32.totalorder %s45, %s61
    %p63 = scmp.eq.s32.totalorder %s21, 0
    %p64 = por %p62, %p63
    %s65 = smul.u32 %s23, 2
    %s66 = smul.u32 %s30, 2
    %s67 = ssub.s32 %s22, %s34
    %s68 = ssub.s32 %s65, %s66
    %s69 = sor.u32 %s67, %s68
    %p70 = scmp.eq.s32.totalorder %s69, 0
    %s72 = sadd.s32 %s71, 1
    %s73 = scalar_select %p70, %s71, %s72
    %p76 = pneg %p70
    %p77 = scmp.eq.s32.totalorder %s15, 7
    %p78 = por %p76, %p77
    %p79 = scmp.ne.s32.totalorder %s71, %s74
    %p80 = scmp.eq.s32.totalorder %s15, 0
    %p81 = por %p79, %p80
    %p82 = scmp.ne.s32.totalorder %s71, %s74
    %p83 = scmp.eq.s32.totalorder %s20, 7
    %p84 = por %p82, %p83
    %p85 = scmp.ne.s32.totalorder %s74, %s75
    %p86 = scmp.eq.s32.totalorder %s20, 0
    %p87 = por %p85, %p86
    %p88 = scmp.ne.s32.totalorder %s74, %s75
    %p89 = scmp.eq.s32.totalorder %s21, 7
    %p90 = por %p88, %p89
    %p92 = scmp.ne.s32.totalorder %s75, %s91
    %p93 = scmp.eq.s32.totalorder %s21, 0
    %p94 = por %p92, %p93
    %s95 = smul.u32 %s23, 2
    %s96 = sadd.s32 %s95, 1
    %s97 = smul.u32 %s30, 2
    %s98 = sadd.s32 %s97, 1
    %s99 = ssub.s32 %s22, %s34
    %s100 = ssub.s32 %s96, %s98
    %s101 = sor.u32 %s99, %s100
    %p102 = scmp.eq.s32.totalorder %s101, 0
    %s104 = sadd.s32 %s103, 1
    %s105 = scalar_select %p102, %s103, %s104
    %p108 = pneg %p102
    %p109 = scmp.eq.s32.totalorder %s15, 7
    %p110 = por %p108, %p109
    %p111 = scmp.ne.s32.totalorder %s103, %s106
    %p112 = scmp.eq.s32.totalorder %s15, 0
    %p113 = por %p111, %p112
    %p114 = scmp.ne.s32.totalorder %s103, %s106
    %p115 = scmp.eq.s32.totalorder %s20, 7
    %p116 = por %p114, %p115
    %p117 = scmp.ne.s32.totalorder %s106, %s107
    %p118 = scmp.eq.s32.totalorder %s20, 0
    %p119 = por %p117, %p118
    %p120 = scmp.ne.s32.totalorder %s106, %s107
    %p121 = scmp.eq.s32.totalorder %s21, 7
    %p122 = por %p120, %p121
    %p124 = scmp.ne.s32.totalorder %s107, %s123
    %p125 = scmp.eq.s32.totalorder %s21, 0
    %p126 = por %p124, %p125
    %s127 = smul.u32 %s23, 2
    %s128 = sadd.s32 %s127, 1
    %s129 = smul.u32 %s30, 2
    %s130 = sadd.s32 %s129, 1
    %s131 = ssub.s32 %s22, %s34
    %s132 = ssub.s32 %s128, %s130
    %s133 = sor.u32 %s131, %s132
    %p134 = scmp.eq.s32.totalorder %s133, 0
    %s136 = sadd.s32 %s135, 1
    %s137 = scalar_select %p134, %s135, %s136
    %p140 = pneg %p134
    %p141 = scmp.eq.s32.totalorder %s15, 7
    %p142 = por %p140, %p141
    %p143 = scmp.ne.s32.totalorder %s135, %s138
    %p144 = scmp.eq.s32.totalorder %s15, 0
    %p145 = por %p143, %p144
    %p146 = scmp.ne.s32.totalorder %s135, %s138
    %p147 = scmp.eq.s32.totalorder %s20, 7
    %p148 = por %p146, %p147
    %p149 = scmp.ne.s32.totalorder %s138, %s139
    %p150 = scmp.eq.s32.totalorder %s20, 0
    %p151 = por %p149, %p150
    %p152 = scmp.ne.s32.totalorder %s138, %s139
    %p153 = scmp.eq.s32.totalorder %s21, 7
    %p154 = por %p152, %p153
    %p156 = scmp.ne.s32.totalorder %s139, %s155
    %p157 = scmp.eq.s32.totalorder %s21, 0
    %p158 = por %p156, %p157
    %s159 = smul.u32 %s23, 2
    %s160 = sadd.s32 %s159, 2
    %s161 = smul.u32 %s30, 2
    %s162 = sadd.s32 %s161, 2
    %s163 = ssub.s32 %s22, %s34
    %s164 = ssub.s32 %s160, %s162
    %s165 = sor.u32 %s163, %s164
    %p166 = scmp.eq.s32.totalorder %s165, 0
    %s168 = sadd.s32 %s167, 1
    %s169 = scalar_select %p166, %s167, %s168
    %p172 = pneg %p166
    %p173 = scmp.eq.s32.totalorder %s15, 7
    %p174 = por %p172, %p173
    %p175 = scmp.ne.s32.totalorder %s167, %s170
    %p176 = scmp.eq.s32.totalorder %s15, 0
    %p177 = por %p175, %p176
    %p178 = scmp.ne.s32.totalorder %s167, %s170
    %p179 = scmp.eq.s32.totalorder %s20, 7
    %p180 = por %p178, %p179
    %p181 = scmp.ne.s32.totalorder %s170, %s171
    %p182 = scmp.eq.s32.totalorder %s20, 0
    %p183 = por %p181, %p182
    %p184 = scmp.ne.s32.totalorder %s170, %s171
    %p185 = scmp.eq.s32.totalorder %s21, 7
    %p186 = por %p184, %p185
    %p188 = scmp.ne.s32.totalorder %s171, %s187
    %p189 = scmp.eq.s32.totalorder %s21, 0
    %p190 = por %p188, %p189
    %s191 = smul.u32 %s23, 2
    %s192 = sadd.s32 %s191, 2
    %s193 = smul.u32 %s30, 2
    %s194 = sadd.s32 %s193, 2
    %s195 = ssub.s32 %s22, %s34
    %s196 = ssub.s32 %s192, %s194
    %s197 = sor.u32 %s195, %s196
    %p198 = scmp.eq.s32.totalorder %s197, 0
    %s200 = sadd.s32 %s199, 1
    %s201 = scalar_select %p198, %s199, %s200
    %p204 = pneg %p198
    %p205 = scmp.eq.s32.totalorder %s15, 7
    %p206 = por %p204, %p205
    %p207 = scmp.ne.s32.totalorder %s199, %s202
    %p208 = scmp.eq.s32.totalorder %s15, 0
    %p209 = por %p207, %p208
    %p210 = scmp.ne.s32.totalorder %s199, %s202
    %p211 = scmp.eq.s32.totalorder %s20, 7
    %p212 = por %p210, %p211
    %p213 = scmp.ne.s32.totalorder %s202, %s203
    %p214 = scmp.eq.s32.totalorder %s20, 0
    %p215 = por %p213, %p214
    %p216 = scmp.ne.s32.totalorder %s202, %s203
    %p217 = scmp.eq.s32.totalorder %s21, 7
    %p218 = por %p216, %p217
    %p220 = scmp.ne.s32.totalorder %s203, %s219
    %p221 = scmp.eq.s32.totalorder %s21, 0
    %p222 = por %p220, %p221
    %s224 = sadd.s32 %s223, 1
    %p227 = scmp.eq.s32.totalorder %s15, 7
    %p228 = scmp.ne.s32.totalorder %s223, %s225
    %p229 = scmp.eq.s32.totalorder %s15, 0
    %p230 = por %p228, %p229
    %p231 = scmp.ne.s32.totalorder %s223, %s225
    %p232 = scmp.eq.s32.totalorder %s20, 7
    %p233 = por %p231, %p232
    %p234 = scmp.ne.s32.totalorder %s225, %s226
    %p235 = scmp.eq.s32.totalorder %s20, 0
    %p236 = por %p234, %p235
    %p237 = scmp.ne.s32.totalorder %s225, %s226
    %p238 = scmp.eq.s32.totalorder %s21, 7
    %p239 = por %p237, %p238
    %p241 = scmp.ne.s32.totalorder %s226, %s240
    %p242 = scmp.eq.s32.totalorder %s21, 0
    %p243 = por %p241, %p242
    %s245 = sadd.s32 %s244, 1
    %p248 = scmp.eq.s32.totalorder %s15, 7
    %p249 = scmp.ne.s32.totalorder %s244, %s246
    %p250 = scmp.eq.s32.totalorder %s15, 0
    %p251 = por %p249, %p250
    %p252 = scmp.ne.s32.totalorder %s244, %s246
    %p253 = scmp.eq.s32.totalorder %s20, 7
    %p254 = por %p252, %p253
    %p255 = scmp.ne.s32.totalorder %s246, %s247
    %p256 = scmp.eq.s32.totalorder %s20, 0
    %p257 = por %p255, %p256
    %p258 = scmp.ne.s32.totalorder %s246, %s247
    %p259 = scmp.eq.s32.totalorder %s21, 7
    %p260 = por %p258, %p259
    %p262 = scmp.ne.s32.totalorder %s247, %s261
    %p263 = scmp.eq.s32.totalorder %s21, 0
    %p264 = por %p262, %p263
    %s266 = sadd.s32 %s265, 1
    %p269 = scmp.eq.s32.totalorder %s15, 7
    %p270 = scmp.ne.s32.totalorder %s265, %s267
    %p271 = scmp.eq.s32.totalorder %s15, 0
    %p272 = por %p270, %p271
    %p273 = scmp.ne.s32.totalorder %s265, %s267
    %p274 = scmp.eq.s32.totalorder %s20, 7
    %p275 = por %p273, %p274
    %p276 = scmp.ne.s32.totalorder %s267, %s268
    %p277 = scmp.eq.s32.totalorder %s20, 0
    %p278 = por %p276, %p277
    %p279 = scmp.ne.s32.totalorder %s267, %s268
    %p280 = scmp.eq.s32.totalorder %s21, 7
    %p281 = por %p279, %p280
    %p283 = scmp.ne.s32.totalorder %s268, %s282
    %p284 = scmp.eq.s32.totalorder %s21, 0
    %p285 = por %p283, %p284
    %s286 = ssub.s32 %s22, %s34
    %s287 = ssub.s32 %s23, %s30
    %s288 = sor.u32 %s286, %s287
    %p289 = scmp.eq.s32.totalorder %s288, 0
    %s291 = sadd.s32 %s290, 1
    %s292 = scalar_select %p289, %s290, %s291
    %p295 = pneg %p289
    %p296 = scmp.eq.s32.totalorder %s15, 7
    %p297 = por %p295, %p296
    %p298 = scmp.ne.s32.totalorder %s290, %s293
    %p299 = scmp.eq.s32.totalorder %s15, 0
    %p300 = por %p298, %p299
    %p301 = scmp.ne.s32.totalorder %s290, %s293
    %p302 = scmp.eq.s32.totalorder %s20, 7
    %p303 = por %p301, %p302
    %p304 = scmp.ne.s32.totalorder %s293, %s294
    %p305 = scmp.eq.s32.totalorder %s20, 0
    %p306 = por %p304, %p305
    %p307 = scmp.ne.s32.totalorder %s293, %s294
    %p308 = scmp.eq.s32.totalorder %s21, 7
    %p309 = por %p307, %p308
    %p311 = scmp.ne.s32.totalorder %s294, %s310
    %p312 = scmp.eq.s32.totalorder %s21, 0
    %p313 = por %p311, %p312
    %p314 = scmp.le.s32.totalorder 1, %s15
    %p315 = scmp.lt.s32.totalorder %s15, 9
    %p316 = pnand %p314, %p315
    %p317 = pneg %p316
    // Predicated region
    $region9: #{stem_block_forward.7} parent=5 // pred_check
      _
    $region10: #{stem_block_forward.7} parent=5 // pred_check_branch
      %319 = sbr.rel (%p316) target = $region12
    $region11: #{stem_block_forward.7} parent=5 // pred_region
      %s320 = ssub.s32 %s15, 1
      // Predicated region
      $region13: #{stem_block_forward.7} parent=11 // pred_check
        %p321 = pneg %p236
      $region14: #{stem_block_forward.7} parent=11 // pred_check_branch
        %323 = sbr.rel (%p321) target = $region16
      $region15: #{stem_block_forward.7} parent=11 // pred_region
        _
      $region16: #{stem_block_forward.7} parent=11 // pred_fallthru
        _
      // Predicated region
      $region17: #{stem_block_forward.7} parent=11 // pred_check
        %p324 = pneg %p257
      $region18: #{stem_block_forward.7} parent=11 // pred_check_branch
        %326 = sbr.rel (%p324) target = $region20
      $region19: #{stem_block_forward.7} parent=11 // pred_region
        _
      $region20: #{stem_block_forward.7} parent=11 // pred_fallthru
        _
      // Predicated region
      $region21: #{stem_block_forward.7} parent=11 // pred_check
        %p327 = pneg %p278
      $region22: #{stem_block_forward.7} parent=11 // pred_check_branch
        %329 = sbr.rel (%p327) target = $region24
      $region23: #{stem_block_forward.7} parent=11 // pred_region
        _
      $region24: #{stem_block_forward.7} parent=11 // pred_fallthru
        _
    $region12: #{stem_block_forward.7} parent=5 // pred_fallthru
      _
    %p330 = scmp.lt.s32.totalorder %s15, 8
    // Predicated region
    $region25: #{stem_block_forward.7} parent=5 // pred_check
      %p331 = pneg %p330
    $region26: #{stem_block_forward.7} parent=5 // pred_check_branch
      %333 = sbr.rel (%p331) target = $region28
    $region27: #{stem_block_forward.7} parent=5 // pred_region
      // Predicated region
      $region29: #{stem_block_forward.7} parent=27 // pred_check
        %p334 = pneg %p51
      $region30: #{stem_block_forward.7} parent=27 // pred_check_branch
        %336 = sbr.rel (%p334) target = $region32
      $region31: #{stem_block_forward.7} parent=27 // pred_region
        %s337 = smul.u32 %s23, 2
        %p338 = scmp.lt.s32.totalorder %s22, 1
        %s339 = scalar_select %p338, %s22, 1
        %p340 = scmp.lt.s32.totalorder %s337, 9
        %s341 = scalar_select %p340, %s337, 9
        %s342 = smul.addr %s339, 10
        %s343 = sadd.s32 %s341, %s342
        %s344 = smul.addr %s343, 4
        %s345 = scalar_lea.vmem %s0, %s344
        %s346 = smul.u32 %s23, 2
      $region32: #{stem_block_forward.7} parent=27 // pred_fallthru
        _
      // Predicated region
      $region33: #{stem_block_forward.7} parent=27 // pred_check
        %p347 = pneg %p81
      $region34: #{stem_block_forward.7} parent=27 // pred_check_branch
        %349 = sbr.rel (%p347) target = $region36
      $region35: #{stem_block_forward.7} parent=27 // pred_region
        %s350 = smul.u32 %s23, 2
        %p351 = scmp.lt.s32.totalorder %s22, 1
        %s352 = scalar_select %p351, %s22, 1
        %p353 = scmp.lt.s32.totalorder %s350, 9
        %s354 = scalar_select %p353, %s350, 9
        %s355 = smul.addr %s352, 10
        %s356 = sadd.s32 %s354, %s355
        %s357 = smul.addr %s356, 4
        %s358 = scalar_lea.vmem %s1, %s357
        %s359 = smul.u32 %s23, 2
      $region36: #{stem_block_forward.7} parent=27 // pred_fallthru
        _
      // Predicated region
      $region37: #{stem_block_forward.7} parent=27 // pred_check
        %p360 = pneg %p113
      $region38: #{stem_block_forward.7} parent=27 // pred_check_branch
        %362 = sbr.rel (%p360) target = $region40
      $region39: #{stem_block_forward.7} parent=27 // pred_region
        %s363 = smul.u32 %s23, 2
        %s364 = sadd.s32 %s363, 1
        %p365 = scmp.lt.s32.totalorder %s22, 1
        %s366 = scalar_select %p365, %s22, 1
        %p367 = scmp.lt.s32.totalorder %s364, 9
        %s368 = scalar_select %p367, %s364, 9
        %s369 = smul.addr %s366, 10
        %s370 = sadd.s32 %s368, %s369
        %s371 = smul.addr %s370, 4
        %s372 = scalar_lea.vmem %s2, %s371
        %s373 = smul.u32 %s23, 2
        %s374 = sadd.s32 %s373, 1
      $region40: #{stem_block_forward.7} parent=27 // pred_fallthru
        _
      // Predicated region
      $region41: #{stem_block_forward.7} parent=27 // pred_check
        %p375 = pneg %p145
      $region42: #{stem_block_forward.7} parent=27 // pred_check_branch
        %377 = sbr.rel (%p375) target = $region44
      $region43: #{stem_block_forward.7} parent=27 // pred_region
        %s378 = smul.u32 %s23, 2
        %s379 = sadd.s32 %s378, 1
        %p380 = scmp.lt.s32.totalorder %s22, 1
        %s381 = scalar_select %p380, %s22, 1
        %p382 = scmp.lt.s32.totalorder %s379, 9
        %s383 = scalar_select %p382, %s379, 9
        %s384 = smul.addr %s381, 10
        %s385 = sadd.s32 %s383, %s384
        %s386 = smul.addr %s385, 4
        %s387 = scalar_lea.vmem %s3, %s386
        %s388 = smul.u32 %s23, 2
        %s389 = sadd.s32 %s388, 1
      $region44: #{stem_block_forward.7} parent=27 // pred_fallthru
        _
      // Predicated region
      $region45: #{stem_block_forward.7} parent=27 // pred_check
        %p390 = pneg %p177
      $region46: #{stem_block_forward.7} parent=27 // pred_check_branch
        %392 = sbr.rel (%p390) target = $region48
      $region47: #{stem_block_forward.7} parent=27 // pred_region
        %s393 = smul.u32 %s23, 2
        %s394 = sadd.s32 %s393, 2
        %p395 = scmp.lt.s32.totalorder %s22, 1
        %s396 = scalar_select %p395, %s22, 1
        %p397 = scmp.lt.s32.totalorder %s394, 9
        %s398 = scalar_select %p397, %s394, 9
        %s399 = smul.addr %s396, 10
        %s400 = sadd.s32 %s398, %s399
        %s401 = smul.addr %s400, 4
        %s402 = scalar_lea.vmem %s4, %s401
        %s403 = smul.u32 %s23, 2
        %s404 = sadd.s32 %s403, 2
      $region48: #{stem_block_forward.7} parent=27 // pred_fallthru
        _
      // Predicated region
      $region49: #{stem_block_forward.7} parent=27 // pred_check
        %p405 = pneg %p209
      $region50: #{stem_block_forward.7} parent=27 // pred_check_branch
        %407 = sbr.rel (%p405) target = $region52
      $region51: #{stem_block_forward.7} parent=27 // pred_region
        %s408 = smul.u32 %s23, 2
        %s409 = sadd.s32 %s408, 2
        %p410 = scmp.lt.s32.totalorder %s22, 1
        %s411 = scalar_select %p410, %s22, 1
        %p412 = scmp.lt.s32.totalorder %s409, 9
        %s413 = scalar_select %p412, %s409, 9
        %s414 = smul.addr %s411, 10
        %s415 = sadd.s32 %s413, %s414
        %s416 = smul.addr %s415, 4
        %s417 = scalar_lea.vmem %s5, %s416
        %s418 = smul.u32 %s23, 2
        %s419 = sadd.s32 %s418, 2
      $region52: #{stem_block_forward.7} parent=27 // pred_fallthru
        _
    $region28: #{stem_block_forward.7} parent=5 // pred_fallthru
      _
    %p420 = scmp.le.s32.totalorder 1, %s15
    %p421 = scmp.lt.s32.totalorder %s15, 9
    %p422 = pnand %p420, %p421
    %p423 = pneg %p422
    // Predicated region
    $region53: #{stem_block_forward.7} parent=5 // pred_check
      _
    $region54: #{stem_block_forward.7} parent=5 // pred_check_branch
      %425 = sbr.rel (%p422) target = $region56
    $region55: #{stem_block_forward.7} parent=5 // pred_region
      %s426 = ssub.s32 %s15, 1
      %s427 = smul.u32 %s25, 2
      %p428 = scmp.lt.s32.totalorder %s24, 1
      %s429 = scalar_select %p428, %s24, 1
      %p430 = scmp.lt.s32.totalorder %s427, 9
      %s431 = scalar_select %p430, %s427, 9
      %s432 = smul.addr %s429, 10
      %s433 = sadd.s32 %s431, %s432
      %s434 = smul.addr %s433, 4
      %s435 = scalar_lea.vmem %s0, %s434
      %p436 = pneg %p57
      %p437 = pneg %p54
      %s438 = smul.u32 %s25, 2
      %p439 = scmp.lt.s32.totalorder %s24, 1
      %s440 = scalar_select %p439, %s24, 1
      %p441 = scmp.lt.s32.totalorder %s438, 9
      %s442 = scalar_select %p441, %s438, 9
      %s443 = smul.addr %s440, 10
      %s444 = sadd.s32 %s442, %s443
      %s445 = smul.addr %s444, 4
      %s446 = scalar_lea.vmem %s1, %s445
      %p447 = pneg %p87
      %p448 = pneg %p84
      %s449 = smul.u32 %s25, 2
      %s450 = sadd.s32 %s449, 1
      %p451 = scmp.lt.s32.totalorder %s24, 1
      %s452 = scalar_select %p451, %s24, 1
      %p453 = scmp.lt.s32.totalorder %s450, 9
      %s454 = scalar_select %p453, %s450, 9
      %s455 = smul.addr %s452, 10
      %s456 = sadd.s32 %s454, %s455
      %s457 = smul.addr %s456, 4
      %s458 = scalar_lea.vmem %s2, %s457
      %p459 = pneg %p119
      %p460 = pneg %p116
      %s461 = smul.u32 %s25, 2
      %s462 = sadd.s32 %s461, 1
      %p463 = scmp.lt.s32.totalorder %s24, 1
      %s464 = scalar_select %p463, %s24, 1
      %p465 = scmp.lt.s32.totalorder %s462, 9
      %s466 = scalar_select %p465, %s462, 9
      %s467 = smul.addr %s464, 10
      %s468 = sadd.s32 %s466, %s467
      %s469 = smul.addr %s468, 4
      %s470 = scalar_lea.vmem %s3, %s469
      %p471 = pneg %p151
      %p472 = pneg %p148
      %s473 = smul.u32 %s25, 2
      %s474 = sadd.s32 %s473, 2
      %p475 = scmp.lt.s32.totalorder %s24, 1
      %s476 = scalar_select %p475, %s24, 1
      %p477 = scmp.lt.s32.totalorder %s474, 9
      %s478 = scalar_select %p477, %s474, 9
      %s479 = smul.addr %s476, 10
      %s480 = sadd.s32 %s478, %s479
      %s481 = smul.addr %s480, 4
      %s482 = scalar_lea.vmem %s4, %s481
      %p483 = pneg %p183
      %p484 = pneg %p180
      %s485 = smul.u32 %s25, 2
      %s486 = sadd.s32 %s485, 2
      %p487 = scmp.lt.s32.totalorder %s24, 1
      %s488 = scalar_select %p487, %s24, 1
      %p489 = scmp.lt.s32.totalorder %s486, 9
      %s490 = scalar_select %p489, %s486, 9
      %s491 = smul.addr %s488, 10
      %s492 = sadd.s32 %s490, %s491
      %s493 = smul.addr %s492, 4
      %s494 = scalar_lea.vmem %s5, %s493
      %p495 = pneg %p215
      %p496 = pneg %p212
      %p497 = pneg %p236
      %p498 = pneg %p233
      %p499 = pneg %p257
      %p500 = pneg %p254
      %p501 = pneg %p278
      %p502 = pneg %p275
      %p503 = pneg %p306
      %p504 = pneg %p303
      %p505 = scmp.lt.s32.totalorder %s24, 1
      %s506 = scalar_select %p505, %s24, 1
      %p507 = scmp.lt.s32.totalorder %s25, 3
      %s508 = scalar_select %p507, %s25, 3
      %s509 = smul.addr %s506, 4
      %s510 = sadd.s32 %s508, %s509
      %s511 = smul.addr %s510, 2
      %s512 = scalar_lea.vmem %s9, %s511
      %s513 = smul.u32 %s25, 2
      %p514 = scmp.lt.s32.totalorder %s24, 1
      %s515 = scalar_select %p514, %s24, 1
      %p516 = scmp.lt.s32.totalorder %s513, 9
      %s517 = scalar_select %p516, %s513, 9
      %s518 = smul.addr %s515, 10
      %s519 = sadd.s32 %s517, %s518
      %s520 = smul.addr %s519, 4
      %s521 = scalar_lea.vmem %s0, %s520
      %s522 = smul.u32 %s25, 2
      %s523 = smul.u32 %s25, 2
      %p524 = scmp.lt.s32.totalorder %s24, 1
      %s525 = scalar_select %p524, %s24, 1
      %p526 = scmp.lt.s32.totalorder %s523, 9
      %s527 = scalar_select %p526, %s523, 9
      %s528 = smul.addr %s525, 10
      %s529 = sadd.s32 %s527, %s528
      %s530 = smul.addr %s529, 4
      %s531 = scalar_lea.vmem %s1, %s530
      %s532 = smul.u32 %s25, 2
      %s533 = smul.u32 %s25, 2
      %s534 = sadd.s32 %s533, 1
      %p535 = scmp.lt.s32.totalorder %s24, 1
      %s536 = scalar_select %p535, %s24, 1
      %p537 = scmp.lt.s32.totalorder %s534, 9
      %s538 = scalar_select %p537, %s534, 9
      %s539 = smul.addr %s536, 10
      %s540 = sadd.s32 %s538, %s539
      %s541 = smul.addr %s540, 4
      %s542 = scalar_lea.vmem %s2, %s541
      %s543 = smul.u32 %s25, 2
      %s544 = sadd.s32 %s543, 1
      %s545 = smul.u32 %s25, 2
      %s546 = sadd.s32 %s545, 1
      %p547 = scmp.lt.s32.totalorder %s24, 1
      %s548 = scalar_select %p547, %s24, 1
      %p549 = scmp.lt.s32.totalorder %s546, 9
      %s550 = scalar_select %p549, %s546, 9
      %s551 = smul.addr %s548, 10
      %s552 = sadd.s32 %s550, %s551
      %s553 = smul.addr %s552, 4
      %s554 = scalar_lea.vmem %s3, %s553
      %s555 = smul.u32 %s25, 2
      %s556 = sadd.s32 %s555, 1
      %s557 = smul.u32 %s25, 2
      %s558 = sadd.s32 %s557, 2
      %p559 = scmp.lt.s32.totalorder %s24, 1
      %s560 = scalar_select %p559, %s24, 1
      %p561 = scmp.lt.s32.totalorder %s558, 9
      %s562 = scalar_select %p561, %s558, 9
      %s563 = smul.addr %s560, 10
      %s564 = sadd.s32 %s562, %s563
      %s565 = smul.addr %s564, 4
      %s566 = scalar_lea.vmem %s4, %s565
      %s567 = smul.u32 %s25, 2
      %s568 = sadd.s32 %s567, 2
      %s569 = smul.u32 %s25, 2
      %s570 = sadd.s32 %s569, 2
      %p571 = scmp.lt.s32.totalorder %s24, 1
      %s572 = scalar_select %p571, %s24, 1
      %p573 = scmp.lt.s32.totalorder %s570, 9
      %s574 = scalar_select %p573, %s570, 9
      %s575 = smul.addr %s572, 10
      %s576 = sadd.s32 %s574, %s575
      %s577 = smul.addr %s576, 4
      %s578 = scalar_lea.vmem %s5, %s577
      %s579 = smul.u32 %s25, 2
      %s580 = sadd.s32 %s579, 2
      %p581 = scmp.lt.s32.totalorder %s24, 1
      %s582 = scalar_select %p581, %s24, 1
      %p583 = scmp.lt.s32.totalorder %s25, 3
      %s584 = scalar_select %p583, %s25, 3
      %s585 = smul.addr %s582, 4
      %s586 = sadd.s32 %s584, %s585
      %s587 = smul.addr %s586, 2
      %s588 = scalar_lea.vmem %s9, %s587
      %v589 = vld [vmem:[%s521] sm:$0x3]
      %v590 = vld [vmem:[%s6] sm:$0xf]
      %v591 = vld [vmem:[%s6 + $0x4] sm:$0xf]
      %v592 = vld [vmem:[%s6 + $0x8] sm:$0xf]
      %v593 = vld [vmem:[%s6 + $0xc] sm:$0xf]
      %v594 = vld [vmem:[%s6 + $0x10] sm:$0xf]
      %v595 = vld [vmem:[%s6 + $0x14] sm:$0xf]
      %v596 = vld [vmem:[%s6 + $0x18] sm:$0xf]
      %v597 = vld [vmem:[%s6 + $0x1c] sm:$0xf]
      %v598 = vld [vmem:[%s6 + $0x20] sm:$0xf]
      %v599 = vld [vmem:[%s6 + $0x24] sm:$0xf]
      %v600 = vld [vmem:[%s6 + $0x28] sm:$0xf]
      %v601 = vld [vmem:[%s6 + $0x2c] sm:$0xf]
      %v602 = vld [vmem:[%s6 + $0x30] sm:$0xf]
      %v603 = vld [vmem:[%s6 + $0x34] sm:$0xf]
      %v604 = vld [vmem:[%s6 + $0x38] sm:$0xf]
      %v605 = vld [vmem:[%s6 + $0x3c] sm:$0xf]
      %v606 = vld [vmem:[%s531] sm:$0x3]
      %s607 = scalar_lea.vmem %s6, 64
      %v608 = vld [vmem:[%s607] sm:$0xf]
      %v609 = vld [vmem:[%s607 + $0x4] sm:$0xf]
      %v610 = vld [vmem:[%s607 + $0x8] sm:$0xf]
      %v611 = vld [vmem:[%s607 + $0xc] sm:$0xf]
      %v612 = vld [vmem:[%s607 + $0x10] sm:$0xf]
      %v613 = vld [vmem:[%s607 + $0x14] sm:$0xf]
      %v614 = vld [vmem:[%s607 + $0x18] sm:$0xf]
      %v615 = vld [vmem:[%s607 + $0x1c] sm:$0xf]
      %v616 = vld [vmem:[%s607 + $0x20] sm:$0xf]
      %v617 = vld [vmem:[%s607 + $0x24] sm:$0xf]
      %v618 = vld [vmem:[%s607 + $0x28] sm:$0xf]
      %v619 = vld [vmem:[%s607 + $0x2c] sm:$0xf]
      %v620 = vld [vmem:[%s607 + $0x30] sm:$0xf]
      %v621 = vld [vmem:[%s607 + $0x34] sm:$0xf]
      %v622 = vld [vmem:[%s607 + $0x38] sm:$0xf]
      %v623 = vld [vmem:[%s607 + $0x3c] sm:$0xf]
      %v640 = vunpack.c.l.b16 %v608
      %v641 = vunpack.c.l.b16 %v609
      %v642 = vunpack.c.l.b16 %v610
      %v643 = vunpack.c.l.b16 %v611
      %v644 = vunpack.c.l.b16 %v612
      %v645 = vunpack.c.l.b16 %v613
      %v646 = vunpack.c.l.b16 %v614
      %v647 = vunpack.c.l.b16 %v615
      %v648 = vunpack.c.l.b16 %v616
      %v649 = vunpack.c.l.b16 %v617
      %v650 = vunpack.c.l.b16 %v618
      %v651 = vunpack.c.l.b16 %v619
      %v652 = vunpack.c.l.b16 %v620
      %v653 = vunpack.c.l.b16 %v621
      %v654 = vunpack.c.l.b16 %v622
      %v655 = vunpack.c.l.b16 %v623
      %v656 = vpack.c.b16 %v641, %v640
      %v657 = vpack.c.b16 %v643, %v642
      %v658 = vpack.c.b16 %v645, %v644
      %v659 = vpack.c.b16 %v647, %v646
      %v660 = vpack.c.b16 %v649, %v648
      %v661 = vpack.c.b16 %v651, %v650
      %v662 = vpack.c.b16 %v653, %v652
      %v663 = vpack.c.b16 %v655, %v654
      %672 = vmatpush.bf16.msra.mxu0 %v663
      %673 = vmatpush.bf16.msra.mxu0 %v662
      %674 = vmatpush.bf16.msra.mxu0 %v661
      %675 = vmatpush.bf16.msra.mxu0 %v660
      %676 = vmatpush.bf16.msra.mxu0 %v659
      %677 = vmatpush.bf16.msra.mxu0 %v658
      %678 = vmatpush.bf16.msra.mxu0 %v657
      %679 = vmatpush.bf16.msra.mxu0 %v656
      %680 = vmatmul.bf16.gmra.mxu0 %v606
      %v681 = vpop.f32.mrf.mxu0
      %v682 = vadd.f32 0.0, %v681
      %v683 = vpop.f32.mrf.mxu0
      %684 = vdwg.mxu0
      %v701 = vunpack.c.l.b16 %v590
      %v702 = vunpack.c.l.b16 %v591
      %v703 = vunpack.c.l.b16 %v592
      %v704 = vunpack.c.l.b16 %v593
      %v705 = vunpack.c.l.b16 %v594
      %v706 = vunpack.c.l.b16 %v595
      %v707 = vunpack.c.l.b16 %v596
      %v708 = vunpack.c.l.b16 %v597
      %v709 = vunpack.c.l.b16 %v598
      %v710 = vunpack.c.l.b16 %v599
      %v711 = vunpack.c.l.b16 %v600
      %v712 = vunpack.c.l.b16 %v601
      %v713 = vunpack.c.l.b16 %v602
      %v714 = vunpack.c.l.b16 %v603
      %v715 = vunpack.c.l.b16 %v604
      %v716 = vunpack.c.l.b16 %v605
      %v717 = vpack.c.b16 %v702, %v701
      %v718 = vpack.c.b16 %v704, %v703
      %v719 = vpack.c.b16 %v706, %v705
      %v720 = vpack.c.b16 %v708, %v707
      %v721 = vpack.c.b16 %v710, %v709
      %v722 = vpack.c.b16 %v712, %v711
      %v723 = vpack.c.b16 %v714, %v713
      %v724 = vpack.c.b16 %v716, %v715
      %733 = vmatpush.bf16.msra.mxu0 %v724
      %734 = vmatpush.bf16.msra.mxu0 %v723
      %735 = vmatpush.bf16.msra.mxu0 %v722
      %736 = vmatpush.bf16.msra.mxu0 %v721
      %737 = vmatpush.bf16.msra.mxu0 %v720
      %738 = vmatpush.bf16.msra.mxu0 %v719
      %739 = vmatpush.bf16.msra.mxu0 %v718
      %740 = vmatpush.bf16.msra.mxu0 %v717
      %741 = vmatmul.bf16.gmra.mxu0 %v589
      %v742 = vpop.f32.mrf.mxu0
      %v743 = vadd.f32 %v682, %v742
      %v744 = vpop.f32.mrf.mxu0
      %745 = vdwg.mxu0
      %v746 = vld [vmem:[%s521] sm:$0x7]
      %s747 = scalar_lea.vmem %s6, 128
      %v748 = vld [vmem:[%s747] sm:$0xf]
      %v749 = vld [vmem:[%s747 + $0x4] sm:$0xf]
      %v750 = vld [vmem:[%s747 + $0x8] sm:$0xf]
      %v751 = vld [vmem:[%s747 + $0xc] sm:$0xf]
      %v752 = vld [vmem:[%s747 + $0x10] sm:$0xf]
      %v753 = vld [vmem:[%s747 + $0x14] sm:$0xf]
      %v754 = vld [vmem:[%s747 + $0x18] sm:$0xf]
      %v755 = vld [vmem:[%s747 + $0x1c] sm:$0xf]
      %v756 = vld [vmem:[%s747 + $0x20] sm:$0xf]
      %v757 = vld [vmem:[%s747 + $0x24] sm:$0xf]
      %v758 = vld [vmem:[%s747 + $0x28] sm:$0xf]
      %v759 = vld [vmem:[%s747 + $0x2c] sm:$0xf]
      %v760 = vld [vmem:[%s747 + $0x30] sm:$0xf]
      %v761 = vld [vmem:[%s747 + $0x34] sm:$0xf]
      %v762 = vld [vmem:[%s747 + $0x38] sm:$0xf]
      %v763 = vld [vmem:[%s747 + $0x3c] sm:$0xf]
      %v765 = vunpack.c.l.b16 %v746
      %v766 = vpack.c.b16 %v765, %v765
      %v768 = vshrl.u32 %v766, 16
      %v770 = vshll.u32 %v766, 16
      %v772 = vrot.slane %v770, 1
      %v773 = vor.u32 %v768, %v772
      %v791 = vunpack.c.l.b16 %v748
      %v792 = vunpack.c.l.b16 %v749
      %v793 = vunpack.c.l.b16 %v750
      %v794 = vunpack.c.l.b16 %v751
      %v795 = vunpack.c.l.b16 %v752
      %v796 = vunpack.c.l.b16 %v753
      %v797 = vunpack.c.l.b16 %v754
      %v798 = vunpack.c.l.b16 %v755
      %v799 = vunpack.c.l.b16 %v756
      %v800 = vunpack.c.l.b16 %v757
      %v801 = vunpack.c.l.b16 %v758
      %v802 = vunpack.c.l.b16 %v759
      %v803 = vunpack.c.l.b16 %v760
      %v804 = vunpack.c.l.b16 %v761
      %v805 = vunpack.c.l.b16 %v762
      %v806 = vunpack.c.l.b16 %v763
      %v807 = vpack.c.b16 %v792, %v791
      %v808 = vpack.c.b16 %v794, %v793
      %v809 = vpack.c.b16 %v796, %v795
      %v810 = vpack.c.b16 %v798, %v797
      %v811 = vpack.c.b16 %v800, %v799
      %v812 = vpack.c.b16 %v802, %v801
      %v813 = vpack.c.b16 %v804, %v803
      %v814 = vpack.c.b16 %v806, %v805
      %823 = vmatpush.bf16.msra.mxu0 %v814
      %824 = vmatpush.bf16.msra.mxu0 %v813
      %825 = vmatpush.bf16.msra.mxu0 %v812
      %826 = vmatpush.bf16.msra.mxu0 %v811
      %827 = vmatpush.bf16.msra.mxu0 %v810
      %828 = vmatpush.bf16.msra.mxu0 %v809
      %829 = vmatpush.bf16.msra.mxu0 %v808
      %830 = vmatpush.bf16.msra.mxu0 %v807
      %831 = vmatmul.bf16.gmra.mxu0 %v773
      %v832 = vpop.f32.mrf.mxu0
      %v833 = vadd.f32 0.0, %v832
      %v834 = vpop.f32.mrf.mxu0
      %835 = vdwg.mxu0
      %v836 = vadd.f32 %v743, %v833
      %v837 = vld [vmem:[%s542] sm:$0x3]
      %s838 = scalar_lea.vmem %s6, 192
      %v839 = vld [vmem:[%s838] sm:$0xf]
      %v840 = vld [vmem:[%s838 + $0x4] sm:$0xf]
      %v841 = vld [vmem:[%s838 + $0x8] sm:$0xf]
      %v842 = vld [vmem:[%s838 + $0xc] sm:$0xf]
      %v843 = vld [vmem:[%s838 + $0x10] sm:$0xf]
      %v844 = vld [vmem:[%s838 + $0x14] sm:$0xf]
      %v845 = vld [vmem:[%s838 + $0x18] sm:$0xf]
      %v846 = vld [vmem:[%s838 + $0x1c] sm:$0xf]
      %v847 = vld [vmem:[%s838 + $0x20] sm:$0xf]
      %v848 = vld [vmem:[%s838 + $0x24] sm:$0xf]
      %v849 = vld [vmem:[%s838 + $0x28] sm:$0xf]
      %v850 = vld [vmem:[%s838 + $0x2c] sm:$0xf]
      %v851 = vld [vmem:[%s838 + $0x30] sm:$0xf]
      %v852 = vld [vmem:[%s838 + $0x34] sm:$0xf]
      %v853 = vld [vmem:[%s838 + $0x38] sm:$0xf]
      %v854 = vld [vmem:[%s838 + $0x3c] sm:$0xf]
      %v871 = vunpack.c.l.b16 %v839
      %v872 = vunpack.c.l.b16 %v840
      %v873 = vunpack.c.l.b16 %v841
      %v874 = vunpack.c.l.b16 %v842
      %v875 = vunpack.c.l.b16 %v843
      %v876 = vunpack.c.l.b16 %v844
      %v877 = vunpack.c.l.b16 %v845
      %v878 = vunpack.c.l.b16 %v846
      %v879 = vunpack.c.l.b16 %v847
      %v880 = vunpack.c.l.b16 %v848
      %v881 = vunpack.c.l.b16 %v849
      %v882 = vunpack.c.l.b16 %v850
      %v883 = vunpack.c.l.b16 %v851
      %v884 = vunpack.c.l.b16 %v852
      %v885 = vunpack.c.l.b16 %v853
      %v886 = vunpack.c.l.b16 %v854
      %v887 = vpack.c.b16 %v872, %v871
      %v888 = vpack.c.b16 %v874, %v873
      %v889 = vpack.c.b16 %v876, %v875
      %v890 = vpack.c.b16 %v878, %v877
      %v891 = vpack.c.b16 %v880, %v879
      %v892 = vpack.c.b16 %v882, %v881
      %v893 = vpack.c.b16 %v884, %v883
      %v894 = vpack.c.b16 %v886, %v885
      %903 = vmatpush.bf16.msra.mxu0 %v894
      %904 = vmatpush.bf16.msra.mxu0 %v893
      %905 = vmatpush.bf16.msra.mxu0 %v892
      %906 = vmatpush.bf16.msra.mxu0 %v891
      %907 = vmatpush.bf16.msra.mxu0 %v890
      %908 = vmatpush.bf16.msra.mxu0 %v889
      %909 = vmatpush.bf16.msra.mxu0 %v888
      %910 = vmatpush.bf16.msra.mxu0 %v887
      %911 = vmatmul.bf16.gmra.mxu0 %v837
      %v912 = vpop.f32.mrf.mxu0
      %v913 = vadd.f32 0.0, %v912
      %v914 = vpop.f32.mrf.mxu0
      %915 = vdwg.mxu0
      %v916 = vadd.f32 %v836, %v913
      %v917 = vld [vmem:[%s554] sm:$0x3]
      %s918 = scalar_lea.vmem %s6, 256
      %v919 = vld [vmem:[%s918] sm:$0xf]
      %v920 = vld [vmem:[%s918 + $0x4] sm:$0xf]
      %v921 = vld [vmem:[%s918 + $0x8] sm:$0xf]
      %v922 = vld [vmem:[%s918 + $0xc] sm:$0xf]
      %v923 = vld [vmem:[%s918 + $0x10] sm:$0xf]
      %v924 = vld [vmem:[%s918 + $0x14] sm:$0xf]
      %v925 = vld [vmem:[%s918 + $0x18] sm:$0xf]
      %v926 = vld [vmem:[%s918 + $0x1c] sm:$0xf]
      %v927 = vld [vmem:[%s918 + $0x20] sm:$0xf]
      %v928 = vld [vmem:[%s918 + $0x24] sm:$0xf]
      %v929 = vld [vmem:[%s918 + $0x28] sm:$0xf]
      %v930 = vld [vmem:[%s918 + $0x2c] sm:$0xf]
      %v931 = vld [vmem:[%s918 + $0x30] sm:$0xf]
      %v932 = vld [vmem:[%s918 + $0x34] sm:$0xf]
      %v933 = vld [vmem:[%s918 + $0x38] sm:$0xf]
      %v934 = vld [vmem:[%s918 + $0x3c] sm:$0xf]
      %v951 = vunpack.c.l.b16 %v919
      %v952 = vunpack.c.l.b16 %v920
      %v953 = vunpack.c.l.b16 %v921
      %v954 = vunpack.c.l.b16 %v922
      %v955 = vunpack.c.l.b16 %v923
      %v956 = vunpack.c.l.b16 %v924
      %v957 = vunpack.c.l.b16 %v925
      %v958 = vunpack.c.l.b16 %v926
      %v959 = vunpack.c.l.b16 %v927
      %v960 = vunpack.c.l.b16 %v928
      %v961 = vunpack.c.l.b16 %v929
      %v962 = vunpack.c.l.b16 %v930
      %v963 = vunpack.c.l.b16 %v931
      %v964 = vunpack.c.l.b16 %v932
      %v965 = vunpack.c.l.b16 %v933
      %v966 = vunpack.c.l.b16 %v934
      %v967 = vpack.c.b16 %v952, %v951
      %v968 = vpack.c.b16 %v954, %v953
      %v969 = vpack.c.b16 %v956, %v955
      %v970 = vpack.c.b16 %v958, %v957
      %v971 = vpack.c.b16 %v960, %v959
      %v972 = vpack.c.b16 %v962, %v961
      %v973 = vpack.c.b16 %v964, %v963
      %v974 = vpack.c.b16 %v966, %v965
      %983 = vmatpush.bf16.msra.mxu0 %v974
      %984 = vmatpush.bf16.msra.mxu0 %v973
      %985 = vmatpush.bf16.msra.mxu0 %v972
      %986 = vmatpush.bf16.msra.mxu0 %v971
      %987 = vmatpush.bf16.msra.mxu0 %v970
      %988 = vmatpush.bf16.msra.mxu0 %v969
      %989 = vmatpush.bf16.msra.mxu0 %v968
      %990 = vmatpush.bf16.msra.mxu0 %v967
      %991 = vmatmul.bf16.gmra.mxu0 %v917
      %v992 = vpop.f32.mrf.mxu0
      %v993 = vadd.f32 0.0, %v992
      %v994 = vpop.f32.mrf.mxu0
      %995 = vdwg.mxu0
      %v996 = vadd.f32 %v916, %v993
      %v997 = vld [vmem:[%s542] sm:$0x7]
      %s998 = scalar_lea.vmem %s6, 320
      %v999 = vld [vmem:[%s998] sm:$0xf]
      %v1000 = vld [vmem:[%s998 + $0x4] sm:$0xf]
      %v1001 = vld [vmem:[%s998 + $0x8] sm:$0xf]
      %v1002 = vld [vmem:[%s998 + $0xc] sm:$0xf]
      %v1003 = vld [vmem:[%s998 + $0x10] sm:$0xf]
      %v1004 = vld [vmem:[%s998 + $0x14] sm:$0xf]
      %v1005 = vld [vmem:[%s998 + $0x18] sm:$0xf]
      %v1006 = vld [vmem:[%s998 + $0x1c] sm:$0xf]
      %v1007 = vld [vmem:[%s998 + $0x20] sm:$0xf]
      %v1008 = vld [vmem:[%s998 + $0x24] sm:$0xf]
      %v1009 = vld [vmem:[%s998 + $0x28] sm:$0xf]
      %v1010 = vld [vmem:[%s998 + $0x2c] sm:$0xf]
      %v1011 = vld [vmem:[%s998 + $0x30] sm:$0xf]
      %v1012 = vld [vmem:[%s998 + $0x34] sm:$0xf]
      %v1013 = vld [vmem:[%s998 + $0x38] sm:$0xf]
      %v1014 = vld [vmem:[%s998 + $0x3c] sm:$0xf]
      %v1016 = vunpack.c.l.b16 %v997
      %v1017 = vpack.c.b16 %v1016, %v1016
      %v1019 = vshrl.u32 %v1017, 16
      %v1021 = vshll.u32 %v1017, 16
      %v1023 = vrot.slane %v1021, 1
      %v1024 = vor.u32 %v1019, %v1023
      %v1042 = vunpack.c.l.b16 %v999
      %v1043 = vunpack.c.l.b16 %v1000
      %v1044 = vunpack.c.l.b16 %v1001
      %v1045 = vunpack.c.l.b16 %v1002
      %v1046 = vunpack.c.l.b16 %v1003
      %v1047 = vunpack.c.l.b16 %v1004
      %v1048 = vunpack.c.l.b16 %v1005
      %v1049 = vunpack.c.l.b16 %v1006
      %v1050 = vunpack.c.l.b16 %v1007
      %v1051 = vunpack.c.l.b16 %v1008
      %v1052 = vunpack.c.l.b16 %v1009
      %v1053 = vunpack.c.l.b16 %v1010
      %v1054 = vunpack.c.l.b16 %v1011
      %v1055 = vunpack.c.l.b16 %v1012
      %v1056 = vunpack.c.l.b16 %v1013
      %v1057 = vunpack.c.l.b16 %v1014
      %v1058 = vpack.c.b16 %v1043, %v1042
      %v1059 = vpack.c.b16 %v1045, %v1044
      %v1060 = vpack.c.b16 %v1047, %v1046
      %v1061 = vpack.c.b16 %v1049, %v1048
      %v1062 = vpack.c.b16 %v1051, %v1050
      %v1063 = vpack.c.b16 %v1053, %v1052
      %v1064 = vpack.c.b16 %v1055, %v1054
      %v1065 = vpack.c.b16 %v1057, %v1056
      %1074 = vmatpush.bf16.msra.mxu0 %v1065
      %1075 = vmatpush.bf16.msra.mxu0 %v1064
      %1076 = vmatpush.bf16.msra.mxu0 %v1063
      %1077 = vmatpush.bf16.msra.mxu0 %v1062
      %1078 = vmatpush.bf16.msra.mxu0 %v1061
      %1079 = vmatpush.bf16.msra.mxu0 %v1060
      %1080 = vmatpush.bf16.msra.mxu0 %v1059
      %1081 = vmatpush.bf16.msra.mxu0 %v1058
      %1082 = vmatmul.bf16.gmra.mxu0 %v1024
      %v1083 = vpop.f32.mrf.mxu0
      %v1084 = vadd.f32 0.0, %v1083
      %v1085 = vpop.f32.mrf.mxu0
      %1086 = vdwg.mxu0
      %v1087 = vadd.f32 %v996, %v1084
      %v1088 = vld [vmem:[%s566] sm:$0x3]
      %s1089 = scalar_lea.vmem %s6, 384
      %v1090 = vld [vmem:[%s1089] sm:$0xf]
      %v1091 = vld [vmem:[%s1089 + $0x4] sm:$0xf]
      %v1092 = vld [vmem:[%s1089 + $0x8] sm:$0xf]
      %v1093 = vld [vmem:[%s1089 + $0xc] sm:$0xf]
      %v1094 = vld [vmem:[%s1089 + $0x10] sm:$0xf]
      %v1095 = vld [vmem:[%s1089 + $0x14] sm:$0xf]
      %v1096 = vld [vmem:[%s1089 + $0x18] sm:$0xf]
      %v1097 = vld [vmem:[%s1089 + $0x1c] sm:$0xf]
      %v1098 = vld [vmem:[%s1089 + $0x20] sm:$0xf]
      %v1099 = vld [vmem:[%s1089 + $0x24] sm:$0xf]
      %v1100 = vld [vmem:[%s1089 + $0x28] sm:$0xf]
      %v1101 = vld [vmem:[%s1089 + $0x2c] sm:$0xf]
      %v1102 = vld [vmem:[%s1089 + $0x30] sm:$0xf]
      %v1103 = vld [vmem:[%s1089 + $0x34] sm:$0xf]
      %v1104 = vld [vmem:[%s1089 + $0x38] sm:$0xf]
      %v1105 = vld [vmem:[%s1089 + $0x3c] sm:$0xf]
      %v1122 = vunpack.c.l.b16 %v1090
      %v1123 = vunpack.c.l.b16 %v1091
      %v1124 = vunpack.c.l.b16 %v1092
      %v1125 = vunpack.c.l.b16 %v1093
      %v1126 = vunpack.c.l.b16 %v1094
      %v1127 = vunpack.c.l.b16 %v1095
      %v1128 = vunpack.c.l.b16 %v1096
      %v1129 = vunpack.c.l.b16 %v1097
      %v1130 = vunpack.c.l.b16 %v1098
      %v1131 = vunpack.c.l.b16 %v1099
      %v1132 = vunpack.c.l.b16 %v1100
      %v1133 = vunpack.c.l.b16 %v1101
      %v1134 = vunpack.c.l.b16 %v1102
      %v1135 = vunpack.c.l.b16 %v1103
      %v1136 = vunpack.c.l.b16 %v1104
      %v1137 = vunpack.c.l.b16 %v1105
      %v1138 = vpack.c.b16 %v1123, %v1122
      %v1139 = vpack.c.b16 %v1125, %v1124
      %v1140 = vpack.c.b16 %v1127, %v1126
      %v1141 = vpack.c.b16 %v1129, %v1128
      %v1142 = vpack.c.b16 %v1131, %v1130
      %v1143 = vpack.c.b16 %v1133, %v1132
      %v1144 = vpack.c.b16 %v1135, %v1134
      %v1145 = vpack.c.b16 %v1137, %v1136
      %1154 = vmatpush.bf16.msra.mxu0 %v1145
      %1155 = vmatpush.bf16.msra.mxu0 %v1144
      %1156 = vmatpush.bf16.msra.mxu0 %v1143
      %1157 = vmatpush.bf16.msra.mxu0 %v1142
      %1158 = vmatpush.bf16.msra.mxu0 %v1141
      %1159 = vmatpush.bf16.msra.mxu0 %v1140
      %1160 = vmatpush.bf16.msra.mxu0 %v1139
      %1161 = vmatpush.bf16.msra.mxu0 %v1138
      %1162 = vmatmul.bf16.gmra.mxu0 %v1088
      %v1163 = vpop.f32.mrf.mxu0
      %v1164 = vadd.f32 0.0, %v1163
      %v1165 = vpop.f32.mrf.mxu0
      %1166 = vdwg.mxu0
      %v1167 = vadd.f32 %v1087, %v1164
      %v1168 = vld [vmem:[%s578] sm:$0x3]
      %s1169 = scalar_lea.vmem %s6, 448
      %v1170 = vld [vmem:[%s1169] sm:$0xf]
      %v1171 = vld [vmem:[%s1169 + $0x4] sm:$0xf]
      %v1172 = vld [vmem:[%s1169 + $0x8] sm:$0xf]
      %v1173 = vld [vmem:[%s1169 + $0xc] sm:$0xf]
      %v1174 = vld [vmem:[%s1169 + $0x10] sm:$0xf]
      %v1175 = vld [vmem:[%s1169 + $0x14] sm:$0xf]
      %v1176 = vld [vmem:[%s1169 + $0x18] sm:$0xf]
      %v1177 = vld [vmem:[%s1169 + $0x1c] sm:$0xf]
      %v1178 = vld [vmem:[%s1169 + $0x20] sm:$0xf]
      %v1179 = vld [vmem:[%s1169 + $0x24] sm:$0xf]
      %v1180 = vld [vmem:[%s1169 + $0x28] sm:$0xf]
      %v1181 = vld [vmem:[%s1169 + $0x2c] sm:$0xf]
      %v1182 = vld [vmem:[%s1169 + $0x30] sm:$0xf]
      %v1183 = vld [vmem:[%s1169 + $0x34] sm:$0xf]
      %v1184 = vld [vmem:[%s1169 + $0x38] sm:$0xf]
      %v1185 = vld [vmem:[%s1169 + $0x3c] sm:$0xf]
      %v1202 = vunpack.c.l.b16 %v1170
      %v1203 = vunpack.c.l.b16 %v1171
      %v1204 = vunpack.c.l.b16 %v1172
      %v1205 = vunpack.c.l.b16 %v1173
      %v1206 = vunpack.c.l.b16 %v1174
      %v1207 = vunpack.c.l.b16 %v1175
      %v1208 = vunpack.c.l.b16 %v1176
      %v1209 = vunpack.c.l.b16 %v1177
      %v1210 = vunpack.c.l.b16 %v1178
      %v1211 = vunpack.c.l.b16 %v1179
      %v1212 = vunpack.c.l.b16 %v1180
      %v1213 = vunpack.c.l.b16 %v1181
      %v1214 = vunpack.c.l.b16 %v1182
      %v1215 = vunpack.c.l.b16 %v1183
      %v1216 = vunpack.c.l.b16 %v1184
      %v1217 = vunpack.c.l.b16 %v1185
      %v1218 = vpack.c.b16 %v1203, %v1202
      %v1219 = vpack.c.b16 %v1205, %v1204
      %v1220 = vpack.c.b16 %v1207, %v1206
      %v1221 = vpack.c.b16 %v1209, %v1208
      %v1222 = vpack.c.b16 %v1211, %v1210
      %v1223 = vpack.c.b16 %v1213, %v1212
      %v1224 = vpack.c.b16 %v1215, %v1214
      %v1225 = vpack.c.b16 %v1217, %v1216
      %1234 = vmatpush.bf16.msra.mxu0 %v1225
      %1235 = vmatpush.bf16.msra.mxu0 %v1224
      %1236 = vmatpush.bf16.msra.mxu0 %v1223
      %1237 = vmatpush.bf16.msra.mxu0 %v1222
      %1238 = vmatpush.bf16.msra.mxu0 %v1221
      %1239 = vmatpush.bf16.msra.mxu0 %v1220
      %1240 = vmatpush.bf16.msra.mxu0 %v1219
      %1241 = vmatpush.bf16.msra.mxu0 %v1218
      %1242 = vmatmul.bf16.gmra.mxu0 %v1168
      %v1243 = vpop.f32.mrf.mxu0
      %v1244 = vadd.f32 0.0, %v1243
      %v1245 = vpop.f32.mrf.mxu0
      %1246 = vdwg.mxu0
      %v1247 = vadd.f32 %v1167, %v1244
      %v1248 = vld [vmem:[%s566] sm:$0x7]
      %s1249 = scalar_lea.vmem %s6, 512
      %v1250 = vld [vmem:[%s1249] sm:$0xf]
      %v1251 = vld [vmem:[%s1249 + $0x4] sm:$0xf]
      %v1252 = vld [vmem:[%s1249 + $0x8] sm:$0xf]
      %v1253 = vld [vmem:[%s1249 + $0xc] sm:$0xf]
      %v1254 = vld [vmem:[%s1249 + $0x10] sm:$0xf]
      %v1255 = vld [vmem:[%s1249 + $0x14] sm:$0xf]
      %v1256 = vld [vmem:[%s1249 + $0x18] sm:$0xf]
      %v1257 = vld [vmem:[%s1249 + $0x1c] sm:$0xf]
      %v1258 = vld [vmem:[%s1249 + $0x20] sm:$0xf]
      %v1259 = vld [vmem:[%s1249 + $0x24] sm:$0xf]
      %v1260 = vld [vmem:[%s1249 + $0x28] sm:$0xf]
      %v1261 = vld [vmem:[%s1249 + $0x2c] sm:$0xf]
      %v1262 = vld [vmem:[%s1249 + $0x30] sm:$0xf]
      %v1263 = vld [vmem:[%s1249 + $0x34] sm:$0xf]
      %v1264 = vld [vmem:[%s1249 + $0x38] sm:$0xf]
      %v1265 = vld [vmem:[%s1249 + $0x3c] sm:$0xf]
      %v1267 = vunpack.c.l.b16 %v1248
      %v1268 = vpack.c.b16 %v1267, %v1267
      %v1270 = vshrl.u32 %v1268, 16
      %v1272 = vshll.u32 %v1268, 16
      %v1274 = vrot.slane %v1272, 1
      %v1275 = vor.u32 %v1270, %v1274
      %v1293 = vunpack.c.l.b16 %v1250
      %v1294 = vunpack.c.l.b16 %v1251
      %v1295 = vunpack.c.l.b16 %v1252
      %v1296 = vunpack.c.l.b16 %v1253
      %v1297 = vunpack.c.l.b16 %v1254
      %v1298 = vunpack.c.l.b16 %v1255
      %v1299 = vunpack.c.l.b16 %v1256
      %v1300 = vunpack.c.l.b16 %v1257
      %v1301 = vunpack.c.l.b16 %v1258
      %v1302 = vunpack.c.l.b16 %v1259
      %v1303 = vunpack.c.l.b16 %v1260
      %v1304 = vunpack.c.l.b16 %v1261
      %v1305 = vunpack.c.l.b16 %v1262
      %v1306 = vunpack.c.l.b16 %v1263
      %v1307 = vunpack.c.l.b16 %v1264
      %v1308 = vunpack.c.l.b16 %v1265
      %v1309 = vpack.c.b16 %v1294, %v1293
      %v1310 = vpack.c.b16 %v1296, %v1295
      %v1311 = vpack.c.b16 %v1298, %v1297
      %v1312 = vpack.c.b16 %v1300, %v1299
      %v1313 = vpack.c.b16 %v1302, %v1301
      %v1314 = vpack.c.b16 %v1304, %v1303
      %v1315 = vpack.c.b16 %v1306, %v1305
      %v1316 = vpack.c.b16 %v1308, %v1307
      %1325 = vmatpush.bf16.msra.mxu0 %v1316
      %1326 = vmatpush.bf16.msra.mxu0 %v1315
      %1327 = vmatpush.bf16.msra.mxu0 %v1314
      %1328 = vmatpush.bf16.msra.mxu0 %v1313
      %1329 = vmatpush.bf16.msra.mxu0 %v1312
      %1330 = vmatpush.bf16.msra.mxu0 %v1311
      %1331 = vmatpush.bf16.msra.mxu0 %v1310
      %1332 = vmatpush.bf16.msra.mxu0 %v1309
      %1333 = vmatmul.bf16.gmra.mxu0 %v1275
      %v1334 = vpop.f32.mrf.mxu0
      %v1335 = vadd.f32 0.0, %v1334
      %v1336 = vpop.f32.mrf.mxu0
      %1337 = vdwg.mxu0
      %v1338 = vadd.f32 %v1247, %v1335
      %v1339 = vld [vmem:[%s7] sm:$0x1]
      %v1341 = vperm.slane %v1339, 0
      %v1343 = vmul.f32 %v1338, %v1341
      %v1344 = vld [vmem:[%s8] sm:$0x1]
      %v1346 = vperm.slane %v1344, 0
      %v1348 = vadd.f32 %v1343, %v1346
      %v1349 = vmax.f32 %v1348, 0.0
      %v1350 = vpack.c.bf16 %v1349, %v1349
      %1351 = vst [vmem:[%s588] sm:$0x3] %v1350
      %p1352 = scmp.lt.s32.totalorder %s24, 1
      %s1353 = scalar_select %p1352, %s24, 1
      %p1354 = scmp.lt.s32.totalorder %s25, 3
      %s1355 = scalar_select %p1354, %s25, 3
      %s1356 = smul.addr %s1353, 4
      %s1357 = sadd.s32 %s1355, %s1356
      %s1358 = smul.addr %s1357, 2
      %s1359 = scalar_lea.vmem %s9, %s1358
      // Predicated region
      $region57: #{stem_block_forward.7} parent=55 // pred_check
        %p1360 = pneg %p303
      $region58: #{stem_block_forward.7} parent=55 // pred_check_branch
        %1362 = sbr.rel (%p1360) target = $region60
      $region59: #{stem_block_forward.7} parent=55 // pred_region
        _
      $region60: #{stem_block_forward.7} parent=55 // pred_fallthru
        _
    $region56: #{stem_block_forward.7} parent=5 // pred_fallthru
      _
    %p1363 = scmp.le.s32.totalorder 2, %s15
    // Predicated region
    $region61: #{stem_block_forward.7} parent=5 // pred_check
      %p1364 = pneg %p1363
    $region62: #{stem_block_forward.7} parent=5 // pred_check_branch
      %1366 = sbr.rel (%p1364) target = $region64
    $region63: #{stem_block_forward.7} parent=5 // pred_region
      %s1367 = ssub.s32 %s15, 2
      // Predicated region
      $region65: #{stem_block_forward.7} parent=63 // pred_check
        %p1368 = pneg %p309
      $region66: #{stem_block_forward.7} parent=63 // pred_check_branch
        %1370 = sbr.rel (%p1368) target = $region68
      $region67: #{stem_block_forward.7} parent=63 // pred_region
        %p1371 = scmp.lt.s32.totalorder %s26, 1
        %s1372 = scalar_select %p1371, %s26, 1
        %p1373 = scmp.lt.s32.totalorder %s27, 3
        %s1374 = scalar_select %p1373, %s27, 3
        %s1375 = smul.addr %s1372, 4
        %s1376 = sadd.s32 %s1374, %s1375
        %s1377 = smul.addr %s1376, 2
        %s1378 = scalar_lea.vmem %s9, %s1377
      $region68: #{stem_block_forward.7} parent=63 // pred_fallthru
        _
    $region64: #{stem_block_forward.7} parent=5 // pred_fallthru
      _
  $region6: #{stem_block_forward.7} parent=0 // loop_footer
    %s19 = sadd.s32 1, %s15
  $region7: #{stem_block_forward.7} parent=0 // loop_footer_branch
    %14 = sbr.rel target = $region3
  $region8: #{stem_block_forward.7} parent=0 // loop_exit
    _

// kernel: stem_block_forward.9
$region0: #{stem_block_forward.9}
  #allocation0 [shape = 'u32[]', space=smem, size = 0x4, offset = 0x4, fixed_abs, tag = 'smem constant byte address 0x4 - core index']
  #allocation1 [shape = 'u32[72,128]{1,0:T(1,128)}', space=vmem, size = 0x9000, scoped, tag = 'internal scratch']
  %s0 = inlined_call_operand.vmem [shape: bf16[2,6,6,128], index: 0, kind: input, shape index: {}, may-alias: {0,1,2}]
  %s1 = inlined_call_operand.vmem [shape: bf16[2,6,6,128], index: 1, kind: input, shape index: {}, may-alias: {0,1,2}]
  %s2 = inlined_call_operand.vmem [shape: bf16[2,6,6,128], index: 2, kind: input, shape index: {}, may-alias: {0,1,2}]
  %s3 = inlined_call_operand.vmem [shape: bf16[2,6,6,128], index: 3, kind: input, shape index: {}, may-alias: {3,4,5}]
  %s4 = inlined_call_operand.vmem [shape: bf16[2,6,6,128], index: 4, kind: input, shape index: {}, may-alias: {3,4,5}]
  %s5 = inlined_call_operand.vmem [shape: bf16[2,6,6,128], index: 5, kind: input, shape index: {}, may-alias: {3,4,5}]
  %s6 = inlined_call_operand.vmem [shape: bf16[9,128,128], index: 6, kind: input, shape index: {}]
  %s7 = inlined_call_operand.vmem [shape: bf16[9,128,128], index: 7, kind: input, shape index: {}]
  %s8 = inlined_call_operand.vmem [shape: f32[1,128], index: 8, kind: input, shape index: {}]
  %s9 = inlined_call_operand.vmem [shape: f32[1,128], index: 9, kind: input, shape index: {}]
  %s10 = inlined_call_operand.vmem [shape: bf16[2,4,4,128], index: 10, kind: output, shape index: {}]
  %s11 = sld [smem:[#allocation0]]
  $region73: #{stem_block_forward.9} parent=0
    _
  %s13 = ssub.s32 1, %s11
  %s14 = scalar_select 0, %s13, %s11
  loop: start=0, step=1, limit=10
  $region2: #{stem_block_forward.9} parent=0 // loop_pre_header
    _
  $region3: #{stem_block_forward.9} parent=0 // loop_header
    %s16 = sphi 0, %s20
    %p17 = scmp.ge.s32.totalorder %s16, 10
    %s23 = sphi 0, %s35
    %s24 = sphi 0, %s31
    %s25 = sphi 0, %s23
    %s26 = sphi 0, %s24
    %s27 = sphi 0, %s25
    %s28 = sphi 0, %s26
    %s40 = sphi 0, %s42
    %s43 = sphi 0, %s40
    %s44 = sphi 0, %s43
    %s60 = sphi 0, %s44
    %s70 = sphi 0, %s72
    %s73 = sphi 0, %s70
    %s74 = sphi 0, %s73
    %s90 = sphi 0, %s74
    %s100 = sphi 0, %s102
    %s103 = sphi 0, %s100
    %s104 = sphi 0, %s103
    %s120 = sphi 0, %s104
    %s128 = sphi 0, %s130
    %s131 = sphi 0, %s128
    %s132 = sphi 0, %s131
    %s148 = sphi 0, %s132
    %s158 = sphi 0, %s160
    %s161 = sphi 0, %s158
    %s162 = sphi 0, %s161
    %s178 = sphi 0, %s162
    %s188 = sphi 0, %s190
    %s191 = sphi 0, %s188
    %s192 = sphi 0, %s191
    %s208 = sphi 0, %s192
    %s212 = sphi 0, %s212
    %s214 = sphi 0, %s212
    %s215 = sphi 0, %s214
    %s229 = sphi 0, %s215
    %s233 = sphi 0, %s233
    %s235 = sphi 0, %s233
    %s236 = sphi 0, %s235
    %s250 = sphi 0, %s236
    %s254 = sphi 0, %s254
    %s256 = sphi 0, %s254
    %s257 = sphi 0, %s256
    %s271 = sphi 0, %s257
    %s275 = sphi 0, %s275
    %s277 = sphi 0, %s275
    %s278 = sphi 0, %s277
    %s292 = sphi 0, %s278
    %s300 = sphi 0, %s302
    %s303 = sphi 0, %s300
    %s304 = sphi 0, %s303
    %s320 = sphi 0, %s304
  $region4: #{stem_block_forward.9} parent=0 // loop_header_branch
    %19 = sbr.rel (%p17) target = $region8
  $region5: #{stem_block_forward.9} parent=0 // loop_body
    %s21 = ssub.s32 %s16, 1
    %s22 = ssub.s32 %s16, 2
    %s29 = sadd.s32 1, %s24
    %p30 = scmp.ge.s32.totalorder %s29, 4
    %s31 = scalar_select %p30, 0, %s29
    %s32 = sadd.s32 1, %s23
    %s33 = scalar_select %p30, %s32, %s23
    %p34 = scmp.ge.s32.totalorder %s33, 2
    %s35 = scalar_select %p34, 0, %s33
    %s36 = ssub.s32 %s23, %s35
    %s37 = ssub.s32 %s24, %s31
    %s38 = sor.u32 %s36, %s37
    %p39 = scmp.eq.s32.totalorder %s38, 0
    %s41 = sadd.s32 %s40, 1
    %s42 = scalar_select %p39, %s40, %s41
    %p45 = pneg %p39
    %p46 = scmp.eq.s32.totalorder %s16, 7
    %p47 = por %p45, %p46
    %p48 = scmp.ne.s32.totalorder %s40, %s43
    %p49 = scmp.eq.s32.totalorder %s16, 0
    %p50 = por %p48, %p49
    %p51 = scmp.ne.s32.totalorder %s40, %s43
    %p52 = scmp.eq.s32.totalorder %s21, 7
    %p53 = por %p51, %p52
    %p54 = scmp.ne.s32.totalorder %s43, %s44
    %p55 = scmp.eq.s32.totalorder %s21, 0
    %p56 = por %p54, %p55
    %p57 = scmp.ne.s32.totalorder %s43, %s44
    %p58 = scmp.eq.s32.totalorder %s22, 7
    %p59 = por %p57, %p58
    %p61 = scmp.ne.s32.totalorder %s44, %s60
    %p62 = scmp.eq.s32.totalorder %s22, 0
    %p63 = por %p61, %p62
    %s64 = sadd.s32 %s24, 1
    %s65 = sadd.s32 %s31, 1
    %s66 = ssub.s32 %s23, %s35
    %s67 = ssub.s32 %s64, %s65
    %s68 = sor.u32 %s66, %s67
    %p69 = scmp.eq.s32.totalorder %s68, 0
    %s71 = sadd.s32 %s70, 1
    %s72 = scalar_select %p69, %s70, %s71
    %p75 = pneg %p69
    %p76 = scmp.eq.s32.totalorder %s16, 7
    %p77 = por %p75, %p76
    %p78 = scmp.ne.s32.totalorder %s70, %s73
    %p79 = scmp.eq.s32.totalorder %s16, 0
    %p80 = por %p78, %p79
    %p81 = scmp.ne.s32.totalorder %s70, %s73
    %p82 = scmp.eq.s32.totalorder %s21, 7
    %p83 = por %p81, %p82
    %p84 = scmp.ne.s32.totalorder %s73, %s74
    %p85 = scmp.eq.s32.totalorder %s21, 0
    %p86 = por %p84, %p85
    %p87 = scmp.ne.s32.totalorder %s73, %s74
    %p88 = scmp.eq.s32.totalorder %s22, 7
    %p89 = por %p87, %p88
    %p91 = scmp.ne.s32.totalorder %s74, %s90
    %p92 = scmp.eq.s32.totalorder %s22, 0
    %p93 = por %p91, %p92
    %s94 = sadd.s32 %s24, 2
    %s95 = sadd.s32 %s31, 2
    %s96 = ssub.s32 %s23, %s35
    %s97 = ssub.s32 %s94, %s95
    %s98 = sor.u32 %s96, %s97
    %p99 = scmp.eq.s32.totalorder %s98, 0
    %s101 = sadd.s32 %s100, 1
    %s102 = scalar_select %p99, %s100, %s101
    %p105 = pneg %p99
    %p106 = scmp.eq.s32.totalorder %s16, 7
    %p107 = por %p105, %p106
    %p108 = scmp.ne.s32.totalorder %s100, %s103
    %p109 = scmp.eq.s32.totalorder %s16, 0
    %p110 = por %p108, %p109
    %p111 = scmp.ne.s32.totalorder %s100, %s103
    %p112 = scmp.eq.s32.totalorder %s21, 7
    %p113 = por %p111, %p112
    %p114 = scmp.ne.s32.totalorder %s103, %s104
    %p115 = scmp.eq.s32.totalorder %s21, 0
    %p116 = por %p114, %p115
    %p117 = scmp.ne.s32.totalorder %s103, %s104
    %p118 = scmp.eq.s32.totalorder %s22, 7
    %p119 = por %p117, %p118
    %p121 = scmp.ne.s32.totalorder %s104, %s120
    %p122 = scmp.eq.s32.totalorder %s22, 0
    %p123 = por %p121, %p122
    %s124 = ssub.s32 %s23, %s35
    %s125 = ssub.s32 %s24, %s31
    %s126 = sor.u32 %s124, %s125
    %p127 = scmp.eq.s32.totalorder %s126, 0
    %s129 = sadd.s32 %s128, 1
    %s130 = scalar_select %p127, %s128, %s129
    %p133 = pneg %p127
    %p134 = scmp.eq.s32.totalorder %s16, 7
    %p135 = por %p133, %p134
    %p136 = scmp.ne.s32.totalorder %s128, %s131
    %p137 = scmp.eq.s32.totalorder %s16, 0
    %p138 = por %p136, %p137
    %p139 = scmp.ne.s32.totalorder %s128, %s131
    %p140 = scmp.eq.s32.totalorder %s21, 7
    %p141 = por %p139, %p140
    %p142 = scmp.ne.s32.totalorder %s131, %s132
    %p143 = scmp.eq.s32.totalorder %s21, 0
    %p144 = por %p142, %p143
    %p145 = scmp.ne.s32.totalorder %s131, %s132
    %p146 = scmp.eq.s32.totalorder %s22, 7
    %p147 = por %p145, %p146
    %p149 = scmp.ne.s32.totalorder %s132, %s148
    %p150 = scmp.eq.s32.totalorder %s22, 0
    %p151 = por %p149, %p150
    %s152 = sadd.s32 %s24, 1
    %s153 = sadd.s32 %s31, 1
    %s154 = ssub.s32 %s23, %s35
    %s155 = ssub.s32 %s152, %s153
    %s156 = sor.u32 %s154, %s155
    %p157 = scmp.eq.s32.totalorder %s156, 0
    %s159 = sadd.s32 %s158, 1
    %s160 = scalar_select %p157, %s158, %s159
    %p163 = pneg %p157
    %p164 = scmp.eq.s32.totalorder %s16, 7
    %p165 = por %p163, %p164
    %p166 = scmp.ne.s32.totalorder %s158, %s161
    %p167 = scmp.eq.s32.totalorder %s16, 0
    %p168 = por %p166, %p167
    %p169 = scmp.ne.s32.totalorder %s158, %s161
    %p170 = scmp.eq.s32.totalorder %s21, 7
    %p171 = por %p169, %p170
    %p172 = scmp.ne.s32.totalorder %s161, %s162
    %p173 = scmp.eq.s32.totalorder %s21, 0
    %p174 = por %p172, %p173
    %p175 = scmp.ne.s32.totalorder %s161, %s162
    %p176 = scmp.eq.s32.totalorder %s22, 7
    %p177 = por %p175, %p176
    %p179 = scmp.ne.s32.totalorder %s162, %s178
    %p180 = scmp.eq.s32.totalorder %s22, 0
    %p181 = por %p179, %p180
    %s182 = sadd.s32 %s24, 2
    %s183 = sadd.s32 %s31, 2
    %s184 = ssub.s32 %s23, %s35
    %s185 = ssub.s32 %s182, %s183
    %s186 = sor.u32 %s184, %s185
    %p187 = scmp.eq.s32.totalorder %s186, 0
    %s189 = sadd.s32 %s188, 1
    %s190 = scalar_select %p187, %s188, %s189
    %p193 = pneg %p187
    %p194 = scmp.eq.s32.totalorder %s16, 7
    %p195 = por %p193, %p194
    %p196 = scmp.ne.s32.totalorder %s188, %s191
    %p197 = scmp.eq.s32.totalorder %s16, 0
    %p198 = por %p196, %p197
    %p199 = scmp.ne.s32.totalorder %s188, %s191
    %p200 = scmp.eq.s32.totalorder %s21, 7
    %p201 = por %p199, %p200
    %p202 = scmp.ne.s32.totalorder %s191, %s192
    %p203 = scmp.eq.s32.totalorder %s21, 0
    %p204 = por %p202, %p203
    %p205 = scmp.ne.s32.totalorder %s191, %s192
    %p206 = scmp.eq.s32.totalorder %s22, 7
    %p207 = por %p205, %p206
    %p209 = scmp.ne.s32.totalorder %s192, %s208
    %p210 = scmp.eq.s32.totalorder %s22, 0
    %p211 = por %p209, %p210
    %s213 = sadd.s32 %s212, 1
    %p216 = scmp.eq.s32.totalorder %s16, 7
    %p217 = scmp.ne.s32.totalorder %s212, %s214
    %p218 = scmp.eq.s32.totalorder %s16, 0
    %p219 = por %p217, %p218
    %p220 = scmp.ne.s32.totalorder %s212, %s214
    %p221 = scmp.eq.s32.totalorder %s21, 7
    %p222 = por %p220, %p221
    %p223 = scmp.ne.s32.totalorder %s214, %s215
    %p224 = scmp.eq.s32.totalorder %s21, 0
    %p225 = por %p223, %p224
    %p226 = scmp.ne.s32.totalorder %s214, %s215
    %p227 = scmp.eq.s32.totalorder %s22, 7
    %p228 = por %p226, %p227
    %p230 = scmp.ne.s32.totalorder %s215, %s229
    %p231 = scmp.eq.s32.totalorder %s22, 0
    %p232 = por %p230, %p231
    %s234 = sadd.s32 %s233, 1
    %p237 = scmp.eq.s32.totalorder %s16, 7
    %p238 = scmp.ne.s32.totalorder %s233, %s235
    %p239 = scmp.eq.s32.totalorder %s16, 0
    %p240 = por %p238, %p239
    %p241 = scmp.ne.s32.totalorder %s233, %s235
    %p242 = scmp.eq.s32.totalorder %s21, 7
    %p243 = por %p241, %p242
    %p244 = scmp.ne.s32.totalorder %s235, %s236
    %p245 = scmp.eq.s32.totalorder %s21, 0
    %p246 = por %p244, %p245
    %p247 = scmp.ne.s32.totalorder %s235, %s236
    %p248 = scmp.eq.s32.totalorder %s22, 7
    %p249 = por %p247, %p248
    %p251 = scmp.ne.s32.totalorder %s236, %s250
    %p252 = scmp.eq.s32.totalorder %s22, 0
    %p253 = por %p251, %p252
    %s255 = sadd.s32 %s254, 1
    %p258 = scmp.eq.s32.totalorder %s16, 7
    %p259 = scmp.ne.s32.totalorder %s254, %s256
    %p260 = scmp.eq.s32.totalorder %s16, 0
    %p261 = por %p259, %p260
    %p262 = scmp.ne.s32.totalorder %s254, %s256
    %p263 = scmp.eq.s32.totalorder %s21, 7
    %p264 = por %p262, %p263
    %p265 = scmp.ne.s32.totalorder %s256, %s257
    %p266 = scmp.eq.s32.totalorder %s21, 0
    %p267 = por %p265, %p266
    %p268 = scmp.ne.s32.totalorder %s256, %s257
    %p269 = scmp.eq.s32.totalorder %s22, 7
    %p270 = por %p268, %p269
    %p272 = scmp.ne.s32.totalorder %s257, %s271
    %p273 = scmp.eq.s32.totalorder %s22, 0
    %p274 = por %p272, %p273
    %s276 = sadd.s32 %s275, 1
    %p279 = scmp.eq.s32.totalorder %s16, 7
    %p280 = scmp.ne.s32.totalorder %s275, %s277
    %p281 = scmp.eq.s32.totalorder %s16, 0
    %p282 = por %p280, %p281
    %p283 = scmp.ne.s32.totalorder %s275, %s277
    %p284 = scmp.eq.s32.totalorder %s21, 7
    %p285 = por %p283, %p284
    %p286 = scmp.ne.s32.totalorder %s277, %s278
    %p287 = scmp.eq.s32.totalorder %s21, 0
    %p288 = por %p286, %p287
    %p289 = scmp.ne.s32.totalorder %s277, %s278
    %p290 = scmp.eq.s32.totalorder %s22, 7
    %p291 = por %p289, %p290
    %p293 = scmp.ne.s32.totalorder %s278, %s292
    %p294 = scmp.eq.s32.totalorder %s22, 0
    %p295 = por %p293, %p294
    %s296 = ssub.s32 %s23, %s35
    %s297 = ssub.s32 %s24, %s31
    %s298 = sor.u32 %s296, %s297
    %p299 = scmp.eq.s32.totalorder %s298, 0
    %s301 = sadd.s32 %s300, 1
    %s302 = scalar_select %p299, %s300, %s301
    %p305 = pneg %p299
    %p306 = scmp.eq.s32.totalorder %s16, 7
    %p307 = por %p305, %p306
    %p308 = scmp.ne.s32.totalorder %s300, %s303
    %p309 = scmp.eq.s32.totalorder %s16, 0
    %p310 = por %p308, %p309
    %p311 = scmp.ne.s32.totalorder %s300, %s303
    %p312 = scmp.eq.s32.totalorder %s21, 7
    %p313 = por %p311, %p312
    %p314 = scmp.ne.s32.totalorder %s303, %s304
    %p315 = scmp.eq.s32.totalorder %s21, 0
    %p316 = por %p314, %p315
    %p317 = scmp.ne.s32.totalorder %s303, %s304
    %p318 = scmp.eq.s32.totalorder %s22, 7
    %p319 = por %p317, %p318
    %p321 = scmp.ne.s32.totalorder %s304, %s320
    %p322 = scmp.eq.s32.totalorder %s22, 0
    %p323 = por %p321, %p322
    %p324 = scmp.le.s32.totalorder 1, %s16
    %p325 = scmp.lt.s32.totalorder %s16, 9
    %p326 = pnand %p324, %p325
    %p327 = pneg %p326
    // Predicated region
    $region9: #{stem_block_forward.9} parent=5 // pred_check
      _
    $region10: #{stem_block_forward.9} parent=5 // pred_check_branch
      %329 = sbr.rel (%p326) target = $region12
    $region11: #{stem_block_forward.9} parent=5 // pred_region
      %s330 = ssub.s32 %s16, 1
      // Predicated region
      $region13: #{stem_block_forward.9} parent=11 // pred_check
        %p331 = pneg %p225
      $region14: #{stem_block_forward.9} parent=11 // pred_check_branch
        %333 = sbr.rel (%p331) target = $region16
      $region15: #{stem_block_forward.9} parent=11 // pred_region
        _
      $region16: #{stem_block_forward.9} parent=11 // pred_fallthru
        _
      // Predicated region
      $region17: #{stem_block_forward.9} parent=11 // pred_check
        %p334 = pneg %p246
      $region18: #{stem_block_forward.9} parent=11 // pred_check_branch
        %336 = sbr.rel (%p334) target = $region20
      $region19: #{stem_block_forward.9} parent=11 // pred_region
        _
      $region20: #{stem_block_forward.9} parent=11 // pred_fallthru
        _
      // Predicated region
      $region21: #{stem_block_forward.9} parent=11 // pred_check
        %p337 = pneg %p267
      $region22: #{stem_block_forward.9} parent=11 // pred_check_branch
        %339 = sbr.rel (%p337) target = $region24
      $region23: #{stem_block_forward.9} parent=11 // pred_region
        _
      $region24: #{stem_block_forward.9} parent=11 // pred_fallthru
        _
      // Predicated region
      $region25: #{stem_block_forward.9} parent=11 // pred_check
        %p340 = pneg %p288
      $region26: #{stem_block_forward.9} parent=11 // pred_check_branch
        %342 = sbr.rel (%p340) target = $region28
      $region27: #{stem_block_forward.9} parent=11 // pred_region
        _
      $region28: #{stem_block_forward.9} parent=11 // pred_fallthru
        _
    $region12: #{stem_block_forward.9} parent=5 // pred_fallthru
      _
    %p343 = scmp.lt.s32.totalorder %s16, 8
    // Predicated region
    $region29: #{stem_block_forward.9} parent=5 // pred_check
      %p344 = pneg %p343
    $region30: #{stem_block_forward.9} parent=5 // pred_check_branch
      %346 = sbr.rel (%p344) target = $region32
    $region31: #{stem_block_forward.9} parent=5 // pred_region
      // Predicated region
      $region33: #{stem_block_forward.9} parent=31 // pred_check
        %p347 = pneg %p50
      $region34: #{stem_block_forward.9} parent=31 // pred_check_branch
        %349 = sbr.rel (%p347) target = $region36
      $region35: #{stem_block_forward.9} parent=31 // pred_region
        %p350 = scmp.lt.s32.totalorder %s23, 1
        %s351 = scalar_select %p350, %s23, 1
        %p352 = scmp.lt.s32.totalorder %s24, 5
        %s353 = scalar_select %p352, %s24, 5
        %s354 = smul.addr %s351, 6
        %s355 = sadd.s32 %s353, %s354
        %s356 = smul.addr %s355, 4
        %s357 = scalar_lea.vmem %s0, %s356
      $region36: #{stem_block_forward.9} parent=31 // pred_fallthru
        _
      // Predicated region
      $region37: #{stem_block_forward.9} parent=31 // pred_check
        %p358 = pneg %p80
      $region38: #{stem_block_forward.9} parent=31 // pred_check_branch
        %360 = sbr.rel (%p358) target = $region40
      $region39: #{stem_block_forward.9} parent=31 // pred_region
        %s361 = sadd.s32 %s24, 1
        %p362 = scmp.lt.s32.totalorder %s23, 1
        %s363 = scalar_select %p362, %s23, 1
        %p364 = scmp.lt.s32.totalorder %s361, 5
        %s365 = scalar_select %p364, %s361, 5
        %s366 = smul.addr %s363, 6
        %s367 = sadd.s32 %s365, %s366
        %s368 = smul.addr %s367, 4
        %s369 = scalar_lea.vmem %s1, %s368
        %s370 = sadd.s32 %s24, 1
      $region40: #{stem_block_forward.9} parent=31 // pred_fallthru
        _
      // Predicated region
      $region41: #{stem_block_forward.9} parent=31 // pred_check
        %p371 = pneg %p110
      $region42: #{stem_block_forward.9} parent=31 // pred_check_branch
        %373 = sbr.rel (%p371) target = $region44
      $region43: #{stem_block_forward.9} parent=31 // pred_region
        %s374 = sadd.s32 %s24, 2
        %p375 = scmp.lt.s32.totalorder %s23, 1
        %s376 = scalar_select %p375, %s23, 1
        %p377 = scmp.lt.s32.totalorder %s374, 5
        %s378 = scalar_select %p377, %s374, 5
        %s379 = smul.addr %s376, 6
        %s380 = sadd.s32 %s378, %s379
        %s381 = smul.addr %s380, 4
        %s382 = scalar_lea.vmem %s2, %s381
        %s383 = sadd.s32 %s24, 2
      $region44: #{stem_block_forward.9} parent=31 // pred_fallthru
        _
      // Predicated region
      $region45: #{stem_block_forward.9} parent=31 // pred_check
        %p384 = pneg %p138
      $region46: #{stem_block_forward.9} parent=31 // pred_check_branch
        %386 = sbr.rel (%p384) target = $region48
      $region47: #{stem_block_forward.9} parent=31 // pred_region
        %p387 = scmp.lt.s32.totalorder %s23, 1
        %s388 = scalar_select %p387, %s23, 1
        %p389 = scmp.lt.s32.totalorder %s24, 5
        %s390 = scalar_select %p389, %s24, 5
        %s391 = smul.addr %s388, 6
        %s392 = sadd.s32 %s390, %s391
        %s393 = smul.addr %s392, 4
        %s394 = scalar_lea.vmem %s3, %s393
      $region48: #{stem_block_forward.9} parent=31 // pred_fallthru
        _
      // Predicated region
      $region49: #{stem_block_forward.9} parent=31 // pred_check
        %p395 = pneg %p168
      $region50: #{stem_block_forward.9} parent=31 // pred_check_branch
        %397 = sbr.rel (%p395) target = $region52
      $region51: #{stem_block_forward.9} parent=31 // pred_region
        %s398 = sadd.s32 %s24, 1
        %p399 = scmp.lt.s32.totalorder %s23, 1
        %s400 = scalar_select %p399, %s23, 1
        %p401 = scmp.lt.s32.totalorder %s398, 5
        %s402 = scalar_select %p401, %s398, 5
        %s403 = smul.addr %s400, 6
        %s404 = sadd.s32 %s402, %s403
        %s405 = smul.addr %s404, 4
        %s406 = scalar_lea.vmem %s4, %s405
        %s407 = sadd.s32 %s24, 1
      $region52: #{stem_block_forward.9} parent=31 // pred_fallthru
        _
      // Predicated region
      $region53: #{stem_block_forward.9} parent=31 // pred_check
        %p408 = pneg %p198
      $region54: #{stem_block_forward.9} parent=31 // pred_check_branch
        %410 = sbr.rel (%p408) target = $region56
      $region55: #{stem_block_forward.9} parent=31 // pred_region
        %s411 = sadd.s32 %s24, 2
        %p412 = scmp.lt.s32.totalorder %s23, 1
        %s413 = scalar_select %p412, %s23, 1
        %p414 = scmp.lt.s32.totalorder %s411, 5
        %s415 = scalar_select %p414, %s411, 5
        %s416 = smul.addr %s413, 6
        %s417 = sadd.s32 %s415, %s416
        %s418 = smul.addr %s417, 4
        %s419 = scalar_lea.vmem %s5, %s418
        %s420 = sadd.s32 %s24, 2
      $region56: #{stem_block_forward.9} parent=31 // pred_fallthru
        _
    $region32: #{stem_block_forward.9} parent=5 // pred_fallthru
      _
    %p421 = scmp.le.s32.totalorder 1, %s16
    %p422 = scmp.lt.s32.totalorder %s16, 9
    %p423 = pnand %p421, %p422
    %p424 = pneg %p423
    // Predicated region
    $region57: #{stem_block_forward.9} parent=5 // pred_check
      _
    $region58: #{stem_block_forward.9} parent=5 // pred_check_branch
      %426 = sbr.rel (%p423) target = $region60
    $region59: #{stem_block_forward.9} parent=5 // pred_region
      %s427 = ssub.s32 %s16, 1
      %p428 = scmp.lt.s32.totalorder %s25, 1
      %s429 = scalar_select %p428, %s25, 1
      %p430 = scmp.lt.s32.totalorder %s26, 5
      %s431 = scalar_select %p430, %s26, 5
      %s432 = smul.addr %s429, 6
      %s433 = sadd.s32 %s431, %s432
      %s434 = smul.addr %s433, 4
      %s435 = scalar_lea.vmem %s0, %s434
      %p436 = pneg %p56
      %p437 = pneg %p53
      %s438 = sadd.s32 %s26, 1
      %p439 = scmp.lt.s32.totalorder %s25, 1
      %s440 = scalar_select %p439, %s25, 1
      %p441 = scmp.lt.s32.totalorder %s438, 5
      %s442 = scalar_select %p441, %s438, 5
      %s443 = smul.addr %s440, 6
      %s444 = sadd.s32 %s442, %s443
      %s445 = smul.addr %s444, 4
      %s446 = scalar_lea.vmem %s1, %s445
      %p447 = pneg %p86
      %p448 = pneg %p83
      %s449 = sadd.s32 %s26, 2
      %p450 = scmp.lt.s32.totalorder %s25, 1
      %s451 = scalar_select %p450, %s25, 1
      %p452 = scmp.lt.s32.totalorder %s449, 5
      %s453 = scalar_select %p452, %s449, 5
      %s454 = smul.addr %s451, 6
      %s455 = sadd.s32 %s453, %s454
      %s456 = smul.addr %s455, 4
      %s457 = scalar_lea.vmem %s2, %s456
      %p458 = pneg %p116
      %p459 = pneg %p113
      %p460 = scmp.lt.s32.totalorder %s25, 1
      %s461 = scalar_select %p460, %s25, 1
      %p462 = scmp.lt.s32.totalorder %s26, 5
      %s463 = scalar_select %p462, %s26, 5
      %s464 = smul.addr %s461, 6
      %s465 = sadd.s32 %s463, %s464
      %s466 = smul.addr %s465, 4
      %s467 = scalar_lea.vmem %s3, %s466
      %p468 = pneg %p144
      %p469 = pneg %p141
      %s470 = sadd.s32 %s26, 1
      %p471 = scmp.lt.s32.totalorder %s25, 1
      %s472 = scalar_select %p471, %s25, 1
      %p473 = scmp.lt.s32.totalorder %s470, 5
      %s474 = scalar_select %p473, %s470, 5
      %s475 = smul.addr %s472, 6
      %s476 = sadd.s32 %s474, %s475
      %s477 = smul.addr %s476, 4
      %s478 = scalar_lea.vmem %s4, %s477
      %p479 = pneg %p174
      %p480 = pneg %p171
      %s481 = sadd.s32 %s26, 2
      %p482 = scmp.lt.s32.totalorder %s25, 1
      %s483 = scalar_select %p482, %s25, 1
      %p484 = scmp.lt.s32.totalorder %s481, 5
      %s485 = scalar_select %p484, %s481, 5
      %s486 = smul.addr %s483, 6
      %s487 = sadd.s32 %s485, %s486
      %s488 = smul.addr %s487, 4
      %s489 = scalar_lea.vmem %s5, %s488
      %p490 = pneg %p204
      %p491 = pneg %p201
      %p492 = pneg %p225
      %p493 = pneg %p222
      %p494 = pneg %p246
      %p495 = pneg %p243
      %p496 = pneg %p267
      %p497 = pneg %p264
      %p498 = pneg %p288
      %p499 = pneg %p285
      %p500 = pneg %p316
      %p501 = pneg %p313
      %p502 = scmp.lt.s32.totalorder %s25, 1
      %s503 = scalar_select %p502, %s25, 1
      %p504 = scmp.lt.s32.totalorder %s26, 3
      %s505 = scalar_select %p504, %s26, 3
      %s506 = smul.addr %s503, 4
      %s507 = sadd.s32 %s505, %s506
      %s508 = smul.addr %s507, 2
      %s509 = scalar_lea.vmem %s10, %s508
      %p510 = scmp.lt.s32.totalorder %s25, 1
      %s511 = scalar_select %p510, %s25, 1
      %p512 = scmp.lt.s32.totalorder %s26, 5
      %s513 = scalar_select %p512, %s26, 5
      %s514 = smul.addr %s511, 6
      %s515 = sadd.s32 %s513, %s514
      %s516 = smul.addr %s515, 4
      %s517 = scalar_lea.vmem %s0, %s516
      %s518 = sadd.s32 %s26, 1
      %p519 = scmp.lt.s32.totalorder %s25, 1
      %s520 = scalar_select %p519, %s25, 1
      %p521 = scmp.lt.s32.totalorder %s518, 5
      %s522 = scalar_select %p521, %s518, 5
      %s523 = smul.addr %s520, 6
      %s524 = sadd.s32 %s522, %s523
      %s525 = smul.addr %s524, 4
      %s526 = scalar_lea.vmem %s1, %s525
      %s527 = sadd.s32 %s26, 1
      %s528 = sadd.s32 %s26, 2
      %p529 = scmp.lt.s32.totalorder %s25, 1
      %s530 = scalar_select %p529, %s25, 1
      %p531 = scmp.lt.s32.totalorder %s528, 5
      %s532 = scalar_select %p531, %s528, 5
      %s533 = smul.addr %s530, 6
      %s534 = sadd.s32 %s532, %s533
      %s535 = smul.addr %s534, 4
      %s536 = scalar_lea.vmem %s2, %s535
      %s537 = sadd.s32 %s26, 2
      %p538 = scmp.lt.s32.totalorder %s25, 1
      %s539 = scalar_select %p538, %s25, 1
      %p540 = scmp.lt.s32.totalorder %s26, 5
      %s541 = scalar_select %p540, %s26, 5
      %s542 = smul.addr %s539, 6
      %s543 = sadd.s32 %s541, %s542
      %s544 = smul.addr %s543, 4
      %s545 = scalar_lea.vmem %s3, %s544
      %s546 = sadd.s32 %s26, 1
      %p547 = scmp.lt.s32.totalorder %s25, 1
      %s548 = scalar_select %p547, %s25, 1
      %p549 = scmp.lt.s32.totalorder %s546, 5
      %s550 = scalar_select %p549, %s546, 5
      %s551 = smul.addr %s548, 6
      %s552 = sadd.s32 %s550, %s551
      %s553 = smul.addr %s552, 4
      %s554 = scalar_lea.vmem %s4, %s553
      %s555 = sadd.s32 %s26, 1
      %s556 = sadd.s32 %s26, 2
      %p557 = scmp.lt.s32.totalorder %s25, 1
      %s558 = scalar_select %p557, %s25, 1
      %p559 = scmp.lt.s32.totalorder %s556, 5
      %s560 = scalar_select %p559, %s556, 5
      %s561 = smul.addr %s558, 6
      %s562 = sadd.s32 %s560, %s561
      %s563 = smul.addr %s562, 4
      %s564 = scalar_lea.vmem %s5, %s563
      %s565 = sadd.s32 %s26, 2
      %p566 = scmp.lt.s32.totalorder %s25, 1
      %s567 = scalar_select %p566, %s25, 1
      %p568 = scmp.lt.s32.totalorder %s26, 3
      %s569 = scalar_select %p568, %s26, 3
      %s570 = smul.addr %s567, 4
      %s571 = sadd.s32 %s569, %s570
      %s572 = smul.addr %s571, 2
      %s573 = scalar_lea.vmem %s10, %s572
      %v574 = vld [vmem:[%s517] sm:$0x3]
      %v575 = vld [vmem:[%s6] sm:$0xf]
      %v576 = vld [vmem:[%s6 + $0x4] sm:$0xf]
      %v577 = vld [vmem:[%s6 + $0x8] sm:$0xf]
      %v578 = vld [vmem:[%s6 + $0xc] sm:$0xf]
      %v579 = vld [vmem:[%s6 + $0x10] sm:$0xf]
      %v580 = vld [vmem:[%s6 + $0x14] sm:$0xf]
      %v581 = vld [vmem:[%s6 + $0x18] sm:$0xf]
      %v582 = vld [vmem:[%s6 + $0x1c] sm:$0xf]
      %v583 = vld [vmem:[%s6 + $0x20] sm:$0xf]
      %v584 = vld [vmem:[%s6 + $0x24] sm:$0xf]
      %v585 = vld [vmem:[%s6 + $0x28] sm:$0xf]
      %v586 = vld [vmem:[%s6 + $0x2c] sm:$0xf]
      %v587 = vld [vmem:[%s6 + $0x30] sm:$0xf]
      %v588 = vld [vmem:[%s6 + $0x34] sm:$0xf]
      %v589 = vld [vmem:[%s6 + $0x38] sm:$0xf]
      %v590 = vld [vmem:[%s6 + $0x3c] sm:$0xf]
      %v591 = vld [vmem:[%s517] sm:$0x7]
      %s592 = scalar_lea.vmem %s6, 64
      %v593 = vld [vmem:[%s592] sm:$0xf]
      %v594 = vld [vmem:[%s592 + $0x4] sm:$0xf]
      %v595 = vld [vmem:[%s592 + $0x8] sm:$0xf]
      %v596 = vld [vmem:[%s592 + $0xc] sm:$0xf]
      %v597 = vld [vmem:[%s592 + $0x10] sm:$0xf]
      %v598 = vld [vmem:[%s592 + $0x14] sm:$0xf]
      %v599 = vld [vmem:[%s592 + $0x18] sm:$0xf]
      %v600 = vld [vmem:[%s592 + $0x1c] sm:$0xf]
      %v601 = vld [vmem:[%s592 + $0x20] sm:$0xf]
      %v602 = vld [vmem:[%s592 + $0x24] sm:$0xf]
      %v603 = vld [vmem:[%s592 + $0x28] sm:$0xf]
      %v604 = vld [vmem:[%s592 + $0x2c] sm:$0xf]
      %v605 = vld [vmem:[%s592 + $0x30] sm:$0xf]
      %v606 = vld [vmem:[%s592 + $0x34] sm:$0xf]
      %v607 = vld [vmem:[%s592 + $0x38] sm:$0xf]
      %v608 = vld [vmem:[%s592 + $0x3c] sm:$0xf]
      %v610 = vunpack.c.l.b16 %v591
      %v611 = vpack.c.b16 %v610, %v610
      %v613 = vshrl.u32 %v611, 16
      %v615 = vshll.u32 %v611, 16
      %v617 = vrot.slane %v615, 1
      %v618 = vor.u32 %v613, %v617
      %v636 = vunpack.c.l.b16 %v593
      %v637 = vunpack.c.l.b16 %v594
      %v638 = vunpack.c.l.b16 %v595
      %v639 = vunpack.c.l.b16 %v596
      %v640 = vunpack.c.l.b16 %v597
      %v641 = vunpack.c.l.b16 %v598
      %v642 = vunpack.c.l.b16 %v599
      %v643 = vunpack.c.l.b16 %v600
      %v644 = vunpack.c.l.b16 %v601
      %v645 = vunpack.c.l.b16 %v602
      %v646 = vunpack.c.l.b16 %v603
      %v647 = vunpack.c.l.b16 %v604
      %v648 = vunpack.c.l.b16 %v605
      %v649 = vunpack.c.l.b16 %v606
      %v650 = vunpack.c.l.b16 %v607
      %v651 = vunpack.c.l.b16 %v608
      %v652 = vpack.c.b16 %v637, %v636
      %v653 = vpack.c.b16 %v639, %v638
      %v654 = vpack.c.b16 %v641, %v640
      %v655 = vpack.c.b16 %v643, %v642
      %v656 = vpack.c.b16 %v645, %v644
      %v657 = vpack.c.b16 %v647, %v646
      %v658 = vpack.c.b16 %v649, %v648
      %v659 = vpack.c.b16 %v651, %v650
      %668 = vmatpush.bf16.msra.mxu0 %v659
      %669 = vmatpush.bf16.msra.mxu0 %v658
      %670 = vmatpush.bf16.msra.mxu0 %v657
      %671 = vmatpush.bf16.msra.mxu0 %v656
      %672 = vmatpush.bf16.msra.mxu0 %v655
      %673 = vmatpush.bf16.msra.mxu0 %v654
      %674 = vmatpush.bf16.msra.mxu0 %v653
      %675 = vmatpush.bf16.msra.mxu0 %v652
      %676 = vmatmul.bf16.gmra.mxu0 %v618
      %v677 = vpop.f32.mrf.mxu0
      %v678 = vadd.f32 0.0, %v677
      %v679 = vpop.f32.mrf.mxu0
      %680 = vdwg.mxu0
      %v697 = vunpack.c.l.b16 %v575
      %v698 = vunpack.c.l.b16 %v576
      %v699 = vunpack.c.l.b16 %v577
      %v700 = vunpack.c.l.b16 %v578
      %v701 = vunpack.c.l.b16 %v579
      %v702 = vunpack.c.l.b16 %v580
      %v703 = vunpack.c.l.b16 %v581
      %v704 = vunpack.c.l.b16 %v582
      %v705 = vunpack.c.l.b16 %v583
      %v706 = vunpack.c.l.b16 %v584
      %v707 = vunpack.c.l.b16 %v585
      %v708 = vunpack.c.l.b16 %v586
      %v709 = vunpack.c.l.b16 %v587
      %v710 = vunpack.c.l.b16 %v588
      %v711 = vunpack.c.l.b16 %v589
      %v712 = vunpack.c.l.b16 %v590
      %v713 = vpack.c.b16 %v698, %v697
      %v714 = vpack.c.b16 %v700, %v699
      %v715 = vpack.c.b16 %v702, %v701
      %v716 = vpack.c.b16 %v704, %v703
      %v717 = vpack.c.b16 %v706, %v705
      %v718 = vpack.c.b16 %v708, %v707
      %v719 = vpack.c.b16 %v710, %v709
      %v720 = vpack.c.b16 %v712, %v711
      %729 = vmatpush.bf16.msra.mxu0 %v720
      %730 = vmatpush.bf16.msra.mxu0 %v719
      %731 = vmatpush.bf16.msra.mxu0 %v718
      %732 = vmatpush.bf16.msra.mxu0 %v717
      %733 = vmatpush.bf16.msra.mxu0 %v716
      %734 = vmatpush.bf16.msra.mxu0 %v715
      %735 = vmatpush.bf16.msra.mxu0 %v714
      %736 = vmatpush.bf16.msra.mxu0 %v713
      %737 = vmatmul.bf16.gmra.mxu0 %v574
      %v738 = vpop.f32.mrf.mxu0
      %v739 = vadd.f32 %v678, %v738
      %v740 = vpop.f32.mrf.mxu0
      %741 = vdwg.mxu0
      %v742 = vld [vmem:[%s517] sm:$0x6]
      %s743 = scalar_lea.vmem %s6, 128
      %v744 = vld [vmem:[%s743] sm:$0xf]
      %v745 = vld [vmem:[%s743 + $0x4] sm:$0xf]
      %v746 = vld [vmem:[%s743 + $0x8] sm:$0xf]
      %v747 = vld [vmem:[%s743 + $0xc] sm:$0xf]
      %v748 = vld [vmem:[%s743 + $0x10] sm:$0xf]
      %v749 = vld [vmem:[%s743 + $0x14] sm:$0xf]
      %v750 = vld [vmem:[%s743 + $0x18] sm:$0xf]
      %v751 = vld [vmem:[%s743 + $0x1c] sm:$0xf]
      %v752 = vld [vmem:[%s743 + $0x20] sm:$0xf]
      %v753 = vld [vmem:[%s743 + $0x24] sm:$0xf]
      %v754 = vld [vmem:[%s743 + $0x28] sm:$0xf]
      %v755 = vld [vmem:[%s743 + $0x2c] sm:$0xf]
      %v756 = vld [vmem:[%s743 + $0x30] sm:$0xf]
      %v757 = vld [vmem:[%s743 + $0x34] sm:$0xf]
      %v758 = vld [vmem:[%s743 + $0x38] sm:$0xf]
      %v759 = vld [vmem:[%s743 + $0x3c] sm:$0xf]
      %v761 = vunpack.c.l.b16 %v742
      %v762 = vpack.c.b16 %v761, %v761
      %v763 = vrot.slane %v762, 1
      %v781 = vunpack.c.l.b16 %v744
      %v782 = vunpack.c.l.b16 %v745
      %v783 = vunpack.c.l.b16 %v746
      %v784 = vunpack.c.l.b16 %v747
      %v785 = vunpack.c.l.b16 %v748
      %v786 = vunpack.c.l.b16 %v749
      %v787 = vunpack.c.l.b16 %v750
      %v788 = vunpack.c.l.b16 %v751
      %v789 = vunpack.c.l.b16 %v752
      %v790 = vunpack.c.l.b16 %v753
      %v791 = vunpack.c.l.b16 %v754
      %v792 = vunpack.c.l.b16 %v755
      %v793 = vunpack.c.l.b16 %v756
      %v794 = vunpack.c.l.b16 %v757
      %v795 = vunpack.c.l.b16 %v758
      %v796 = vunpack.c.l.b16 %v759
      %v797 = vpack.c.b16 %v782, %v781
      %v798 = vpack.c.b16 %v784, %v783
      %v799 = vpack.c.b16 %v786, %v785
      %v800 = vpack.c.b16 %v788, %v787
      %v801 = vpack.c.b16 %v790, %v789
      %v802 = vpack.c.b16 %v792, %v791
      %v803 = vpack.c.b16 %v794, %v793
      %v804 = vpack.c.b16 %v796, %v795
      %813 = vmatpush.bf16.msra.mxu0 %v804
      %814 = vmatpush.bf16.msra.mxu0 %v803
      %815 = vmatpush.bf16.msra.mxu0 %v802
      %816 = vmatpush.bf16.msra.mxu0 %v801
      %817 = vmatpush.bf16.msra.mxu0 %v800
      %818 = vmatpush.bf16.msra.mxu0 %v799
      %819 = vmatpush.bf16.msra.mxu0 %v798
      %820 = vmatpush.bf16.msra.mxu0 %v797
      %821 = vmatmul.bf16.gmra.mxu0 %v763
      %v822 = vpop.f32.mrf.mxu0
      %v823 = vadd.f32 0.0, %v822
      %v824 = vpop.f32.mrf.mxu0
      %825 = vdwg.mxu0
      %v826 = vadd.f32 %v739, %v823
      %v827 = vld [vmem:[%s526] sm:$0x3]
      %s828 = scalar_lea.vmem %s6, 192
      %v829 = vld [vmem:[%s828] sm:$0xf]
      %v830 = vld [vmem:[%s828 + $0x4] sm:$0xf]
      %v831 = vld [vmem:[%s828 + $0x8] sm:$0xf]
      %v832 = vld [vmem:[%s828 + $0xc] sm:$0xf]
      %v833 = vld [vmem:[%s828 + $0x10] sm:$0xf]
      %v834 = vld [vmem:[%s828 + $0x14] sm:$0xf]
      %v835 = vld [vmem:[%s828 + $0x18] sm:$0xf]
      %v836 = vld [vmem:[%s828 + $0x1c] sm:$0xf]
      %v837 = vld [vmem:[%s828 + $0x20] sm:$0xf]
      %v838 = vld [vmem:[%s828 + $0x24] sm:$0xf]
      %v839 = vld [vmem:[%s828 + $0x28] sm:$0xf]
      %v840 = vld [vmem:[%s828 + $0x2c] sm:$0xf]
      %v841 = vld [vmem:[%s828 + $0x30] sm:$0xf]
      %v842 = vld [vmem:[%s828 + $0x34] sm:$0xf]
      %v843 = vld [vmem:[%s828 + $0x38] sm:$0xf]
      %v844 = vld [vmem:[%s828 + $0x3c] sm:$0xf]
      %v861 = vunpack.c.l.b16 %v829
      %v862 = vunpack.c.l.b16 %v830
      %v863 = vunpack.c.l.b16 %v831
      %v864 = vunpack.c.l.b16 %v832
      %v865 = vunpack.c.l.b16 %v833
      %v866 = vunpack.c.l.b16 %v834
      %v867 = vunpack.c.l.b16 %v835
      %v868 = vunpack.c.l.b16 %v836
      %v869 = vunpack.c.l.b16 %v837
      %v870 = vunpack.c.l.b16 %v838
      %v871 = vunpack.c.l.b16 %v839
      %v872 = vunpack.c.l.b16 %v840
      %v873 = vunpack.c.l.b16 %v841
      %v874 = vunpack.c.l.b16 %v842
      %v875 = vunpack.c.l.b16 %v843
      %v876 = vunpack.c.l.b16 %v844
      %v877 = vpack.c.b16 %v862, %v861
      %v878 = vpack.c.b16 %v864, %v863
      %v879 = vpack.c.b16 %v866, %v865
      %v880 = vpack.c.b16 %v868, %v867
      %v881 = vpack.c.b16 %v870, %v869
      %v882 = vpack.c.b16 %v872, %v871
      %v883 = vpack.c.b16 %v874, %v873
      %v884 = vpack.c.b16 %v876, %v875
      %893 = vmatpush.bf16.msra.mxu0 %v884
      %894 = vmatpush.bf16.msra.mxu0 %v883
      %895 = vmatpush.bf16.msra.mxu0 %v882
      %896 = vmatpush.bf16.msra.mxu0 %v881
      %897 = vmatpush.bf16.msra.mxu0 %v880
      %898 = vmatpush.bf16.msra.mxu0 %v879
      %899 = vmatpush.bf16.msra.mxu0 %v878
      %900 = vmatpush.bf16.msra.mxu0 %v877
      %901 = vmatmul.bf16.gmra.mxu0 %v827
      %v902 = vpop.f32.mrf.mxu0
      %v903 = vadd.f32 0.0, %v902
      %v904 = vpop.f32.mrf.mxu0
      %905 = vdwg.mxu0
      %v906 = vadd.f32 %v826, %v903
      %v907 = vld [vmem:[%s526] sm:$0x7]
      %s908 = scalar_lea.vmem %s6, 256
      %v909 = vld [vmem:[%s908] sm:$0xf]
      %v910 = vld [vmem:[%s908 + $0x4] sm:$0xf]
      %v911 = vld [vmem:[%s908 + $0x8] sm:$0xf]
      %v912 = vld [vmem:[%s908 + $0xc] sm:$0xf]
      %v913 = vld [vmem:[%s908 + $0x10] sm:$0xf]
      %v914 = vld [vmem:[%s908 + $0x14] sm:$0xf]
      %v915 = vld [vmem:[%s908 + $0x18] sm:$0xf]
      %v916 = vld [vmem:[%s908 + $0x1c] sm:$0xf]
      %v917 = vld [vmem:[%s908 + $0x20] sm:$0xf]
      %v918 = vld [vmem:[%s908 + $0x24] sm:$0xf]
      %v919 = vld [vmem:[%s908 + $0x28] sm:$0xf]
      %v920 = vld [vmem:[%s908 + $0x2c] sm:$0xf]
      %v921 = vld [vmem:[%s908 + $0x30] sm:$0xf]
      %v922 = vld [vmem:[%s908 + $0x34] sm:$0xf]
      %v923 = vld [vmem:[%s908 + $0x38] sm:$0xf]
      %v924 = vld [vmem:[%s908 + $0x3c] sm:$0xf]
      %v926 = vunpack.c.l.b16 %v907
      %v927 = vpack.c.b16 %v926, %v926
      %v929 = vshrl.u32 %v927, 16
      %v931 = vshll.u32 %v927, 16
      %v933 = vrot.slane %v931, 1
      %v934 = vor.u32 %v929, %v933
      %v952 = vunpack.c.l.b16 %v909
      %v953 = vunpack.c.l.b16 %v910
      %v954 = vunpack.c.l.b16 %v911
      %v955 = vunpack.c.l.b16 %v912
      %v956 = vunpack.c.l.b16 %v913
      %v957 = vunpack.c.l.b16 %v914
      %v958 = vunpack.c.l.b16 %v915
      %v959 = vunpack.c.l.b16 %v916
      %v960 = vunpack.c.l.b16 %v917
      %v961 = vunpack.c.l.b16 %v918
      %v962 = vunpack.c.l.b16 %v919
      %v963 = vunpack.c.l.b16 %v920
      %v964 = vunpack.c.l.b16 %v921
      %v965 = vunpack.c.l.b16 %v922
      %v966 = vunpack.c.l.b16 %v923
      %v967 = vunpack.c.l.b16 %v924
      %v968 = vpack.c.b16 %v953, %v952
      %v969 = vpack.c.b16 %v955, %v954
      %v970 = vpack.c.b16 %v957, %v956
      %v971 = vpack.c.b16 %v959, %v958
      %v972 = vpack.c.b16 %v961, %v960
      %v973 = vpack.c.b16 %v963, %v962
      %v974 = vpack.c.b16 %v965, %v964
      %v975 = vpack.c.b16 %v967, %v966
      %984 = vmatpush.bf16.msra.mxu0 %v975
      %985 = vmatpush.bf16.msra.mxu0 %v974
      %986 = vmatpush.bf16.msra.mxu0 %v973
      %987 = vmatpush.bf16.msra.mxu0 %v972
      %988 = vmatpush.bf16.msra.mxu0 %v971
      %989 = vmatpush.bf16.msra.mxu0 %v970
      %990 = vmatpush.bf16.msra.mxu0 %v969
      %991 = vmatpush.bf16.msra.mxu0 %v968
      %992 = vmatmul.bf16.gmra.mxu0 %v934
      %v993 = vpop.f32.mrf.mxu0
      %v994 = vadd.f32 0.0, %v993
      %v995 = vpop.f32.mrf.mxu0
      %996 = vdwg.mxu0
      %v997 = vadd.f32 %v906, %v994
      %v998 = vld [vmem:[%s526] sm:$0x6]
      %s999 = scalar_lea.vmem %s6, 320
      %v1000 = vld [vmem:[%s999] sm:$0xf]
      %v1001 = vld [vmem:[%s999 + $0x4] sm:$0xf]
      %v1002 = vld [vmem:[%s999 + $0x8] sm:$0xf]
      %v1003 = vld [vmem:[%s999 + $0xc] sm:$0xf]
      %v1004 = vld [vmem:[%s999 + $0x10] sm:$0xf]
      %v1005 = vld [vmem:[%s999 + $0x14] sm:$0xf]
      %v1006 = vld [vmem:[%s999 + $0x18] sm:$0xf]
      %v1007 = vld [vmem:[%s999 + $0x1c] sm:$0xf]
      %v1008 = vld [vmem:[%s999 + $0x20] sm:$0xf]
      %v1009 = vld [vmem:[%s999 + $0x24] sm:$0xf]
      %v1010 = vld [vmem:[%s999 + $0x28] sm:$0xf]
      %v1011 = vld [vmem:[%s999 + $0x2c] sm:$0xf]
      %v1012 = vld [vmem:[%s999 + $0x30] sm:$0xf]
      %v1013 = vld [vmem:[%s999 + $0x34] sm:$0xf]
      %v1014 = vld [vmem:[%s999 + $0x38] sm:$0xf]
      %v1015 = vld [vmem:[%s999 + $0x3c] sm:$0xf]
      %v1017 = vunpack.c.l.b16 %v998
      %v1018 = vpack.c.b16 %v1017, %v1017
      %v1019 = vrot.slane %v1018, 1
      %v1037 = vunpack.c.l.b16 %v1000
      %v1038 = vunpack.c.l.b16 %v1001
      %v1039 = vunpack.c.l.b16 %v1002
      %v1040 = vunpack.c.l.b16 %v1003
      %v1041 = vunpack.c.l.b16 %v1004
      %v1042 = vunpack.c.l.b16 %v1005
      %v1043 = vunpack.c.l.b16 %v1006
      %v1044 = vunpack.c.l.b16 %v1007
      %v1045 = vunpack.c.l.b16 %v1008
      %v1046 = vunpack.c.l.b16 %v1009
      %v1047 = vunpack.c.l.b16 %v1010
      %v1048 = vunpack.c.l.b16 %v1011
      %v1049 = vunpack.c.l.b16 %v1012
      %v1050 = vunpack.c.l.b16 %v1013
      %v1051 = vunpack.c.l.b16 %v1014
      %v1052 = vunpack.c.l.b16 %v1015
      %v1053 = vpack.c.b16 %v1038, %v1037
      %v1054 = vpack.c.b16 %v1040, %v1039
      %v1055 = vpack.c.b16 %v1042, %v1041
      %v1056 = vpack.c.b16 %v1044, %v1043
      %v1057 = vpack.c.b16 %v1046, %v1045
      %v1058 = vpack.c.b16 %v1048, %v1047
      %v1059 = vpack.c.b16 %v1050, %v1049
      %v1060 = vpack.c.b16 %v1052, %v1051
      %1069 = vmatpush.bf16.msra.mxu0 %v1060
      %1070 = vmatpush.bf16.msra.mxu0 %v1059
      %1071 = vmatpush.bf16.msra.mxu0 %v1058
      %1072 = vmatpush.bf16.msra.mxu0 %v1057
      %1073 = vmatpush.bf16.msra.mxu0 %v1056
      %1074 = vmatpush.bf16.msra.mxu0 %v1055
      %1075 = vmatpush.bf16.msra.mxu0 %v1054
      %1076 = vmatpush.bf16.msra.mxu0 %v1053
      %1077 = vmatmul.bf16.gmra.mxu0 %v1019
      %v1078 = vpop.f32.mrf.mxu0
      %v1079 = vadd.f32 0.0, %v1078
      %v1080 = vpop.f32.mrf.mxu0
      %1081 = vdwg.mxu0
      %v1082 = vadd.f32 %v997, %v1079
      %v1083 = vld [vmem:[%s536] sm:$0x3]
      %s1084 = scalar_lea.vmem %s6, 384
      %v1085 = vld [vmem:[%s1084] sm:$0xf]
      %v1086 = vld [vmem:[%s1084 + $0x4] sm:$0xf]
      %v1087 = vld [vmem:[%s1084 + $0x8] sm:$0xf]
      %v1088 = vld [vmem:[%s1084 + $0xc] sm:$0xf]
      %v1089 = vld [vmem:[%s1084 + $0x10] sm:$0xf]
      %v1090 = vld [vmem:[%s1084 + $0x14] sm:$0xf]
      %v1091 = vld [vmem:[%s1084 + $0x18] sm:$0xf]
      %v1092 = vld [vmem:[%s1084 + $0x1c] sm:$0xf]
      %v1093 = vld [vmem:[%s1084 + $0x20] sm:$0xf]
      %v1094 = vld [vmem:[%s1084 + $0x24] sm:$0xf]
      %v1095 = vld [vmem:[%s1084 + $0x28] sm:$0xf]
      %v1096 = vld [vmem:[%s1084 + $0x2c] sm:$0xf]
      %v1097 = vld [vmem:[%s1084 + $0x30] sm:$0xf]
      %v1098 = vld [vmem:[%s1084 + $0x34] sm:$0xf]
      %v1099 = vld [vmem:[%s1084 + $0x38] sm:$0xf]
      %v1100 = vld [vmem:[%s1084 + $0x3c] sm:$0xf]
      %v1117 = vunpack.c.l.b16 %v1085
      %v1118 = vunpack.c.l.b16 %v1086
      %v1119 = vunpack.c.l.b16 %v1087
      %v1120 = vunpack.c.l.b16 %v1088
      %v1121 = vunpack.c.l.b16 %v1089
      %v1122 = vunpack.c.l.b16 %v1090
      %v1123 = vunpack.c.l.b16 %v1091
      %v1124 = vunpack.c.l.b16 %v1092
      %v1125 = vunpack.c.l.b16 %v1093
      %v1126 = vunpack.c.l.b16 %v1094
      %v1127 = vunpack.c.l.b16 %v1095
      %v1128 = vunpack.c.l.b16 %v1096
      %v1129 = vunpack.c.l.b16 %v1097
      %v1130 = vunpack.c.l.b16 %v1098
      %v1131 = vunpack.c.l.b16 %v1099
      %v1132 = vunpack.c.l.b16 %v1100
      %v1133 = vpack.c.b16 %v1118, %v1117
      %v1134 = vpack.c.b16 %v1120, %v1119
      %v1135 = vpack.c.b16 %v1122, %v1121
      %v1136 = vpack.c.b16 %v1124, %v1123
      %v1137 = vpack.c.b16 %v1126, %v1125
      %v1138 = vpack.c.b16 %v1128, %v1127
      %v1139 = vpack.c.b16 %v1130, %v1129
      %v1140 = vpack.c.b16 %v1132, %v1131
      %1149 = vmatpush.bf16.msra.mxu0 %v1140
      %1150 = vmatpush.bf16.msra.mxu0 %v1139
      %1151 = vmatpush.bf16.msra.mxu0 %v1138
      %1152 = vmatpush.bf16.msra.mxu0 %v1137
      %1153 = vmatpush.bf16.msra.mxu0 %v1136
      %1154 = vmatpush.bf16.msra.mxu0 %v1135
      %1155 = vmatpush.bf16.msra.mxu0 %v1134
      %1156 = vmatpush.bf16.msra.mxu0 %v1133
      %1157 = vmatmul.bf16.gmra.mxu0 %v1083
      %v1158 = vpop.f32.mrf.mxu0
      %v1159 = vadd.f32 0.0, %v1158
      %v1160 = vpop.f32.mrf.mxu0
      %1161 = vdwg.mxu0
      %v1162 = vadd.f32 %v1082, %v1159
      %v1163 = vld [vmem:[%s536] sm:$0x7]
      %s1164 = scalar_lea.vmem %s6, 448
      %v1165 = vld [vmem:[%s1164] sm:$0xf]
      %v1166 = vld [vmem:[%s1164 + $0x4] sm:$0xf]
      %v1167 = vld [vmem:[%s1164 + $0x8] sm:$0xf]
      %v1168 = vld [vmem:[%s1164 + $0xc] sm:$0xf]
      %v1169 = vld [vmem:[%s1164 + $0x10] sm:$0xf]
      %v1170 = vld [vmem:[%s1164 + $0x14] sm:$0xf]
      %v1171 = vld [vmem:[%s1164 + $0x18] sm:$0xf]
      %v1172 = vld [vmem:[%s1164 + $0x1c] sm:$0xf]
      %v1173 = vld [vmem:[%s1164 + $0x20] sm:$0xf]
      %v1174 = vld [vmem:[%s1164 + $0x24] sm:$0xf]
      %v1175 = vld [vmem:[%s1164 + $0x28] sm:$0xf]
      %v1176 = vld [vmem:[%s1164 + $0x2c] sm:$0xf]
      %v1177 = vld [vmem:[%s1164 + $0x30] sm:$0xf]
      %v1178 = vld [vmem:[%s1164 + $0x34] sm:$0xf]
      %v1179 = vld [vmem:[%s1164 + $0x38] sm:$0xf]
      %v1180 = vld [vmem:[%s1164 + $0x3c] sm:$0xf]
      %v1182 = vunpack.c.l.b16 %v1163
      %v1183 = vpack.c.b16 %v1182, %v1182
      %v1185 = vshrl.u32 %v1183, 16
      %v1187 = vshll.u32 %v1183, 16
      %v1189 = vrot.slane %v1187, 1
      %v1190 = vor.u32 %v1185, %v1189
      %v1208 = vunpack.c.l.b16 %v1165
      %v1209 = vunpack.c.l.b16 %v1166
      %v1210 = vunpack.c.l.b16 %v1167
      %v1211 = vunpack.c.l.b16 %v1168
      %v1212 = vunpack.c.l.b16 %v1169
      %v1213 = vunpack.c.l.b16 %v1170
      %v1214 = vunpack.c.l.b16 %v1171
      %v1215 = vunpack.c.l.b16 %v1172
      %v1216 = vunpack.c.l.b16 %v1173
      %v1217 = vunpack.c.l.b16 %v1174
      %v1218 = vunpack.c.l.b16 %v1175
      %v1219 = vunpack.c.l.b16 %v1176
      %v1220 = vunpack.c.l.b16 %v1177
      %v1221 = vunpack.c.l.b16 %v1178
      %v1222 = vunpack.c.l.b16 %v1179
      %v1223 = vunpack.c.l.b16 %v1180
      %v1224 = vpack.c.b16 %v1209, %v1208
      %v1225 = vpack.c.b16 %v1211, %v1210
      %v1226 = vpack.c.b16 %v1213, %v1212
      %v1227 = vpack.c.b16 %v1215, %v1214
      %v1228 = vpack.c.b16 %v1217, %v1216
      %v1229 = vpack.c.b16 %v1219, %v1218
      %v1230 = vpack.c.b16 %v1221, %v1220
      %v1231 = vpack.c.b16 %v1223, %v1222
      %1240 = vmatpush.bf16.msra.mxu0 %v1231
      %1241 = vmatpush.bf16.msra.mxu0 %v1230
      %1242 = vmatpush.bf16.msra.mxu0 %v1229
      %1243 = vmatpush.bf16.msra.mxu0 %v1228
      %1244 = vmatpush.bf16.msra.mxu0 %v1227
      %1245 = vmatpush.bf16.msra.mxu0 %v1226
      %1246 = vmatpush.bf16.msra.mxu0 %v1225
      %1247 = vmatpush.bf16.msra.mxu0 %v1224
      %1248 = vmatmul.bf16.gmra.mxu0 %v1190
      %v1249 = vpop.f32.mrf.mxu0
      %v1250 = vadd.f32 0.0, %v1249
      %v1251 = vpop.f32.mrf.mxu0
      %1252 = vdwg.mxu0
      %v1253 = vadd.f32 %v1162, %v1250
      %v1254 = vld [vmem:[%s536] sm:$0x6]
      %s1255 = scalar_lea.vmem %s6, 512
      %v1256 = vld [vmem:[%s1255] sm:$0xf]
      %v1257 = vld [vmem:[%s1255 + $0x4] sm:$0xf]
      %v1258 = vld [vmem:[%s1255 + $0x8] sm:$0xf]
      %v1259 = vld [vmem:[%s1255 + $0xc] sm:$0xf]
      %v1260 = vld [vmem:[%s1255 + $0x10] sm:$0xf]
      %v1261 = vld [vmem:[%s1255 + $0x14] sm:$0xf]
      %v1262 = vld [vmem:[%s1255 + $0x18] sm:$0xf]
      %v1263 = vld [vmem:[%s1255 + $0x1c] sm:$0xf]
      %v1264 = vld [vmem:[%s1255 + $0x20] sm:$0xf]
      %v1265 = vld [vmem:[%s1255 + $0x24] sm:$0xf]
      %v1266 = vld [vmem:[%s1255 + $0x28] sm:$0xf]
      %v1267 = vld [vmem:[%s1255 + $0x2c] sm:$0xf]
      %v1268 = vld [vmem:[%s1255 + $0x30] sm:$0xf]
      %v1269 = vld [vmem:[%s1255 + $0x34] sm:$0xf]
      %v1270 = vld [vmem:[%s1255 + $0x38] sm:$0xf]
      %v1271 = vld [vmem:[%s1255 + $0x3c] sm:$0xf]
      %v1273 = vunpack.c.l.b16 %v1254
      %v1274 = vpack.c.b16 %v1273, %v1273
      %v1275 = vrot.slane %v1274, 1
      %v1293 = vunpack.c.l.b16 %v1256
      %v1294 = vunpack.c.l.b16 %v1257
      %v1295 = vunpack.c.l.b16 %v1258
      %v1296 = vunpack.c.l.b16 %v1259
      %v1297 = vunpack.c.l.b16 %v1260
      %v1298 = vunpack.c.l.b16 %v1261
      %v1299 = vunpack.c.l.b16 %v1262
      %v1300 = vunpack.c.l.b16 %v1263
      %v1301 = vunpack.c.l.b16 %v1264
      %v1302 = vunpack.c.l.b16 %v1265
      %v1303 = vunpack.c.l.b16 %v1266
      %v1304 = vunpack.c.l.b16 %v1267
      %v1305 = vunpack.c.l.b16 %v1268
      %v1306 = vunpack.c.l.b16 %v1269
      %v1307 = vunpack.c.l.b16 %v1270
      %v1308 = vunpack.c.l.b16 %v1271
      %v1309 = vpack.c.b16 %v1294, %v1293
      %v1310 = vpack.c.b16 %v1296, %v1295
      %v1311 = vpack.c.b16 %v1298, %v1297
      %v1312 = vpack.c.b16 %v1300, %v1299
      %v1313 = vpack.c.b16 %v1302, %v1301
      %v1314 = vpack.c.b16 %v1304, %v1303
      %v1315 = vpack.c.b16 %v1306, %v1305
      %v1316 = vpack.c.b16 %v1308, %v1307
      %1325 = vmatpush.bf16.msra.mxu0 %v1316
      %1326 = vmatpush.bf16.msra.mxu0 %v1315
      %1327 = vmatpush.bf16.msra.mxu0 %v1314
      %1328 = vmatpush.bf16.msra.mxu0 %v1313
      %1329 = vmatpush.bf16.msra.mxu0 %v1312
      %1330 = vmatpush.bf16.msra.mxu0 %v1311
      %1331 = vmatpush.bf16.msra.mxu0 %v1310
      %1332 = vmatpush.bf16.msra.mxu0 %v1309
      %1333 = vmatmul.bf16.gmra.mxu0 %v1275
      %v1334 = vpop.f32.mrf.mxu0
      %v1335 = vadd.f32 0.0, %v1334
      %v1336 = vpop.f32.mrf.mxu0
      %1337 = vdwg.mxu0
      %v1338 = vadd.f32 %v1253, %v1335
      %v1339 = vld [vmem:[%s545] sm:$0x3]
      %v1340 = vld [vmem:[%s7] sm:$0xf]
      %v1341 = vld [vmem:[%s7 + $0x4] sm:$0xf]
      %v1342 = vld [vmem:[%s7 + $0x8] sm:$0xf]
      %v1343 = vld [vmem:[%s7 + $0xc] sm:$0xf]
      %v1344 = vld [vmem:[%s7 + $0x10] sm:$0xf]
      %v1345 = vld [vmem:[%s7 + $0x14] sm:$0xf]
      %v1346 = vld [vmem:[%s7 + $0x18] sm:$0xf]
      %v1347 = vld [vmem:[%s7 + $0x1c] sm:$0xf]
      %v1348 = vld [vmem:[%s7 + $0x20] sm:$0xf]
      %v1349 = vld [vmem:[%s7 + $0x24] sm:$0xf]
      %v1350 = vld [vmem:[%s7 + $0x28] sm:$0xf]
      %v1351 = vld [vmem:[%s7 + $0x2c] sm:$0xf]
      %v1352 = vld [vmem:[%s7 + $0x30] sm:$0xf]
      %v1353 = vld [vmem:[%s7 + $0x34] sm:$0xf]
      %v1354 = vld [vmem:[%s7 + $0x38] sm:$0xf]
      %v1355 = vld [vmem:[%s7 + $0x3c] sm:$0xf]
      %v1372 = vunpack.c.l.b16 %v1340
      %v1373 = vunpack.c.l.b16 %v1341
      %v1374 = vunpack.c.l.b16 %v1342
      %v1375 = vunpack.c.l.b16 %v1343
      %v1376 = vunpack.c.l.b16 %v1344
      %v1377 = vunpack.c.l.b16 %v1345
      %v1378 = vunpack.c.l.b16 %v1346
      %v1379 = vunpack.c.l.b16 %v1347
      %v1380 = vunpack.c.l.b16 %v1348
      %v1381 = vunpack.c.l.b16 %v1349
      %v1382 = vunpack.c.l.b16 %v1350
      %v1383 = vunpack.c.l.b16 %v1351
      %v1384 = vunpack.c.l.b16 %v1352
      %v1385 = vunpack.c.l.b16 %v1353
      %v1386 = vunpack.c.l.b16 %v1354
      %v1387 = vunpack.c.l.b16 %v1355
      %v1388 = vpack.c.b16 %v1373, %v1372
      %v1389 = vpack.c.b16 %v1375, %v1374
      %v1390 = vpack.c.b16 %v1377, %v1376
      %v1391 = vpack.c.b16 %v1379, %v1378
      %v1392 = vpack.c.b16 %v1381, %v1380
      %v1393 = vpack.c.b16 %v1383, %v1382
      %v1394 = vpack.c.b16 %v1385, %v1384
      %v1395 = vpack.c.b16 %v1387, %v1386
      %1404 = vmatpush.bf16.msra.mxu0 %v1395
      %1405 = vmatpush.bf16.msra.mxu0 %v1394
      %1406 = vmatpush.bf16.msra.mxu0 %v1393
      %1407 = vmatpush.bf16.msra.mxu0 %v1392
      %1408 = vmatpush.bf16.msra.mxu0 %v1391
      %1409 = vmatpush.bf16.msra.mxu0 %v1390
      %1410 = vmatpush.bf16.msra.mxu0 %v1389
      %1411 = vmatpush.bf16.msra.mxu0 %v1388
      %1412 = vmatmul.bf16.gmra.mxu0 %v1339
      %v1413 = vpop.f32.mrf.mxu0
      %v1414 = vadd.f32 0.0, %v1413
      %v1415 = vpop.f32.mrf.mxu0
      %1416 = vdwg.mxu0
      %v1417 = vadd.f32 %v1338, %v1414
      %v1418 = vld [vmem:[%s545] sm:$0x7]
      %s1419 = scalar_lea.vmem %s7, 64
      %v1420 = vld [vmem:[%s1419] sm:$0xf]
      %v1421 = vld [vmem:[%s1419 + $0x4] sm:$0xf]
      %v1422 = vld [vmem:[%s1419 + $0x8] sm:$0xf]
      %v1423 = vld [vmem:[%s1419 + $0xc] sm:$0xf]
      %v1424 = vld [vmem:[%s1419 + $0x10] sm:$0xf]
      %v1425 = vld [vmem:[%s1419 + $0x14] sm:$0xf]
      %v1426 = vld [vmem:[%s1419 + $0x18] sm:$0xf]
      %v1427 = vld [vmem:[%s1419 + $0x1c] sm:$0xf]
      %v1428 = vld [vmem:[%s1419 + $0x20] sm:$0xf]
      %v1429 = vld [vmem:[%s1419 + $0x24] sm:$0xf]
      %v1430 = vld [vmem:[%s1419 + $0x28] sm:$0xf]
      %v1431 = vld [vmem:[%s1419 + $0x2c] sm:$0xf]
      %v1432 = vld [vmem:[%s1419 + $0x30] sm:$0xf]
      %v1433 = vld [vmem:[%s1419 + $0x34] sm:$0xf]
      %v1434 = vld [vmem:[%s1419 + $0x38] sm:$0xf]
      %v1435 = vld [vmem:[%s1419 + $0x3c] sm:$0xf]
      %v1437 = vunpack.c.l.b16 %v1418
      %v1438 = vpack.c.b16 %v1437, %v1437
      %v1440 = vshrl.u32 %v1438, 16
      %v1442 = vshll.u32 %v1438, 16
      %v1444 = vrot.slane %v1442, 1
      %v1445 = vor.u32 %v1440, %v1444
      %v1463 = vunpack.c.l.b16 %v1420
      %v1464 = vunpack.c.l.b16 %v1421
      %v1465 = vunpack.c.l.b16 %v1422
      %v1466 = vunpack.c.l.b16 %v1423
      %v1467 = vunpack.c.l.b16 %v1424
      %v1468 = vunpack.c.l.b16 %v1425
      %v1469 = vunpack.c.l.b16 %v1426
      %v1470 = vunpack.c.l.b16 %v1427
      %v1471 = vunpack.c.l.b16 %v1428
      %v1472 = vunpack.c.l.b16 %v1429
      %v1473 = vunpack.c.l.b16 %v1430
      %v1474 = vunpack.c.l.b16 %v1431
      %v1475 = vunpack.c.l.b16 %v1432
      %v1476 = vunpack.c.l.b16 %v1433
      %v1477 = vunpack.c.l.b16 %v1434
      %v1478 = vunpack.c.l.b16 %v1435
      %v1479 = vpack.c.b16 %v1464, %v1463
      %v1480 = vpack.c.b16 %v1466, %v1465
      %v1481 = vpack.c.b16 %v1468, %v1467
      %v1482 = vpack.c.b16 %v1470, %v1469
      %v1483 = vpack.c.b16 %v1472, %v1471
      %v1484 = vpack.c.b16 %v1474, %v1473
      %v1485 = vpack.c.b16 %v1476, %v1475
      %v1486 = vpack.c.b16 %v1478, %v1477
      %1495 = vmatpush.bf16.msra.mxu0 %v1486
      %1496 = vmatpush.bf16.msra.mxu0 %v1485
      %1497 = vmatpush.bf16.msra.mxu0 %v1484
      %1498 = vmatpush.bf16.msra.mxu0 %v1483
      %1499 = vmatpush.bf16.msra.mxu0 %v1482
      %1500 = vmatpush.bf16.msra.mxu0 %v1481
      %1501 = vmatpush.bf16.msra.mxu0 %v1480
      %1502 = vmatpush.bf16.msra.mxu0 %v1479
      %1503 = vmatmul.bf16.gmra.mxu0 %v1445
      %v1504 = vpop.f32.mrf.mxu0
      %v1505 = vadd.f32 0.0, %v1504
      %v1506 = vpop.f32.mrf.mxu0
      %1507 = vdwg.mxu0
      %v1508 = vadd.f32 %v1417, %v1505
      %v1509 = vld [vmem:[%s545] sm:$0x6]
      %s1510 = scalar_lea.vmem %s7, 128
      %v1511 = vld [vmem:[%s1510] sm:$0xf]
      %v1512 = vld [vmem:[%s1510 + $0x4] sm:$0xf]
      %v1513 = vld [vmem:[%s1510 + $0x8] sm:$0xf]
      %v1514 = vld [vmem:[%s1510 + $0xc] sm:$0xf]
      %v1515 = vld [vmem:[%s1510 + $0x10] sm:$0xf]
      %v1516 = vld [vmem:[%s1510 + $0x14] sm:$0xf]
      %v1517 = vld [vmem:[%s1510 + $0x18] sm:$0xf]
      %v1518 = vld [vmem:[%s1510 + $0x1c] sm:$0xf]
      %v1519 = vld [vmem:[%s1510 + $0x20] sm:$0xf]
      %v1520 = vld [vmem:[%s1510 + $0x24] sm:$0xf]
      %v1521 = vld [vmem:[%s1510 + $0x28] sm:$0xf]
      %v1522 = vld [vmem:[%s1510 + $0x2c] sm:$0xf]
      %v1523 = vld [vmem:[%s1510 + $0x30] sm:$0xf]
      %v1524 = vld [vmem:[%s1510 + $0x34] sm:$0xf]
      %v1525 = vld [vmem:[%s1510 + $0x38] sm:$0xf]
      %v1526 = vld [vmem:[%s1510 + $0x3c] sm:$0xf]
      %v1528 = vunpack.c.l.b16 %v1509
      %v1529 = vpack.c.b16 %v1528, %v1528
      %v1530 = vrot.slane %v1529, 1
      %v1548 = vunpack.c.l.b16 %v1511
      %v1549 = vunpack.c.l.b16 %v1512
      %v1550 = vunpack.c.l.b16 %v1513
      %v1551 = vunpack.c.l.b16 %v1514
      %v1552 = vunpack.c.l.b16 %v1515
      %v1553 = vunpack.c.l.b16 %v1516
      %v1554 = vunpack.c.l.b16 %v1517
      %v1555 = vunpack.c.l.b16 %v1518
      %v1556 = vunpack.c.l.b16 %v1519
      %v1557 = vunpack.c.l.b16 %v1520
      %v1558 = vunpack.c.l.b16 %v1521
      %v1559 = vunpack.c.l.b16 %v1522
      %v1560 = vunpack.c.l.b16 %v1523
      %v1561 = vunpack.c.l.b16 %v1524
      %v1562 = vunpack.c.l.b16 %v1525
      %v1563 = vunpack.c.l.b16 %v1526
      %v1564 = vpack.c.b16 %v1549, %v1548
      %v1565 = vpack.c.b16 %v1551, %v1550
      %v1566 = vpack.c.b16 %v1553, %v1552
      %v1567 = vpack.c.b16 %v1555, %v1554
      %v1568 = vpack.c.b16 %v1557, %v1556
      %v1569 = vpack.c.b16 %v1559, %v1558
      %v1570 = vpack.c.b16 %v1561, %v1560
      %v1571 = vpack.c.b16 %v1563, %v1562
      %1580 = vmatpush.bf16.msra.mxu0 %v1571
      %1581 = vmatpush.bf16.msra.mxu0 %v1570
      %1582 = vmatpush.bf16.msra.mxu0 %v1569
      %1583 = vmatpush.bf16.msra.mxu0 %v1568
      %1584 = vmatpush.bf16.msra.mxu0 %v1567
      %1585 = vmatpush.bf16.msra.mxu0 %v1566
      %1586 = vmatpush.bf16.msra.mxu0 %v1565
      %1587 = vmatpush.bf16.msra.mxu0 %v1564
      %1588 = vmatmul.bf16.gmra.mxu0 %v1530
      %v1589 = vpop.f32.mrf.mxu0
      %v1590 = vadd.f32 0.0, %v1589
      %v1591 = vpop.f32.mrf.mxu0
      %1592 = vdwg.mxu0
      %v1593 = vadd.f32 %v1508, %v1590
      %v1594 = vld [vmem:[%s554] sm:$0x3]
      %s1595 = scalar_lea.vmem %s7, 192
      %v1596 = vld [vmem:[%s1595] sm:$0xf]
      %v1597 = vld [vmem:[%s1595 + $0x4] sm:$0xf]
      %v1598 = vld [vmem:[%s1595 + $0x8] sm:$0xf]
      %v1599 = vld [vmem:[%s1595 + $0xc] sm:$0xf]
      %v1600 = vld [vmem:[%s1595 + $0x10] sm:$0xf]
      %v1601 = vld [vmem:[%s1595 + $0x14] sm:$0xf]
      %v1602 = vld [vmem:[%s1595 + $0x18] sm:$0xf]
      %v1603 = vld [vmem:[%s1595 + $0x1c] sm:$0xf]
      %v1604 = vld [vmem:[%s1595 + $0x20] sm:$0xf]
      %v1605 = vld [vmem:[%s1595 + $0x24] sm:$0xf]
      %v1606 = vld [vmem:[%s1595 + $0x28] sm:$0xf]
      %v1607 = vld [vmem:[%s1595 + $0x2c] sm:$0xf]
      %v1608 = vld [vmem:[%s1595 + $0x30] sm:$0xf]
      %v1609 = vld [vmem:[%s1595 + $0x34] sm:$0xf]
      %v1610 = vld [vmem:[%s1595 + $0x38] sm:$0xf]
      %v1611 = vld [vmem:[%s1595 + $0x3c] sm:$0xf]
      %v1628 = vunpack.c.l.b16 %v1596
      %v1629 = vunpack.c.l.b16 %v1597
      %v1630 = vunpack.c.l.b16 %v1598
      %v1631 = vunpack.c.l.b16 %v1599
      %v1632 = vunpack.c.l.b16 %v1600
      %v1633 = vunpack.c.l.b16 %v1601
      %v1634 = vunpack.c.l.b16 %v1602
      %v1635 = vunpack.c.l.b16 %v1603
      %v1636 = vunpack.c.l.b16 %v1604
      %v1637 = vunpack.c.l.b16 %v1605
      %v1638 = vunpack.c.l.b16 %v1606
      %v1639 = vunpack.c.l.b16 %v1607
      %v1640 = vunpack.c.l.b16 %v1608
      %v1641 = vunpack.c.l.b16 %v1609
      %v1642 = vunpack.c.l.b16 %v1610
      %v1643 = vunpack.c.l.b16 %v1611
      %v1644 = vpack.c.b16 %v1629, %v1628
      %v1645 = vpack.c.b16 %v1631, %v1630
      %v1646 = vpack.c.b16 %v1633, %v1632
      %v1647 = vpack.c.b16 %v1635, %v1634
      %v1648 = vpack.c.b16 %v1637, %v1636
      %v1649 = vpack.c.b16 %v1639, %v1638
      %v1650 = vpack.c.b16 %v1641, %v1640
      %v1651 = vpack.c.b16 %v1643, %v1642
      %1660 = vmatpush.bf16.msra.mxu0 %v1651
      %1661 = vmatpush.bf16.msra.mxu0 %v1650
      %1662 = vmatpush.bf16.msra.mxu0 %v1649
      %1663 = vmatpush.bf16.msra.mxu0 %v1648
      %1664 = vmatpush.bf16.msra.mxu0 %v1647
      %1665 = vmatpush.bf16.msra.mxu0 %v1646
      %1666 = vmatpush.bf16.msra.mxu0 %v1645
      %1667 = vmatpush.bf16.msra.mxu0 %v1644
      %1668 = vmatmul.bf16.gmra.mxu0 %v1594
      %v1669 = vpop.f32.mrf.mxu0
      %v1670 = vadd.f32 0.0, %v1669
      %v1671 = vpop.f32.mrf.mxu0
      %1672 = vdwg.mxu0
      %v1673 = vadd.f32 %v1593, %v1670
      %v1674 = vld [vmem:[%s554] sm:$0x7]
      %s1675 = scalar_lea.vmem %s7, 256
      %v1676 = vld [vmem:[%s1675] sm:$0xf]
      %v1677 = vld [vmem:[%s1675 + $0x4] sm:$0xf]
      %v1678 = vld [vmem:[%s1675 + $0x8] sm:$0xf]
      %v1679 = vld [vmem:[%s1675 + $0xc] sm:$0xf]
      %v1680 = vld [vmem:[%s1675 + $0x10] sm:$0xf]
      %v1681 = vld [vmem:[%s1675 + $0x14] sm:$0xf]
      %v1682 = vld [vmem:[%s1675 + $0x18] sm:$0xf]
      %v1683 = vld [vmem:[%s1675 + $0x1c] sm:$0xf]
      %v1684 = vld [vmem:[%s1675 + $0x20] sm:$0xf]
      %v1685 = vld [vmem:[%s1675 + $0x24] sm:$0xf]
      %v1686 = vld [vmem:[%s1675 + $0x28] sm:$0xf]
      %v1687 = vld [vmem:[%s1675 + $0x2c] sm:$0xf]
      %v1688 = vld [vmem:[%s1675 + $0x30] sm:$0xf]
      %v1689 = vld [vmem:[%s1675 + $0x34] sm:$0xf]
      %v1690 = vld [vmem:[%s1675 + $0x38] sm:$0xf]
      %v1691 = vld [vmem:[%s1675 + $0x3c] sm:$0xf]
      %v1693 = vunpack.c.l.b16 %v1674
      %v1694 = vpack.c.b16 %v1693, %v1693
      %v1696 = vshrl.u32 %v1694, 16
      %v1698 = vshll.u32 %v1694, 16
      %v1700 = vrot.slane %v1698, 1
      %v1701 = vor.u32 %v1696, %v1700
      %v1719 = vunpack.c.l.b16 %v1676
      %v1720 = vunpack.c.l.b16 %v1677
      %v1721 = vunpack.c.l.b16 %v1678
      %v1722 = vunpack.c.l.b16 %v1679
      %v1723 = vunpack.c.l.b16 %v1680
      %v1724 = vunpack.c.l.b16 %v1681
      %v1725 = vunpack.c.l.b16 %v1682
      %v1726 = vunpack.c.l.b16 %v1683
      %v1727 = vunpack.c.l.b16 %v1684
      %v1728 = vunpack.c.l.b16 %v1685
      %v1729 = vunpack.c.l.b16 %v1686
      %v1730 = vunpack.c.l.b16 %v1687
      %v1731 = vunpack.c.l.b16 %v1688
      %v1732 = vunpack.c.l.b16 %v1689
      %v1733 = vunpack.c.l.b16 %v1690
      %v1734 = vunpack.c.l.b16 %v1691
      %v1735 = vpack.c.b16 %v1720, %v1719
      %v1736 = vpack.c.b16 %v1722, %v1721
      %v1737 = vpack.c.b16 %v1724, %v1723
      %v1738 = vpack.c.b16 %v1726, %v1725
      %v1739 = vpack.c.b16 %v1728, %v1727
      %v1740 = vpack.c.b16 %v1730, %v1729
      %v1741 = vpack.c.b16 %v1732, %v1731
      %v1742 = vpack.c.b16 %v1734, %v1733
      %1751 = vmatpush.bf16.msra.mxu0 %v1742
      %1752 = vmatpush.bf16.msra.mxu0 %v1741
      %1753 = vmatpush.bf16.msra.mxu0 %v1740
      %1754 = vmatpush.bf16.msra.mxu0 %v1739
      %1755 = vmatpush.bf16.msra.mxu0 %v1738
      %1756 = vmatpush.bf16.msra.mxu0 %v1737
      %1757 = vmatpush.bf16.msra.mxu0 %v1736
      %1758 = vmatpush.bf16.msra.mxu0 %v1735
      %1759 = vmatmul.bf16.gmra.mxu0 %v1701
      %v1760 = vpop.f32.mrf.mxu0
      %v1761 = vadd.f32 0.0, %v1760
      %v1762 = vpop.f32.mrf.mxu0
      %1763 = vdwg.mxu0
      %v1764 = vadd.f32 %v1673, %v1761
      %v1765 = vld [vmem:[%s554] sm:$0x6]
      %s1766 = scalar_lea.vmem %s7, 320
      %v1767 = vld [vmem:[%s1766] sm:$0xf]
      %v1768 = vld [vmem:[%s1766 + $0x4] sm:$0xf]
      %v1769 = vld [vmem:[%s1766 + $0x8] sm:$0xf]
      %v1770 = vld [vmem:[%s1766 + $0xc] sm:$0xf]
      %v1771 = vld [vmem:[%s1766 + $0x10] sm:$0xf]
      %v1772 = vld [vmem:[%s1766 + $0x14] sm:$0xf]
      %v1773 = vld [vmem:[%s1766 + $0x18] sm:$0xf]
      %v1774 = vld [vmem:[%s1766 + $0x1c] sm:$0xf]
      %v1775 = vld [vmem:[%s1766 + $0x20] sm:$0xf]
      %v1776 = vld [vmem:[%s1766 + $0x24] sm:$0xf]
      %v1777 = vld [vmem:[%s1766 + $0x28] sm:$0xf]
      %v1778 = vld [vmem:[%s1766 + $0x2c] sm:$0xf]
      %v1779 = vld [vmem:[%s1766 + $0x30] sm:$0xf]
      %v1780 = vld [vmem:[%s1766 + $0x34] sm:$0xf]
      %v1781 = vld [vmem:[%s1766 + $0x38] sm:$0xf]
      %v1782 = vld [vmem:[%s1766 + $0x3c] sm:$0xf]
      %v1784 = vunpack.c.l.b16 %v1765
      %v1785 = vpack.c.b16 %v1784, %v1784
      %v1786 = vrot.slane %v1785, 1
      %v1804 = vunpack.c.l.b16 %v1767
      %v1805 = vunpack.c.l.b16 %v1768
      %v1806 = vunpack.c.l.b16 %v1769
      %v1807 = vunpack.c.l.b16 %v1770
      %v1808 = vunpack.c.l.b16 %v1771
      %v1809 = vunpack.c.l.b16 %v1772
      %v1810 = vunpack.c.l.b16 %v1773
      %v1811 = vunpack.c.l.b16 %v1774
      %v1812 = vunpack.c.l.b16 %v1775
      %v1813 = vunpack.c.l.b16 %v1776
      %v1814 = vunpack.c.l.b16 %v1777
      %v1815 = vunpack.c.l.b16 %v1778
      %v1816 = vunpack.c.l.b16 %v1779
      %v1817 = vunpack.c.l.b16 %v1780
      %v1818 = vunpack.c.l.b16 %v1781
      %v1819 = vunpack.c.l.b16 %v1782
      %v1820 = vpack.c.b16 %v1805, %v1804
      %v1821 = vpack.c.b16 %v1807, %v1806
      %v1822 = vpack.c.b16 %v1809, %v1808
      %v1823 = vpack.c.b16 %v1811, %v1810
      %v1824 = vpack.c.b16 %v1813, %v1812
      %v1825 = vpack.c.b16 %v1815, %v1814
      %v1826 = vpack.c.b16 %v1817, %v1816
      %v1827 = vpack.c.b16 %v1819, %v1818
      %1836 = vmatpush.bf16.msra.mxu0 %v1827
      %1837 = vmatpush.bf16.msra.mxu0 %v1826
      %1838 = vmatpush.bf16.msra.mxu0 %v1825
      %1839 = vmatpush.bf16.msra.mxu0 %v1824
      %1840 = vmatpush.bf16.msra.mxu0 %v1823
      %1841 = vmatpush.bf16.msra.mxu0 %v1822
      %1842 = vmatpush.bf16.msra.mxu0 %v1821
      %1843 = vmatpush.bf16.msra.mxu0 %v1820
      %1844 = vmatmul.bf16.gmra.mxu0 %v1786
      %v1845 = vpop.f32.mrf.mxu0
      %v1846 = vadd.f32 0.0, %v1845
      %v1847 = vpop.f32.mrf.mxu0
      %1848 = vdwg.mxu0
      %v1849 = vadd.f32 %v1764, %v1846
      %v1850 = vld [vmem:[%s564] sm:$0x3]
      %s1851 = scalar_lea.vmem %s7, 384
      %v1852 = vld [vmem:[%s1851] sm:$0xf]
      %v1853 = vld [vmem:[%s1851 + $0x4] sm:$0xf]
      %v1854 = vld [vmem:[%s1851 + $0x8] sm:$0xf]
      %v1855 = vld [vmem:[%s1851 + $0xc] sm:$0xf]
      %v1856 = vld [vmem:[%s1851 + $0x10] sm:$0xf]
      %v1857 = vld [vmem:[%s1851 + $0x14] sm:$0xf]
      %v1858 = vld [vmem:[%s1851 + $0x18] sm:$0xf]
      %v1859 = vld [vmem:[%s1851 + $0x1c] sm:$0xf]
      %v1860 = vld [vmem:[%s1851 + $0x20] sm:$0xf]
      %v1861 = vld [vmem:[%s1851 + $0x24] sm:$0xf]
      %v1862 = vld [vmem:[%s1851 + $0x28] sm:$0xf]
      %v1863 = vld [vmem:[%s1851 + $0x2c] sm:$0xf]
      %v1864 = vld [vmem:[%s1851 + $0x30] sm:$0xf]
      %v1865 = vld [vmem:[%s1851 + $0x34] sm:$0xf]
      %v1866 = vld [vmem:[%s1851 + $0x38] sm:$0xf]
      %v1867 = vld [vmem:[%s1851 + $0x3c] sm:$0xf]
      %v1884 = vunpack.c.l.b16 %v1852
      %v1885 = vunpack.c.l.b16 %v1853
      %v1886 = vunpack.c.l.b16 %v1854
      %v1887 = vunpack.c.l.b16 %v1855
      %v1888 = vunpack.c.l.b16 %v1856
      %v1889 = vunpack.c.l.b16 %v1857
      %v1890 = vunpack.c.l.b16 %v1858
      %v1891 = vunpack.c.l.b16 %v1859
      %v1892 = vunpack.c.l.b16 %v1860
      %v1893 = vunpack.c.l.b16 %v1861
      %v1894 = vunpack.c.l.b16 %v1862
      %v1895 = vunpack.c.l.b16 %v1863
      %v1896 = vunpack.c.l.b16 %v1864
      %v1897 = vunpack.c.l.b16 %v1865
      %v1898 = vunpack.c.l.b16 %v1866
      %v1899 = vunpack.c.l.b16 %v1867
      %v1900 = vpack.c.b16 %v1885, %v1884
      %v1901 = vpack.c.b16 %v1887, %v1886
      %v1902 = vpack.c.b16 %v1889, %v1888
      %v1903 = vpack.c.b16 %v1891, %v1890
      %v1904 = vpack.c.b16 %v1893, %v1892
      %v1905 = vpack.c.b16 %v1895, %v1894
      %v1906 = vpack.c.b16 %v1897, %v1896
      %v1907 = vpack.c.b16 %v1899, %v1898
      %1916 = vmatpush.bf16.msra.mxu0 %v1907
      %1917 = vmatpush.bf16.msra.mxu0 %v1906
      %1918 = vmatpush.bf16.msra.mxu0 %v1905
      %1919 = vmatpush.bf16.msra.mxu0 %v1904
      %1920 = vmatpush.bf16.msra.mxu0 %v1903
      %1921 = vmatpush.bf16.msra.mxu0 %v1902
      %1922 = vmatpush.bf16.msra.mxu0 %v1901
      %1923 = vmatpush.bf16.msra.mxu0 %v1900
      %1924 = vmatmul.bf16.gmra.mxu0 %v1850
      %v1925 = vpop.f32.mrf.mxu0
      %v1926 = vadd.f32 0.0, %v1925
      %v1927 = vpop.f32.mrf.mxu0
      %1928 = vdwg.mxu0
      %v1929 = vadd.f32 %v1849, %v1926
      %v1930 = vld [vmem:[%s564] sm:$0x7]
      %s1931 = scalar_lea.vmem %s7, 448
      %v1932 = vld [vmem:[%s1931] sm:$0xf]
      %v1933 = vld [vmem:[%s1931 + $0x4] sm:$0xf]
      %v1934 = vld [vmem:[%s1931 + $0x8] sm:$0xf]
      %v1935 = vld [vmem:[%s1931 + $0xc] sm:$0xf]
      %v1936 = vld [vmem:[%s1931 + $0x10] sm:$0xf]
      %v1937 = vld [vmem:[%s1931 + $0x14] sm:$0xf]
      %v1938 = vld [vmem:[%s1931 + $0x18] sm:$0xf]
      %v1939 = vld [vmem:[%s1931 + $0x1c] sm:$0xf]
      %v1940 = vld [vmem:[%s1931 + $0x20] sm:$0xf]
      %v1941 = vld [vmem:[%s1931 + $0x24] sm:$0xf]
      %v1942 = vld [vmem:[%s1931 + $0x28] sm:$0xf]
      %v1943 = vld [vmem:[%s1931 + $0x2c] sm:$0xf]
      %v1944 = vld [vmem:[%s1931 + $0x30] sm:$0xf]
      %v1945 = vld [vmem:[%s1931 + $0x34] sm:$0xf]
      %v1946 = vld [vmem:[%s1931 + $0x38] sm:$0xf]
      %v1947 = vld [vmem:[%s1931 + $0x3c] sm:$0xf]
      %v1949 = vunpack.c.l.b16 %v1930
      %v1950 = vpack.c.b16 %v1949, %v1949
      %v1952 = vshrl.u32 %v1950, 16
      %v1954 = vshll.u32 %v1950, 16
      %v1956 = vrot.slane %v1954, 1
      %v1957 = vor.u32 %v1952, %v1956
      %v1975 = vunpack.c.l.b16 %v1932
      %v1976 = vunpack.c.l.b16 %v1933
      %v1977 = vunpack.c.l.b16 %v1934
      %v1978 = vunpack.c.l.b16 %v1935
      %v1979 = vunpack.c.l.b16 %v1936
      %v1980 = vunpack.c.l.b16 %v1937
      %v1981 = vunpack.c.l.b16 %v1938
      %v1982 = vunpack.c.l.b16 %v1939
      %v1983 = vunpack.c.l.b16 %v1940
      %v1984 = vunpack.c.l.b16 %v1941
      %v1985 = vunpack.c.l.b16 %v1942
      %v1986 = vunpack.c.l.b16 %v1943
      %v1987 = vunpack.c.l.b16 %v1944
      %v1988 = vunpack.c.l.b16 %v1945
      %v1989 = vunpack.c.l.b16 %v1946
      %v1990 = vunpack.c.l.b16 %v1947
      %v1991 = vpack.c.b16 %v1976, %v1975
      %v1992 = vpack.c.b16 %v1978, %v1977
      %v1993 = vpack.c.b16 %v1980, %v1979
      %v1994 = vpack.c.b16 %v1982, %v1981
      %v1995 = vpack.c.b16 %v1984, %v1983
      %v1996 = vpack.c.b16 %v1986, %v1985
      %v1997 = vpack.c.b16 %v1988, %v1987
      %v1998 = vpack.c.b16 %v1990, %v1989
      %2007 = vmatpush.bf16.msra.mxu0 %v1998
      %2008 = vmatpush.bf16.msra.mxu0 %v1997
      %2009 = vmatpush.bf16.msra.mxu0 %v1996
      %2010 = vmatpush.bf16.msra.mxu0 %v1995
      %2011 = vmatpush.bf16.msra.mxu0 %v1994
      %2012 = vmatpush.bf16.msra.mxu0 %v1993
      %2013 = vmatpush.bf16.msra.mxu0 %v1992
      %2014 = vmatpush.bf16.msra.mxu0 %v1991
      %2015 = vmatmul.bf16.gmra.mxu0 %v1957
      %v2016 = vpop.f32.mrf.mxu0
      %v2017 = vadd.f32 0.0, %v2016
      %v2018 = vpop.f32.mrf.mxu0
      %2019 = vdwg.mxu0
      %v2020 = vadd.f32 %v1929, %v2017
      %v2021 = vld [vmem:[%s564] sm:$0x6]
      %s2022 = scalar_lea.vmem %s7, 512
      %v2023 = vld [vmem:[%s2022] sm:$0xf]
      %v2024 = vld [vmem:[%s2022 + $0x4] sm:$0xf]
      %v2025 = vld [vmem:[%s2022 + $0x8] sm:$0xf]
      %v2026 = vld [vmem:[%s2022 + $0xc] sm:$0xf]
      %v2027 = vld [vmem:[%s2022 + $0x10] sm:$0xf]
      %v2028 = vld [vmem:[%s2022 + $0x14] sm:$0xf]
      %v2029 = vld [vmem:[%s2022 + $0x18] sm:$0xf]
      %v2030 = vld [vmem:[%s2022 + $0x1c] sm:$0xf]
      %v2031 = vld [vmem:[%s2022 + $0x20] sm:$0xf]
      %v2032 = vld [vmem:[%s2022 + $0x24] sm:$0xf]
      %v2033 = vld [vmem:[%s2022 + $0x28] sm:$0xf]
      %v2034 = vld [vmem:[%s2022 + $0x2c] sm:$0xf]
      %v2035 = vld [vmem:[%s2022 + $0x30] sm:$0xf]
      %v2036 = vld [vmem:[%s2022 + $0x34] sm:$0xf]
      %v2037 = vld [vmem:[%s2022 + $0x38] sm:$0xf]
      %v2038 = vld [vmem:[%s2022 + $0x3c] sm:$0xf]
      %v2040 = vunpack.c.l.b16 %v2021
      %v2041 = vpack.c.b16 %v2040, %v2040
      %v2042 = vrot.slane %v2041, 1
      %v2060 = vunpack.c.l.b16 %v2023
      %v2061 = vunpack.c.l.b16 %v2024
      %v2062 = vunpack.c.l.b16 %v2025
      %v2063 = vunpack.c.l.b16 %v2026
      %v2064 = vunpack.c.l.b16 %v2027
      %v2065 = vunpack.c.l.b16 %v2028
      %v2066 = vunpack.c.l.b16 %v2029
      %v2067 = vunpack.c.l.b16 %v2030
      %v2068 = vunpack.c.l.b16 %v2031
      %v2069 = vunpack.c.l.b16 %v2032
      %v2070 = vunpack.c.l.b16 %v2033
      %v2071 = vunpack.c.l.b16 %v2034
      %v2072 = vunpack.c.l.b16 %v2035
      %v2073 = vunpack.c.l.b16 %v2036
      %v2074 = vunpack.c.l.b16 %v2037
      %v2075 = vunpack.c.l.b16 %v2038
      %v2076 = vpack.c.b16 %v2061, %v2060
      %v2077 = vpack.c.b16 %v2063, %v2062
      %v2078 = vpack.c.b16 %v2065, %v2064
      %v2079 = vpack.c.b16 %v2067, %v2066
      %v2080 = vpack.c.b16 %v2069, %v2068
      %v2081 = vpack.c.b16 %v2071, %v2070
      %v2082 = vpack.c.b16 %v2073, %v2072
      %v2083 = vpack.c.b16 %v2075, %v2074
      %2092 = vmatpush.bf16.msra.mxu0 %v2083
      %2093 = vmatpush.bf16.msra.mxu0 %v2082
      %2094 = vmatpush.bf16.msra.mxu0 %v2081
      %2095 = vmatpush.bf16.msra.mxu0 %v2080
      %2096 = vmatpush.bf16.msra.mxu0 %v2079
      %2097 = vmatpush.bf16.msra.mxu0 %v2078
      %2098 = vmatpush.bf16.msra.mxu0 %v2077
      %2099 = vmatpush.bf16.msra.mxu0 %v2076
      %2100 = vmatmul.bf16.gmra.mxu0 %v2042
      %v2101 = vpop.f32.mrf.mxu0
      %v2102 = vadd.f32 0.0, %v2101
      %v2103 = vpop.f32.mrf.mxu0
      %2104 = vdwg.mxu0
      %v2105 = vadd.f32 %v2020, %v2102
      %v2106 = vld [vmem:[%s8] sm:$0x1]
      %v2108 = vperm.slane %v2106, 0
      %v2110 = vmul.f32 %v2105, %v2108
      %v2111 = vld [vmem:[%s9] sm:$0x1]
      %v2113 = vperm.slane %v2111, 0
      %v2115 = vadd.f32 %v2110, %v2113
      %v2116 = vmax.f32 %v2115, 0.0
      %v2117 = vpack.c.bf16 %v2116, %v2116
      %2118 = vst [vmem:[%s573] sm:$0x3] %v2117
      %p2119 = scmp.lt.s32.totalorder %s25, 1
      %s2120 = scalar_select %p2119, %s25, 1
      %p2121 = scmp.lt.s32.totalorder %s26, 3
      %s2122 = scalar_select %p2121, %s26, 3
      %s2123 = smul.addr %s2120, 4
      %s2124 = sadd.s32 %s2122, %s2123
      %s2125 = smul.addr %s2124, 2
      %s2126 = scalar_lea.vmem %s10, %s2125
      // Predicated region
      $region61: #{stem_block_forward.9} parent=59 // pred_check
        %p2127 = pneg %p313
      $region62: #{stem_block_forward.9} parent=59 // pred_check_branch
        %2129 = sbr.rel (%p2127) target = $region64
      $region63: #{stem_block_forward.9} parent=59 // pred_region
        _
      $region64: #{stem_block_forward.9} parent=59 // pred_fallthru
        _
    $region60: #{stem_block_forward.9} parent=5 // pred_fallthru
      _
    %p2130 = scmp.le.s32.totalorder 2, %s16
    // Predicated region
    $region65: #{stem_block_forward.9} parent=5 // pred_check
      %p2131 = pneg %p2130
    $region66: #{stem_block_forward.9} parent=5 // pred_check_branch
      %2133 = sbr.rel (%p2131) target = $region68
    $region67: #{stem_block_forward.9} parent=5 // pred_region
      %s2134 = ssub.s32 %s16, 2
      // Predicated region
      $region69: #{stem_block_forward.9} parent=67 // pred_check
        %p2135 = pneg %p319
      $region70: #{stem_block_forward.9} parent=67 // pred_check_branch
        %2137 = sbr.rel (%p2135) target = $region72
      $region71: #{stem_block_forward.9} parent=67 // pred_region
        %p2138 = scmp.lt.s32.totalorder %s27, 1
        %s2139 = scalar_select %p2138, %s27, 1
        %p2140 = scmp.lt.s32.totalorder %s28, 3
        %s2141 = scalar_select %p2140, %s28, 3
        %s2142 = smul.addr %s2139, 4
        %s2143 = sadd.s32 %s2141, %s2142
        %s2144 = smul.addr %s2143, 2
        %s2145 = scalar_lea.vmem %s10, %s2144
      $region72: #{stem_block_forward.9} parent=67 // pred_fallthru
        _
    $region68: #{stem_block_forward.9} parent=5 // pred_fallthru
      _
  $region6: #{stem_block_forward.9} parent=0 // loop_footer
    %s20 = sadd.s32 1, %s16
  $region7: #{stem_block_forward.9} parent=0 // loop_footer_branch
    %15 = sbr.rel target = $region3
  $region8: #{stem_block_forward.9} parent=0 // loop_exit
    _

</llo_original>
